<compile_context>
chip_gen: v7x
topology: tpu7x:2x2x1
jax: 0.10.0
libtpu: 0.0.40
codegen_flags: <defaults>
</compile_context>

<pallas_src>
import functools

import jax
import jax.numpy as jnp
from jax.experimental import pallas as pl
from jax.experimental.pallas import tpu as pltpu

# ---------------- configuration (consistent with the module) -----------------
PATCH_H = 4                  # patch_size = (PATCH_H, PATCH_W)
PATCH_W = 16                 # == neural feature dim F
PATCH_DIM = PATCH_H * PATCH_W
DIM = 32
DEPTH = 2
HEADS = 2
DIM_HEAD = 16
INNER = HEADS * DIM_HEAD
MLP_DIM = 2 * DIM            # mlp_dim_ratio = 2
N_CLASSES = 8                # projection -> N_CLASSES + 1
MAX_REL_DIST = 200           # T5-style relative position bias
GAUSS_K = 20                 # GaussianSmoothing kernel size
GAUSS_SIGMA = 2.0            # gaussianSmoothWidth
EPS = 1e-5                   # nn.LayerNorm default eps
F32 = jnp.float32
_SQRT1_2 = 0.7071067811865476


# ---------------- in-kernel helper -------------------------------------------
def _layernorm(x, g, b):
    mu = jnp.mean(x, axis=-1, keepdims=True)
    var = jnp.mean(jnp.square(x - mu), axis=-1, keepdims=True)
    return (x - mu) * jax.lax.rsqrt(var + EPS) * g + b


# ---------------- fused Pallas kernel -----------------------------------------
def bit_fused_kernel(x_ref, bandT_ref, vec_pd_ref, pe_w_ref, vec_dim_ref,
                     wqkv_ref, wo_ref, bias_ref, lvec_ref, b1_ref,
                     w1_ref, w2_ref, proj_w_ref, proj_b_ref, o_ref):
    """BiT_Phoneme eval forward for one batch tile (bt sequences), fully in VMEM."""
    btF, T = x_ref.shape
    bt = btF // PATCH_W
    Tp8 = bandT_ref.shape[1]
    depth, dim, three_inner = wqkv_ref.shape
    inner = three_inner // 3
    dim_head = inner // HEADS
    P8 = bias_ref.shape[-1]
    N8 = bt * P8
    scale = float(dim_head) ** -0.5

    # ---- Gaussian smoothing + patchify: one matmul with bt*F rows ----
    # x arrives pre-transposed as (bt*F, T).  bandT columns are ordered (r, p)
    # so the patch split is a tile-aligned sublane slice + lane concat.
    smT = jnp.dot(x_ref[...], bandT_ref[...], preferred_element_type=F32)   # (bt*F, Tp8)
    smt = jnp.swapaxes(smT.reshape(bt, PATCH_W, Tp8), 1, 2)                 # (bt, Tp8, F)
    patches = jnp.concatenate(
        [smt[:, r * P8:(r + 1) * P8, :] for r in range(PATCH_H)], axis=-1)  # (bt, P8, patch_dim)
    patches = patches.reshape(N8, PATCH_H * PATCH_W)                        # (bt*P8, patch_dim)

    # ---- patch embedding: LayerNorm -> Linear -> LayerNorm ----
    vpd = vec_pd_ref[...]                    # (2, patch_dim): ln0 gamma / beta
    vdm = vec_dim_ref[...]                   # (5, dim): pe_b, ln1 g/b, final g/b
    h = _layernorm(patches, vpd[0:1], vpd[1:2])
    h = jnp.dot(h, pe_w_ref[...], preferred_element_type=F32) + vdm[0:1]
    tok = _layernorm(h, vdm[1:2], vdm[2:3])                                 # (N8, dim)

    for d in range(depth):
        lv = lvec_ref[d]                     # (6, dim): attn g/b, bo, ffn g/b, b2
        bias = bias_ref[d][None]             # (1, P8, P8): rel-bias + causal -inf

        # ---- pre-LN multi-head attention (+ residual), fused QKV ----
        xn = _layernorm(tok, lv[0:1], lv[1:2])
        qkv = jnp.dot(xn, wqkv_ref[d], preferred_element_type=F32)          # (N8, 3*inner)
        head_out = []
        for hh in range(HEADS):
            q = qkv[:, hh * dim_head:(hh + 1) * dim_head].reshape(bt, P8, dim_head)
            k = qkv[:, inner + hh * dim_head:inner + (hh + 1) * dim_head].reshape(bt, P8, dim_head)
            v = qkv[:, 2 * inner + hh * dim_head:2 * inner + (hh + 1) * dim_head].reshape(bt, P8, dim_head)
            dots = jnp.einsum('bqd,bkd->bqk', q, k,
                              preferred_element_type=F32) * scale + bias
            m = jnp.max(dots, axis=-1, keepdims=True)
            e = jnp.exp(dots - m)
            den = jnp.sum(e, axis=-1, keepdims=True)
            attn = e * pl.reciprocal(den, approx=True)       # divide on the EUP slot
            ho = jnp.einsum('bqk,bkd->bqd', attn, v, preferred_element_type=F32)
            head_out.append(ho.reshape(N8, dim_head))
        cat = jnp.concatenate(head_out, axis=-1)                            # (N8, inner)
        tok = tok + jnp.dot(cat, wo_ref[d], preferred_element_type=F32) + lv[2:3]

        # ---- FFN (+ residual): LN -> Linear -> exact GELU -> Linear ----
        fn = _layernorm(tok, lv[3:4], lv[4:5])
        f1 = jnp.dot(fn, w1_ref[d], preferred_element_type=F32) + b1_ref[d]
        f1 = 0.5 * f1 * (1.0 + jax.lax.erf(f1 * _SQRT1_2))                  # nn.GELU (exact)
        tok = tok + jnp.dot(f1, w2_ref[d], preferred_element_type=F32) + lv[5:6]

    # ---- final LayerNorm + projection ----
    hf = _layernorm(tok, vdm[3:4], vdm[4:5])
    out = jnp.dot(hf, proj_w_ref[...], preferred_element_type=F32) + proj_b_ref[...]
    o_ref[...] = out.reshape(bt, P8, out.shape[-1])


# ---------------- one-time preparation (hoisted out of the per-call path) -----
def prepare_params(params, T):
    """Pack weights and precompute the band / relative-bias constants for length T."""
    P = -(-T // PATCH_H)
    P8 = -(-P // 8) * 8
    Tp8 = P8 * PATCH_H
    left = (GAUSS_K - 1) // 2        # PyTorch conv1d padding='same': left=9, right=10

    # Banded smoothing matrix: folds pad_to_multiple (pad BEFORE smoothing, as in
    # the reference) + conv1d 'same' zero padding + the patch row split.  Columns
    # are ordered (r, p):  column c = r*P8 + p  <->  output time t' = p*PATCH_H + r.
    cols = jnp.arange(Tp8)
    col_r = cols // P8
    col_p = cols % P8
    t_out = col_p * PATCH_H + col_r
    s = jnp.arange(T)[:, None]
    tap = s - t_out[None, :] + left
    valid = (tap >= 0) & (tap < GAUSS_K) & (col_p[None, :] < P)
    bandT = jnp.where(valid, params['gauss_taps'][jnp.clip(tap, 0, GAUSS_K - 1)],
                      0.0).astype(F32)                                      # (T, Tp8)

    # T5-style relative position bias (per layer) + additive causal mask.
    i = jnp.arange(P8)[:, None]
    j = jnp.arange(P8)[None, :]
    rel = jnp.clip(i - j, -(MAX_REL_DIST - 1), MAX_REL_DIST - 1) + MAX_REL_DIST - 1
    relb = params['rel_tables'][:, rel].astype(F32)                         # (DEPTH, P8, P8)
    causal = jnp.where(j <= i, 0.0, -jnp.inf).astype(F32)
    biasmask = relb + causal[None]

    # Fused QKV weight: columns ordered [q_h0..q_hH | k_h0.. | v_h0..].
    def _fuse(w):  # (DEPTH, H, DIM, dh) -> (DEPTH, DIM, H*dh)
        return jnp.transpose(w, (0, 2, 1, 3)).reshape(DEPTH, DIM, INNER)
    wqkv = jnp.concatenate([_fuse(params['wq']), _fuse(params['wk']),
                            _fuse(params['wv'])], axis=-1)                  # (DEPTH, DIM, 3*INNER)
    wo = params['wo'].reshape(DEPTH, INNER, DIM)                            # head-major rows

    # Pack the tiny gamma/beta/bias vectors (fewer inputs -> fewer DMA descriptors).
    vec_pd = jnp.concatenate([params['pe_ln0_g'], params['pe_ln0_b']], axis=0)        # (2, patch_dim)
    vec_dim = jnp.concatenate([params['pe_b'], params['pe_ln1_g'], params['pe_ln1_b'],
                               params['final_ln_g'], params['final_ln_b']], axis=0)   # (5, dim)
    lvec = jnp.concatenate([params['attn_ln_g'], params['attn_ln_b'], params['bo'],
                            params['ffn_ln_g'], params['ffn_ln_b'], params['b2']],
                           axis=1)                                                      # (DEPTH, 6, dim)

    return dict(bandT=bandT, biasmask=biasmask, vec_pd=vec_pd, pe_w=params['pe_w'],
                vec_dim=vec_dim, wqkv=wqkv, wo=wo, lvec=lvec, b1=params['b1'],
                w1=params['w1'], w2=params['w2'],
                proj_w=params['proj_w'], proj_b=params['proj_b'])


def _pick_batch_tile(B, P8, target_rows=256):
    """Bt so Bt*P8 ~ 256 MXU rows; keep >= 2 grid steps so v7x megacore shards."""
    bt = max(1, min(B, target_rows // max(P8, 1)))
    if B >= 2:
        bt = min(bt, -(-B // 2))
    return bt


# ---------------- wrapper -----------------------------------------------------
def bit_phoneme_forward(prepared, neural_input, x_len=None, *, batch_tile=None):
    """neural_input: (B, T, F) with F == PATCH_W; x_len is only used by the
    training-time masking in the reference module and is unused here."""
    del x_len
    B, T, F = neural_input.shape
    assert F == PATCH_W
    assert prepared['bandT'].shape[0] == T, "prepare_params() was built for a different T"
    P = -(-T // PATCH_H)
    P8 = prepared['biasmask'].shape[-1]
    NC1 = prepared['proj_w'].shape[-1]

    bt = batch_tile if batch_tile is not None else _pick_batch_tile(B, P8)
    Bp = -(-B // bt) * bt

    # Present x as (B*F, T): T lane-dense; batch*feature rows feed the band matmul.
    x = jnp.swapaxes(neural_input.astype(F32), 1, 2)        # (B, F, T)
    if Bp != B:
        x = jnp.pad(x, ((0, Bp - B), (0, 0), (0, 0)))
    x = x.reshape(Bp * PATCH_W, T)

    def const(arr):
        nd = arr.ndim
        return pl.BlockSpec(arr.shape, lambda b, _nd=nd: (0,) * _nd)

    p = prepared
    weights = (p['bandT'], p['vec_pd'], p['pe_w'], p['vec_dim'], p['wqkv'], p['wo'],
               p['biasmask'], p['lvec'], p['b1'], p['w1'], p['w2'],
               p['proj_w'], p['proj_b'])

    out = pl.pallas_call(
        bit_fused_kernel,
        out_shape=jax.ShapeDtypeStruct((Bp, P8, NC1), F32),
        grid=(Bp // bt,),
        in_specs=[pl.BlockSpec((bt * PATCH_W, T), lambda b: (b, 0))]
                 + [const(w) for w in weights],
        out_specs=pl.BlockSpec((bt, P8, NC1), lambda b: (b, 0, 0)),
        compiler_params=pltpu.CompilerParams(dimension_semantics=("parallel",)),
    )(x, *weights)

    return out[:B, :P, :]


# ---------------- deterministic parameter init --------------------------------
def init_params(key):
    ks = iter(jax.random.split(key, 9))
    nrm = lambda k, shape, s=0.02: s * jax.random.normal(k, shape, F32)
    ones = lambda shape: jnp.ones(shape, F32)
    zeros = lambda shape: jnp.zeros(shape, F32)

    # GaussianSmoothing buffer (same Gaussian for every channel, normalized).
    xs = jnp.arange(GAUSS_K, dtype=F32)
    mean = (GAUSS_K - 1) / 2.0
    gw = jnp.exp(-0.5 * ((xs - mean) / GAUSS_SIGMA) ** 2)
    gw = gw / jnp.sum(gw)

    return {
        'gauss_taps': gw,                                        # (GAUSS_K,)
        'pe_ln0_g': ones((1, PATCH_DIM)), 'pe_ln0_b': zeros((1, PATCH_DIM)),
        'pe_w': nrm(next(ks), (PATCH_DIM, DIM)), 'pe_b': zeros((1, DIM)),
        'pe_ln1_g': ones((1, DIM)), 'pe_ln1_b': zeros((1, DIM)),
        'attn_ln_g': ones((DEPTH, 1, DIM)), 'attn_ln_b': zeros((DEPTH, 1, DIM)),
        'wq': nrm(next(ks), (DEPTH, HEADS, DIM, DIM_HEAD)),      # head-major qkv split
        'wk': nrm(next(ks), (DEPTH, HEADS, DIM, DIM_HEAD)),
        'wv': nrm(next(ks), (DEPTH, HEADS, DIM, DIM_HEAD)),
        'wo': nrm(next(ks), (DEPTH, HEADS, DIM_HEAD, DIM)),      # Linear(inner, dim) per head
        'bo': zeros((DEPTH, 1, DIM)),
        'rel_tables': jax.random.normal(next(ks), (DEPTH, 2 * MAX_REL_DIST - 1), F32),
        'ffn_ln_g': ones((DEPTH, 1, DIM)), 'ffn_ln_b': zeros((DEPTH, 1, DIM)),
        'w1': nrm(next(ks), (DEPTH, DIM, MLP_DIM)), 'b1': zeros((DEPTH, 1, MLP_DIM)),
        'w2': nrm(next(ks), (DEPTH, MLP_DIM, DIM)), 'b2': zeros((DEPTH, 1, DIM)),
        'final_ln_g': ones((1, DIM)), 'final_ln_b': zeros((1, DIM)),
        'proj_w': nrm(next(ks), (DIM, N_CLASSES + 1)), 'proj_b': zeros((1, N_CLASSES + 1)),
    }


if __name__ == "__main__":
    key = jax.random.PRNGKey(0)
    kp, kx = jax.random.split(key)
    params = init_params(kp)

    B, T_in = 2, 22                       # T padded to 24 -> 6 patches of height 4
    neural_input = jax.random.normal(kx, (B, T_in, PATCH_W), F32)
    x_len = jnp.array([22, 18], dtype=jnp.int32)

    prepared = prepare_params(params, T_in)      # one-time: band, rel-bias, weight packing
    fwd = jax.jit(functools.partial(bit_phoneme_forward, prepared))
    out = jax.block_until_ready(fwd(neural_input, x_len))
    assert out.shape == (B, 6, N_CLASSES + 1), out.shape
    assert bool(jnp.all(jnp.isfinite(out)))
    print("KERNEL_OK")
</pallas_src>

<mosaic_0001>
module attributes {stable_mosaic.version = 11 : i64} {
  func.func @bit_fused_kernel(%arg0: i32, %arg1: memref<16x22xf32, #tpu.memory_space<vmem>>, %arg2: memref<22x32xf32, #tpu.memory_space<vmem>>, %arg3: memref<2x64xf32, #tpu.memory_space<vmem>>, %arg4: memref<64x32xf32, #tpu.memory_space<vmem>>, %arg5: memref<5x32xf32, #tpu.memory_space<vmem>>, %arg6: memref<2x32x96xf32, #tpu.memory_space<vmem>>, %arg7: memref<2x32x32xf32, #tpu.memory_space<vmem>>, %arg8: memref<2x8x8xf32, #tpu.memory_space<vmem>>, %arg9: memref<2x6x32xf32, #tpu.memory_space<vmem>>, %arg10: memref<2x1x64xf32, #tpu.memory_space<vmem>>, %arg11: memref<2x32x64xf32, #tpu.memory_space<vmem>>, %arg12: memref<2x64x32xf32, #tpu.memory_space<vmem>>, %arg13: memref<32x9xf32, #tpu.memory_space<vmem>>, %arg14: memref<1x9xf32, #tpu.memory_space<vmem>>, %arg15: memref<1x8x9xf32, #tpu.memory_space<vmem>>) attributes {dimension_semantics = [#tpu.dimension_semantics<parallel>], iteration_bounds = array<i64: 2>, scalar_prefetch = 0 : i64, scratch_operands = 0 : i64, tpu.core_type = #tpu.core_type<tc>, window_params = [{transform_indices = @transform_0, window_bounds = array<i64: 16, 22>}, {pipeline_mode = #tpu.pipeline_mode<synchronous>, transform_indices = @transform_1, window_bounds = array<i64: 22, 32>}, {pipeline_mode = #tpu.pipeline_mode<synchronous>, transform_indices = @transform_2, window_bounds = array<i64: 2, 64>}, {pipeline_mode = #tpu.pipeline_mode<synchronous>, transform_indices = @transform_3, window_bounds = array<i64: 64, 32>}, {pipeline_mode = #tpu.pipeline_mode<synchronous>, transform_indices = @transform_4, window_bounds = array<i64: 5, 32>}, {pipeline_mode = #tpu.pipeline_mode<synchronous>, transform_indices = @transform_5, window_bounds = array<i64: 2, 32, 96>}, {pipeline_mode = #tpu.pipeline_mode<synchronous>, transform_indices = @transform_6, window_bounds = array<i64: 2, 32, 32>}, {pipeline_mode = #tpu.pipeline_mode<synchronous>, transform_indices = @transform_7, window_bounds = array<i64: 2, 8, 8>}, {pipeline_mode = #tpu.pipeline_mode<synchronous>, transform_indices = @transform_8, window_bounds = array<i64: 2, 6, 32>}, {pipeline_mode = #tpu.pipeline_mode<synchronous>, transform_indices = @transform_9, window_bounds = array<i64: 2, 1, 64>}, {pipeline_mode = #tpu.pipeline_mode<synchronous>, transform_indices = @transform_10, window_bounds = array<i64: 2, 32, 64>}, {pipeline_mode = #tpu.pipeline_mode<synchronous>, transform_indices = @transform_11, window_bounds = array<i64: 2, 64, 32>}, {pipeline_mode = #tpu.pipeline_mode<synchronous>, transform_indices = @transform_12, window_bounds = array<i64: 32, 9>}, {pipeline_mode = #tpu.pipeline_mode<synchronous>, transform_indices = @transform_13, window_bounds = array<i64: 1, 9>}, {transform_indices = @transform_14, window_bounds = array<i64: 1, 8, 9>}]} {
    %c0 = arith.constant 0 : index
    %c0_0 = arith.constant 0 : index
    %0 = vector.load %arg1[%c0, %c0_0] : memref<16x22xf32, #tpu.memory_space<vmem>>, vector<16x22xf32>
    %c0_1 = arith.constant 0 : index
    %c0_2 = arith.constant 0 : index
    %1 = vector.load %arg2[%c0_1, %c0_2] : memref<22x32xf32, #tpu.memory_space<vmem>>, vector<22x32xf32>
    %cst = arith.constant dense<0.000000e+00> : vector<16x32xf32>
    %2 = tpu.matmul %0, %1, %cst {dimension_numbers = #tpu.dot_dimension_numbers<[1], [0], [0], [1], [0, 0, 1, 1], [], []>} : vector<16x22xf32>, vector<22x32xf32>, vector<16x32xf32> -> vector<16x32xf32>
    %3 = vector.shape_cast %2 : vector<16x32xf32> to vector<1x16x32xf32>
    %4 = tpu.transpose %3, [0, 2, 1] : vector<1x16x32xf32> -> vector<1x32x16xf32>
    %5 = vector.extract_strided_slice %4 {offsets = [0, 0, 0], sizes = [1, 8, 16], strides = [1, 1, 1]} : vector<1x32x16xf32> to vector<1x8x16xf32>
    %6 = vector.extract_strided_slice %4 {offsets = [0, 8, 0], sizes = [1, 8, 16], strides = [1, 1, 1]} : vector<1x32x16xf32> to vector<1x8x16xf32>
    %7 = vector.extract_strided_slice %4 {offsets = [0, 16, 0], sizes = [1, 8, 16], strides = [1, 1, 1]} : vector<1x32x16xf32> to vector<1x8x16xf32>
    %8 = vector.extract_strided_slice %4 {offsets = [0, 24, 0], sizes = [1, 8, 16], strides = [1, 1, 1]} : vector<1x32x16xf32> to vector<1x8x16xf32>
    %9 = tpu.concatenate %5, %6, %7, %8 in 2 : vector<1x8x16xf32>, vector<1x8x16xf32>, vector<1x8x16xf32>, vector<1x8x16xf32> -> vector<1x8x64xf32>
    %10 = vector.shape_cast %9 : vector<1x8x64xf32> to vector<8x64xf32>
    %c0_3 = arith.constant 0 : index
    %c0_4 = arith.constant 0 : index
    %11 = vector.load %arg3[%c0_3, %c0_4] : memref<2x64xf32, #tpu.memory_space<vmem>>, vector<2x64xf32>
    %c0_5 = arith.constant 0 : index
    %c0_6 = arith.constant 0 : index
    %12 = vector.load %arg5[%c0_5, %c0_6] : memref<5x32xf32, #tpu.memory_space<vmem>>, vector<5x32xf32>
    %13 = vector.extract_strided_slice %11 {offsets = [0, 0], sizes = [1, 64], strides = [1, 1]} : vector<2x64xf32> to vector<1x64xf32>
    %14 = vector.extract_strided_slice %11 {offsets = [1, 0], sizes = [1, 64], strides = [1, 1]} : vector<2x64xf32> to vector<1x64xf32>
    %cst_7 = arith.constant dense<0.000000e+00> : vector<8xf32>
    %15 = vector.multi_reduction <add>, %10, %cst_7 [1] : vector<8x64xf32> to vector<8xf32>
    %16 = vector.shape_cast %15 : vector<8xf32> to vector<8x1xf32>
    %cst_8 = arith.constant 6.400000e+01 : f32
    %17 = vector.broadcast %cst_8 : f32 to vector<8x1xf32>
    %18 = arith.divf %16, %17 : vector<8x1xf32>
    %19 = vector.broadcast %18 : vector<8x1xf32> to vector<8x64xf32>
    %20 = arith.subf %10, %19 : vector<8x64xf32>
    %21 = arith.mulf %20, %20 : vector<8x64xf32>
    %cst_9 = arith.constant dense<0.000000e+00> : vector<8xf32>
    %22 = vector.multi_reduction <add>, %21, %cst_9 [1] : vector<8x64xf32> to vector<8xf32>
    %23 = vector.shape_cast %22 : vector<8xf32> to vector<8x1xf32>
    %cst_10 = arith.constant 6.400000e+01 : f32
    %24 = vector.broadcast %cst_10 : f32 to vector<8x1xf32>
    %25 = arith.divf %23, %24 : vector<8x1xf32>
    %26 = vector.broadcast %18 : vector<8x1xf32> to vector<8x64xf32>
    %27 = arith.subf %10, %26 : vector<8x64xf32>
    %cst_11 = arith.constant 9.99999974E-6 : f32
    %28 = vector.broadcast %cst_11 : f32 to vector<8x1xf32>
    %29 = arith.addf %25, %28 : vector<8x1xf32>
    %30 = math.rsqrt %29 : vector<8x1xf32>
    %31 = vector.broadcast %30 : vector<8x1xf32> to vector<8x64xf32>
    %32 = arith.mulf %27, %31 : vector<8x64xf32>
    %33 = vector.broadcast %13 : vector<1x64xf32> to vector<8x64xf32>
    %34 = arith.mulf %32, %33 : vector<8x64xf32>
    %35 = vector.broadcast %14 : vector<1x64xf32> to vector<8x64xf32>
    %36 = arith.addf %34, %35 : vector<8x64xf32>
    %c0_12 = arith.constant 0 : index
    %c0_13 = arith.constant 0 : index
    %37 = vector.load %arg4[%c0_12, %c0_13] : memref<64x32xf32, #tpu.memory_space<vmem>>, vector<64x32xf32>
    %cst_14 = arith.constant dense<0.000000e+00> : vector<8x32xf32>
    %38 = tpu.matmul %36, %37, %cst_14 {dimension_numbers = #tpu.dot_dimension_numbers<[1], [0], [0], [1], [0, 0, 1, 1], [], []>} : vector<8x64xf32>, vector<64x32xf32>, vector<8x32xf32> -> vector<8x32xf32>
    %39 = vector.extract_strided_slice %12 {offsets = [0, 0], sizes = [1, 32], strides = [1, 1]} : vector<5x32xf32> to vector<1x32xf32>
    %40 = vector.broadcast %39 : vector<1x32xf32> to vector<8x32xf32>
    %41 = arith.addf %38, %40 : vector<8x32xf32>
    %42 = vector.extract_strided_slice %12 {offsets = [1, 0], sizes = [1, 32], strides = [1, 1]} : vector<5x32xf32> to vector<1x32xf32>
    %43 = vector.extract_strided_slice %12 {offsets = [2, 0], sizes = [1, 32], strides = [1, 1]} : vector<5x32xf32> to vector<1x32xf32>
    %cst_15 = arith.constant dense<0.000000e+00> : vector<8xf32>
    %44 = vector.multi_reduction <add>, %41, %cst_15 [1] : vector<8x32xf32> to vector<8xf32>
    %45 = vector.shape_cast %44 : vector<8xf32> to vector<8x1xf32>
    %cst_16 = arith.constant 3.200000e+01 : f32
    %46 = vector.broadcast %cst_16 : f32 to vector<8x1xf32>
    %47 = arith.divf %45, %46 : vector<8x1xf32>
    %48 = vector.broadcast %47 : vector<8x1xf32> to vector<8x32xf32>
    %49 = arith.subf %41, %48 : vector<8x32xf32>
    %50 = arith.mulf %49, %49 : vector<8x32xf32>
    %cst_17 = arith.constant dense<0.000000e+00> : vector<8xf32>
    %51 = vector.multi_reduction <add>, %50, %cst_17 [1] : vector<8x32xf32> to vector<8xf32>
    %52 = vector.shape_cast %51 : vector<8xf32> to vector<8x1xf32>
    %cst_18 = arith.constant 3.200000e+01 : f32
    %53 = vector.broadcast %cst_18 : f32 to vector<8x1xf32>
    %54 = arith.divf %52, %53 : vector<8x1xf32>
    %55 = vector.broadcast %47 : vector<8x1xf32> to vector<8x32xf32>
    %56 = arith.subf %41, %55 : vector<8x32xf32>
    %cst_19 = arith.constant 9.99999974E-6 : f32
    %57 = vector.broadcast %cst_19 : f32 to vector<8x1xf32>
    %58 = arith.addf %54, %57 : vector<8x1xf32>
    %59 = math.rsqrt %58 : vector<8x1xf32>
    %60 = vector.broadcast %59 : vector<8x1xf32> to vector<8x32xf32>
    %61 = arith.mulf %56, %60 : vector<8x32xf32>
    %62 = vector.broadcast %42 : vector<1x32xf32> to vector<8x32xf32>
    %63 = arith.mulf %61, %62 : vector<8x32xf32>
    %64 = vector.broadcast %43 : vector<1x32xf32> to vector<8x32xf32>
    %65 = arith.addf %63, %64 : vector<8x32xf32>
    %c0_20 = arith.constant 0 : index
    %c0_21 = arith.constant 0 : index
    %c0_22 = arith.constant 0 : index
    %66 = vector.load %arg9[%c0_20, %c0_21, %c0_22] : memref<2x6x32xf32, #tpu.memory_space<vmem>>, vector<1x6x32xf32>
    %67 = vector.shape_cast %66 : vector<1x6x32xf32> to vector<6x32xf32>
    %c0_23 = arith.constant 0 : index
    %c0_24 = arith.constant 0 : index
    %c0_25 = arith.constant 0 : index
    %68 = vector.load %arg8[%c0_23, %c0_24, %c0_25] : memref<2x8x8xf32, #tpu.memory_space<vmem>>, vector<1x8x8xf32>
    %69 = vector.shape_cast %68 : vector<1x8x8xf32> to vector<8x8xf32>
    %70 = vector.shape_cast %69 : vector<8x8xf32> to vector<1x8x8xf32>
    %71 = vector.extract_strided_slice %67 {offsets = [0, 0], sizes = [1, 32], strides = [1, 1]} : vector<6x32xf32> to vector<1x32xf32>
    %72 = vector.extract_strided_slice %67 {offsets = [1, 0], sizes = [1, 32], strides = [1, 1]} : vector<6x32xf32> to vector<1x32xf32>
    %cst_26 = arith.constant dense<0.000000e+00> : vector<8xf32>
    %73 = vector.multi_reduction <add>, %65, %cst_26 [1] : vector<8x32xf32> to vector<8xf32>
    %74 = vector.shape_cast %73 : vector<8xf32> to vector<8x1xf32>
    %cst_27 = arith.constant 3.200000e+01 : f32
    %75 = vector.broadcast %cst_27 : f32 to vector<8x1xf32>
    %76 = arith.divf %74, %75 : vector<8x1xf32>
    %77 = vector.broadcast %76 : vector<8x1xf32> to vector<8x32xf32>
    %78 = arith.subf %65, %77 : vector<8x32xf32>
    %79 = arith.mulf %78, %78 : vector<8x32xf32>
    %cst_28 = arith.constant dense<0.000000e+00> : vector<8xf32>
    %80 = vector.multi_reduction <add>, %79, %cst_28 [1] : vector<8x32xf32> to vector<8xf32>
    %81 = vector.shape_cast %80 : vector<8xf32> to vector<8x1xf32>
    %cst_29 = arith.constant 3.200000e+01 : f32
    %82 = vector.broadcast %cst_29 : f32 to vector<8x1xf32>
    %83 = arith.divf %81, %82 : vector<8x1xf32>
    %84 = vector.broadcast %76 : vector<8x1xf32> to vector<8x32xf32>
    %85 = arith.subf %65, %84 : vector<8x32xf32>
    %cst_30 = arith.constant 9.99999974E-6 : f32
    %86 = vector.broadcast %cst_30 : f32 to vector<8x1xf32>
    %87 = arith.addf %83, %86 : vector<8x1xf32>
    %88 = math.rsqrt %87 : vector<8x1xf32>
    %89 = vector.broadcast %88 : vector<8x1xf32> to vector<8x32xf32>
    %90 = arith.mulf %85, %89 : vector<8x32xf32>
    %91 = vector.broadcast %71 : vector<1x32xf32> to vector<8x32xf32>
    %92 = arith.mulf %90, %91 : vector<8x32xf32>
    %93 = vector.broadcast %72 : vector<1x32xf32> to vector<8x32xf32>
    %94 = arith.addf %92, %93 : vector<8x32xf32>
    %c0_31 = arith.constant 0 : index
    %c0_32 = arith.constant 0 : index
    %c0_33 = arith.constant 0 : index
    %95 = vector.load %arg6[%c0_31, %c0_32, %c0_33] : memref<2x32x96xf32, #tpu.memory_space<vmem>>, vector<1x32x96xf32>
    %96 = vector.shape_cast %95 : vector<1x32x96xf32> to vector<32x96xf32>
    %cst_34 = arith.constant dense<0.000000e+00> : vector<8x96xf32>
    %97 = tpu.matmul %94, %96, %cst_34 {dimension_numbers = #tpu.dot_dimension_numbers<[1], [0], [0], [1], [0, 0, 1, 1], [], []>} : vector<8x32xf32>, vector<32x96xf32>, vector<8x96xf32> -> vector<8x96xf32>
    %98 = vector.extract_strided_slice %97 {offsets = [0, 0], sizes = [8, 16], strides = [1, 1]} : vector<8x96xf32> to vector<8x16xf32>
    %99 = vector.shape_cast %98 : vector<8x16xf32> to vector<1x8x16xf32>
    %100 = vector.extract_strided_slice %97 {offsets = [0, 32], sizes = [8, 16], strides = [1, 1]} : vector<8x96xf32> to vector<8x16xf32>
    %101 = vector.shape_cast %100 : vector<8x16xf32> to vector<1x8x16xf32>
    %102 = vector.extract_strided_slice %97 {offsets = [0, 64], sizes = [8, 16], strides = [1, 1]} : vector<8x96xf32> to vector<8x16xf32>
    %103 = vector.shape_cast %102 : vector<8x16xf32> to vector<1x8x16xf32>
    "tpu.trace_start"() <{level = 10 : i32, message = "bqd,bkd->bqk"}> : () -> ()
    %cst_35 = arith.constant dense<0.000000e+00> : vector<1x8x8xf32>
    %104 = tpu.matmul %99, %101, %cst_35 {dimension_numbers = #tpu.dot_dimension_numbers<[2], [2], [1], [1], [0, 0, 0, 1, 1, 1], [0], [0]>} : vector<1x8x16xf32>, vector<1x8x16xf32>, vector<1x8x8xf32> -> vector<1x8x8xf32>
    "tpu.trace_stop"() : () -> ()
    %cst_36 = arith.constant 2.500000e-01 : f32
    %105 = vector.broadcast %cst_36 : f32 to vector<1x8x8xf32>
    %106 = arith.mulf %104, %105 : vector<1x8x8xf32>
    %107 = arith.addf %106, %70 : vector<1x8x8xf32>
    %cst_37 = arith.constant dense<0xFF800000> : vector<1x8xf32>
    %108 = vector.multi_reduction <maximumf>, %107, %cst_37 [2] : vector<1x8x8xf32> to vector<1x8xf32>
    %109 = vector.shape_cast %108 : vector<1x8xf32> to vector<1x8x1xf32>
    %110 = vector.broadcast %109 : vector<1x8x1xf32> to vector<1x8x8xf32>
    %111 = arith.subf %107, %110 : vector<1x8x8xf32>
    %112 = math.exp %111 : vector<1x8x8xf32>
    %cst_38 = arith.constant dense<0.000000e+00> : vector<1x8xf32>
    %113 = vector.multi_reduction <add>, %112, %cst_38 [2] : vector<1x8x8xf32> to vector<1x8xf32>
    %114 = vector.shape_cast %113 : vector<1x8xf32> to vector<1x8x1xf32>
    %115 = tpu.reciprocal %114 {approx = true} : vector<1x8x1xf32> -> vector<1x8x1xf32>
    %116 = vector.broadcast %115 : vector<1x8x1xf32> to vector<1x8x8xf32>
    %117 = arith.mulf %112, %116 : vector<1x8x8xf32>
    "tpu.trace_start"() <{level = 10 : i32, message = "bqk,bkd->bqd"}> : () -> ()
    %cst_39 = arith.constant dense<0.000000e+00> : vector<1x8x16xf32>
    %118 = tpu.matmul %117, %103, %cst_39 {dimension_numbers = #tpu.dot_dimension_numbers<[2], [1], [1], [2], [0, 0, 0, 1, 1, 2], [0], [0]>} : vector<1x8x8xf32>, vector<1x8x16xf32>, vector<1x8x16xf32> -> vector<1x8x16xf32>
    "tpu.trace_stop"() : () -> ()
    %119 = vector.shape_cast %118 : vector<1x8x16xf32> to vector<8x16xf32>
    %120 = vector.extract_strided_slice %97 {offsets = [0, 16], sizes = [8, 16], strides = [1, 1]} : vector<8x96xf32> to vector<8x16xf32>
    %121 = vector.shape_cast %120 : vector<8x16xf32> to vector<1x8x16xf32>
    %122 = vector.extract_strided_slice %97 {offsets = [0, 48], sizes = [8, 16], strides = [1, 1]} : vector<8x96xf32> to vector<8x16xf32>
    %123 = vector.shape_cast %122 : vector<8x16xf32> to vector<1x8x16xf32>
    %124 = vector.extract_strided_slice %97 {offsets = [0, 80], sizes = [8, 16], strides = [1, 1]} : vector<8x96xf32> to vector<8x16xf32>
    %125 = vector.shape_cast %124 : vector<8x16xf32> to vector<1x8x16xf32>
    "tpu.trace_start"() <{level = 10 : i32, message = "bqd,bkd->bqk"}> : () -> ()
    %cst_40 = arith.constant dense<0.000000e+00> : vector<1x8x8xf32>
    %126 = tpu.matmul %121, %123, %cst_40 {dimension_numbers = #tpu.dot_dimension_numbers<[2], [2], [1], [1], [0, 0, 0, 1, 1, 1], [0], [0]>} : vector<1x8x16xf32>, vector<1x8x16xf32>, vector<1x8x8xf32> -> vector<1x8x8xf32>
    "tpu.trace_stop"() : () -> ()
    %cst_41 = arith.constant 2.500000e-01 : f32
    %127 = vector.broadcast %cst_41 : f32 to vector<1x8x8xf32>
    %128 = arith.mulf %126, %127 : vector<1x8x8xf32>
    %129 = arith.addf %128, %70 : vector<1x8x8xf32>
    %cst_42 = arith.constant dense<0xFF800000> : vector<1x8xf32>
    %130 = vector.multi_reduction <maximumf>, %129, %cst_42 [2] : vector<1x8x8xf32> to vector<1x8xf32>
    %131 = vector.shape_cast %130 : vector<1x8xf32> to vector<1x8x1xf32>
    %132 = vector.broadcast %131 : vector<1x8x1xf32> to vector<1x8x8xf32>
    %133 = arith.subf %129, %132 : vector<1x8x8xf32>
    %134 = math.exp %133 : vector<1x8x8xf32>
    %cst_43 = arith.constant dense<0.000000e+00> : vector<1x8xf32>
    %135 = vector.multi_reduction <add>, %134, %cst_43 [2] : vector<1x8x8xf32> to vector<1x8xf32>
    %136 = vector.shape_cast %135 : vector<1x8xf32> to vector<1x8x1xf32>
    %137 = tpu.reciprocal %136 {approx = true} : vector<1x8x1xf32> -> vector<1x8x1xf32>
    %138 = vector.broadcast %137 : vector<1x8x1xf32> to vector<1x8x8xf32>
    %139 = arith.mulf %134, %138 : vector<1x8x8xf32>
    "tpu.trace_start"() <{level = 10 : i32, message = "bqk,bkd->bqd"}> : () -> ()
    %cst_44 = arith.constant dense<0.000000e+00> : vector<1x8x16xf32>
    %140 = tpu.matmul %139, %125, %cst_44 {dimension_numbers = #tpu.dot_dimension_numbers<[2], [1], [1], [2], [0, 0, 0, 1, 1, 2], [0], [0]>} : vector<1x8x8xf32>, vector<1x8x16xf32>, vector<1x8x16xf32> -> vector<1x8x16xf32>
    "tpu.trace_stop"() : () -> ()
    %141 = vector.shape_cast %140 : vector<1x8x16xf32> to vector<8x16xf32>
    %142 = tpu.concatenate %119, %141 in 1 : vector<8x16xf32>, vector<8x16xf32> -> vector<8x32xf32>
    %c0_45 = arith.constant 0 : index
    %c0_46 = arith.constant 0 : index
    %c0_47 = arith.constant 0 : index
    %143 = vector.load %arg7[%c0_45, %c0_46, %c0_47] : memref<2x32x32xf32, #tpu.memory_space<vmem>>, vector<1x32x32xf32>
    %144 = vector.shape_cast %143 : vector<1x32x32xf32> to vector<32x32xf32>
    %cst_48 = arith.constant dense<0.000000e+00> : vector<8x32xf32>
    %145 = tpu.matmul %142, %144, %cst_48 {dimension_numbers = #tpu.dot_dimension_numbers<[1], [0], [0], [1], [0, 0, 1, 1], [], []>} : vector<8x32xf32>, vector<32x32xf32>, vector<8x32xf32> -> vector<8x32xf32>
    %146 = arith.addf %65, %145 : vector<8x32xf32>
    %147 = vector.extract_strided_slice %67 {offsets = [2, 0], sizes = [1, 32], strides = [1, 1]} : vector<6x32xf32> to vector<1x32xf32>
    %148 = vector.broadcast %147 : vector<1x32xf32> to vector<8x32xf32>
    %149 = arith.addf %146, %148 : vector<8x32xf32>
    %150 = vector.extract_strided_slice %67 {offsets = [3, 0], sizes = [1, 32], strides = [1, 1]} : vector<6x32xf32> to vector<1x32xf32>
    %151 = vector.extract_strided_slice %67 {offsets = [4, 0], sizes = [1, 32], strides = [1, 1]} : vector<6x32xf32> to vector<1x32xf32>
    %cst_49 = arith.constant dense<0.000000e+00> : vector<8xf32>
    %152 = vector.multi_reduction <add>, %149, %cst_49 [1] : vector<8x32xf32> to vector<8xf32>
    %153 = vector.shape_cast %152 : vector<8xf32> to vector<8x1xf32>
    %cst_50 = arith.constant 3.200000e+01 : f32
    %154 = vector.broadcast %cst_50 : f32 to vector<8x1xf32>
    %155 = arith.divf %153, %154 : vector<8x1xf32>
    %156 = vector.broadcast %155 : vector<8x1xf32> to vector<8x32xf32>
    %157 = arith.subf %149, %156 : vector<8x32xf32>
    %158 = arith.mulf %157, %157 : vector<8x32xf32>
    %cst_51 = arith.constant dense<0.000000e+00> : vector<8xf32>
    %159 = vector.multi_reduction <add>, %158, %cst_51 [1] : vector<8x32xf32> to vector<8xf32>
    %160 = vector.shape_cast %159 : vector<8xf32> to vector<8x1xf32>
    %cst_52 = arith.constant 3.200000e+01 : f32
    %161 = vector.broadcast %cst_52 : f32 to vector<8x1xf32>
    %162 = arith.divf %160, %161 : vector<8x1xf32>
    %163 = vector.broadcast %155 : vector<8x1xf32> to vector<8x32xf32>
    %164 = arith.subf %149, %163 : vector<8x32xf32>
    %cst_53 = arith.constant 9.99999974E-6 : f32
    %165 = vector.broadcast %cst_53 : f32 to vector<8x1xf32>
    %166 = arith.addf %162, %165 : vector<8x1xf32>
    %167 = math.rsqrt %166 : vector<8x1xf32>
    %168 = vector.broadcast %167 : vector<8x1xf32> to vector<8x32xf32>
    %169 = arith.mulf %164, %168 : vector<8x32xf32>
    %170 = vector.broadcast %150 : vector<1x32xf32> to vector<8x32xf32>
    %171 = arith.mulf %169, %170 : vector<8x32xf32>
    %172 = vector.broadcast %151 : vector<1x32xf32> to vector<8x32xf32>
    %173 = arith.addf %171, %172 : vector<8x32xf32>
    %c0_54 = arith.constant 0 : index
    %c0_55 = arith.constant 0 : index
    %c0_56 = arith.constant 0 : index
    %174 = vector.load %arg11[%c0_54, %c0_55, %c0_56] : memref<2x32x64xf32, #tpu.memory_space<vmem>>, vector<1x32x64xf32>
    %175 = vector.shape_cast %174 : vector<1x32x64xf32> to vector<32x64xf32>
    %cst_57 = arith.constant dense<0.000000e+00> : vector<8x64xf32>
    %176 = tpu.matmul %173, %175, %cst_57 {dimension_numbers = #tpu.dot_dimension_numbers<[1], [0], [0], [1], [0, 0, 1, 1], [], []>} : vector<8x32xf32>, vector<32x64xf32>, vector<8x64xf32> -> vector<8x64xf32>
    %c0_58 = arith.constant 0 : index
    %c0_59 = arith.constant 0 : index
    %c0_60 = arith.constant 0 : index
    %177 = vector.load %arg10[%c0_58, %c0_59, %c0_60] : memref<2x1x64xf32, #tpu.memory_space<vmem>>, vector<1x1x64xf32>
    %178 = vector.shape_cast %177 : vector<1x1x64xf32> to vector<1x64xf32>
    %179 = vector.broadcast %178 : vector<1x64xf32> to vector<8x64xf32>
    %180 = arith.addf %176, %179 : vector<8x64xf32>
    %cst_61 = arith.constant 5.000000e-01 : f32
    %181 = vector.broadcast %cst_61 : f32 to vector<8x64xf32>
    %182 = arith.mulf %181, %180 : vector<8x64xf32>
    %cst_62 = arith.constant 0.707106769 : f32
    %183 = vector.broadcast %cst_62 : f32 to vector<8x64xf32>
    %184 = arith.mulf %180, %183 : vector<8x64xf32>
    %185 = math.erf %184 : vector<8x64xf32>
    %cst_63 = arith.constant 1.000000e+00 : f32
    %186 = vector.broadcast %cst_63 : f32 to vector<8x64xf32>
    %187 = arith.addf %186, %185 : vector<8x64xf32>
    %188 = arith.mulf %182, %187 : vector<8x64xf32>
    %c0_64 = arith.constant 0 : index
    %c0_65 = arith.constant 0 : index
    %c0_66 = arith.constant 0 : index
    %189 = vector.load %arg12[%c0_64, %c0_65, %c0_66] : memref<2x64x32xf32, #tpu.memory_space<vmem>>, vector<1x64x32xf32>
    %190 = vector.shape_cast %189 : vector<1x64x32xf32> to vector<64x32xf32>
    %cst_67 = arith.constant dense<0.000000e+00> : vector<8x32xf32>
    %191 = tpu.matmul %188, %190, %cst_67 {dimension_numbers = #tpu.dot_dimension_numbers<[1], [0], [0], [1], [0, 0, 1, 1], [], []>} : vector<8x64xf32>, vector<64x32xf32>, vector<8x32xf32> -> vector<8x32xf32>
    %192 = arith.addf %149, %191 : vector<8x32xf32>
    %193 = vector.extract_strided_slice %67 {offsets = [5, 0], sizes = [1, 32], strides = [1, 1]} : vector<6x32xf32> to vector<1x32xf32>
    %194 = vector.broadcast %193 : vector<1x32xf32> to vector<8x32xf32>
    %195 = arith.addf %192, %194 : vector<8x32xf32>
    %c1 = arith.constant 1 : index
    %c0_68 = arith.constant 0 : index
    %c0_69 = arith.constant 0 : index
    %196 = vector.load %arg9[%c1, %c0_68, %c0_69] : memref<2x6x32xf32, #tpu.memory_space<vmem>>, vector<1x6x32xf32>
    %197 = vector.shape_cast %196 : vector<1x6x32xf32> to vector<6x32xf32>
    %c1_70 = arith.constant 1 : index
    %c0_71 = arith.constant 0 : index
    %c0_72 = arith.constant 0 : index
    %198 = vector.load %arg8[%c1_70, %c0_71, %c0_72] : memref<2x8x8xf32, #tpu.memory_space<vmem>>, vector<1x8x8xf32>
    %199 = vector.shape_cast %198 : vector<1x8x8xf32> to vector<8x8xf32>
    %200 = vector.shape_cast %199 : vector<8x8xf32> to vector<1x8x8xf32>
    %201 = vector.extract_strided_slice %197 {offsets = [0, 0], sizes = [1, 32], strides = [1, 1]} : vector<6x32xf32> to vector<1x32xf32>
    %202 = vector.extract_strided_slice %197 {offsets = [1, 0], sizes = [1, 32], strides = [1, 1]} : vector<6x32xf32> to vector<1x32xf32>
    %cst_73 = arith.constant dense<0.000000e+00> : vector<8xf32>
    %203 = vector.multi_reduction <add>, %195, %cst_73 [1] : vector<8x32xf32> to vector<8xf32>
    %204 = vector.shape_cast %203 : vector<8xf32> to vector<8x1xf32>
    %cst_74 = arith.constant 3.200000e+01 : f32
    %205 = vector.broadcast %cst_74 : f32 to vector<8x1xf32>
    %206 = arith.divf %204, %205 : vector<8x1xf32>
    %207 = vector.broadcast %206 : vector<8x1xf32> to vector<8x32xf32>
    %208 = arith.subf %195, %207 : vector<8x32xf32>
    %209 = arith.mulf %208, %208 : vector<8x32xf32>
    %cst_75 = arith.constant dense<0.000000e+00> : vector<8xf32>
    %210 = vector.multi_reduction <add>, %209, %cst_75 [1] : vector<8x32xf32> to vector<8xf32>
    %211 = vector.shape_cast %210 : vector<8xf32> to vector<8x1xf32>
    %cst_76 = arith.constant 3.200000e+01 : f32
    %212 = vector.broadcast %cst_76 : f32 to vector<8x1xf32>
    %213 = arith.divf %211, %212 : vector<8x1xf32>
    %214 = vector.broadcast %206 : vector<8x1xf32> to vector<8x32xf32>
    %215 = arith.subf %195, %214 : vector<8x32xf32>
    %cst_77 = arith.constant 9.99999974E-6 : f32
    %216 = vector.broadcast %cst_77 : f32 to vector<8x1xf32>
    %217 = arith.addf %213, %216 : vector<8x1xf32>
    %218 = math.rsqrt %217 : vector<8x1xf32>
    %219 = vector.broadcast %218 : vector<8x1xf32> to vector<8x32xf32>
    %220 = arith.mulf %215, %219 : vector<8x32xf32>
    %221 = vector.broadcast %201 : vector<1x32xf32> to vector<8x32xf32>
    %222 = arith.mulf %220, %221 : vector<8x32xf32>
    %223 = vector.broadcast %202 : vector<1x32xf32> to vector<8x32xf32>
    %224 = arith.addf %222, %223 : vector<8x32xf32>
    %c1_78 = arith.constant 1 : index
    %c0_79 = arith.constant 0 : index
    %c0_80 = arith.constant 0 : index
    %225 = vector.load %arg6[%c1_78, %c0_79, %c0_80] : memref<2x32x96xf32, #tpu.memory_space<vmem>>, vector<1x32x96xf32>
    %226 = vector.shape_cast %225 : vector<1x32x96xf32> to vector<32x96xf32>
    %cst_81 = arith.constant dense<0.000000e+00> : vector<8x96xf32>
    %227 = tpu.matmul %224, %226, %cst_81 {dimension_numbers = #tpu.dot_dimension_numbers<[1], [0], [0], [1], [0, 0, 1, 1], [], []>} : vector<8x32xf32>, vector<32x96xf32>, vector<8x96xf32> -> vector<8x96xf32>
    %228 = vector.extract_strided_slice %227 {offsets = [0, 0], sizes = [8, 16], strides = [1, 1]} : vector<8x96xf32> to vector<8x16xf32>
    %229 = vector.shape_cast %228 : vector<8x16xf32> to vector<1x8x16xf32>
    %230 = vector.extract_strided_slice %227 {offsets = [0, 32], sizes = [8, 16], strides = [1, 1]} : vector<8x96xf32> to vector<8x16xf32>
    %231 = vector.shape_cast %230 : vector<8x16xf32> to vector<1x8x16xf32>
    %232 = vector.extract_strided_slice %227 {offsets = [0, 64], sizes = [8, 16], strides = [1, 1]} : vector<8x96xf32> to vector<8x16xf32>
    %233 = vector.shape_cast %232 : vector<8x16xf32> to vector<1x8x16xf32>
    "tpu.trace_start"() <{level = 10 : i32, message = "bqd,bkd->bqk"}> : () -> ()
    %cst_82 = arith.constant dense<0.000000e+00> : vector<1x8x8xf32>
    %234 = tpu.matmul %229, %231, %cst_82 {dimension_numbers = #tpu.dot_dimension_numbers<[2], [2], [1], [1], [0, 0, 0, 1, 1, 1], [0], [0]>} : vector<1x8x16xf32>, vector<1x8x16xf32>, vector<1x8x8xf32> -> vector<1x8x8xf32>
    "tpu.trace_stop"() : () -> ()
    %cst_83 = arith.constant 2.500000e-01 : f32
    %235 = vector.broadcast %cst_83 : f32 to vector<1x8x8xf32>
    %236 = arith.mulf %234, %235 : vector<1x8x8xf32>
    %237 = arith.addf %236, %200 : vector<1x8x8xf32>
    %cst_84 = arith.constant dense<0xFF800000> : vector<1x8xf32>
    %238 = vector.multi_reduction <maximumf>, %237, %cst_84 [2] : vector<1x8x8xf32> to vector<1x8xf32>
    %239 = vector.shape_cast %238 : vector<1x8xf32> to vector<1x8x1xf32>
    %240 = vector.broadcast %239 : vector<1x8x1xf32> to vector<1x8x8xf32>
    %241 = arith.subf %237, %240 : vector<1x8x8xf32>
    %242 = math.exp %241 : vector<1x8x8xf32>
    %cst_85 = arith.constant dense<0.000000e+00> : vector<1x8xf32>
    %243 = vector.multi_reduction <add>, %242, %cst_85 [2] : vector<1x8x8xf32> to vector<1x8xf32>
    %244 = vector.shape_cast %243 : vector<1x8xf32> to vector<1x8x1xf32>
    %245 = tpu.reciprocal %244 {approx = true} : vector<1x8x1xf32> -> vector<1x8x1xf32>
    %246 = vector.broadcast %245 : vector<1x8x1xf32> to vector<1x8x8xf32>
    %247 = arith.mulf %242, %246 : vector<1x8x8xf32>
    "tpu.trace_start"() <{level = 10 : i32, message = "bqk,bkd->bqd"}> : () -> ()
    %cst_86 = arith.constant dense<0.000000e+00> : vector<1x8x16xf32>
    %248 = tpu.matmul %247, %233, %cst_86 {dimension_numbers = #tpu.dot_dimension_numbers<[2], [1], [1], [2], [0, 0, 0, 1, 1, 2], [0], [0]>} : vector<1x8x8xf32>, vector<1x8x16xf32>, vector<1x8x16xf32> -> vector<1x8x16xf32>
    "tpu.trace_stop"() : () -> ()
    %249 = vector.shape_cast %248 : vector<1x8x16xf32> to vector<8x16xf32>
    %250 = vector.extract_strided_slice %227 {offsets = [0, 16], sizes = [8, 16], strides = [1, 1]} : vector<8x96xf32> to vector<8x16xf32>
    %251 = vector.shape_cast %250 : vector<8x16xf32> to vector<1x8x16xf32>
    %252 = vector.extract_strided_slice %227 {offsets = [0, 48], sizes = [8, 16], strides = [1, 1]} : vector<8x96xf32> to vector<8x16xf32>
    %253 = vector.shape_cast %252 : vector<8x16xf32> to vector<1x8x16xf32>
    %254 = vector.extract_strided_slice %227 {offsets = [0, 80], sizes = [8, 16], strides = [1, 1]} : vector<8x96xf32> to vector<8x16xf32>
    %255 = vector.shape_cast %254 : vector<8x16xf32> to vector<1x8x16xf32>
    "tpu.trace_start"() <{level = 10 : i32, message = "bqd,bkd->bqk"}> : () -> ()
    %cst_87 = arith.constant dense<0.000000e+00> : vector<1x8x8xf32>
    %256 = tpu.matmul %251, %253, %cst_87 {dimension_numbers = #tpu.dot_dimension_numbers<[2], [2], [1], [1], [0, 0, 0, 1, 1, 1], [0], [0]>} : vector<1x8x16xf32>, vector<1x8x16xf32>, vector<1x8x8xf32> -> vector<1x8x8xf32>
    "tpu.trace_stop"() : () -> ()
    %cst_88 = arith.constant 2.500000e-01 : f32
    %257 = vector.broadcast %cst_88 : f32 to vector<1x8x8xf32>
    %258 = arith.mulf %256, %257 : vector<1x8x8xf32>
    %259 = arith.addf %258, %200 : vector<1x8x8xf32>
    %cst_89 = arith.constant dense<0xFF800000> : vector<1x8xf32>
    %260 = vector.multi_reduction <maximumf>, %259, %cst_89 [2] : vector<1x8x8xf32> to vector<1x8xf32>
    %261 = vector.shape_cast %260 : vector<1x8xf32> to vector<1x8x1xf32>
    %262 = vector.broadcast %261 : vector<1x8x1xf32> to vector<1x8x8xf32>
    %263 = arith.subf %259, %262 : vector<1x8x8xf32>
    %264 = math.exp %263 : vector<1x8x8xf32>
    %cst_90 = arith.constant dense<0.000000e+00> : vector<1x8xf32>
    %265 = vector.multi_reduction <add>, %264, %cst_90 [2] : vector<1x8x8xf32> to vector<1x8xf32>
    %266 = vector.shape_cast %265 : vector<1x8xf32> to vector<1x8x1xf32>
    %267 = tpu.reciprocal %266 {approx = true} : vector<1x8x1xf32> -> vector<1x8x1xf32>
    %268 = vector.broadcast %267 : vector<1x8x1xf32> to vector<1x8x8xf32>
    %269 = arith.mulf %264, %268 : vector<1x8x8xf32>
    "tpu.trace_start"() <{level = 10 : i32, message = "bqk,bkd->bqd"}> : () -> ()
    %cst_91 = arith.constant dense<0.000000e+00> : vector<1x8x16xf32>
    %270 = tpu.matmul %269, %255, %cst_91 {dimension_numbers = #tpu.dot_dimension_numbers<[2], [1], [1], [2], [0, 0, 0, 1, 1, 2], [0], [0]>} : vector<1x8x8xf32>, vector<1x8x16xf32>, vector<1x8x16xf32> -> vector<1x8x16xf32>
    "tpu.trace_stop"() : () -> ()
    %271 = vector.shape_cast %270 : vector<1x8x16xf32> to vector<8x16xf32>
    %272 = tpu.concatenate %249, %271 in 1 : vector<8x16xf32>, vector<8x16xf32> -> vector<8x32xf32>
    %c1_92 = arith.constant 1 : index
    %c0_93 = arith.constant 0 : index
    %c0_94 = arith.constant 0 : index
    %273 = vector.load %arg7[%c1_92, %c0_93, %c0_94] : memref<2x32x32xf32, #tpu.memory_space<vmem>>, vector<1x32x32xf32>
    %274 = vector.shape_cast %273 : vector<1x32x32xf32> to vector<32x32xf32>
    %cst_95 = arith.constant dense<0.000000e+00> : vector<8x32xf32>
    %275 = tpu.matmul %272, %274, %cst_95 {dimension_numbers = #tpu.dot_dimension_numbers<[1], [0], [0], [1], [0, 0, 1, 1], [], []>} : vector<8x32xf32>, vector<32x32xf32>, vector<8x32xf32> -> vector<8x32xf32>
    %276 = arith.addf %195, %275 : vector<8x32xf32>
    %277 = vector.extract_strided_slice %197 {offsets = [2, 0], sizes = [1, 32], strides = [1, 1]} : vector<6x32xf32> to vector<1x32xf32>
    %278 = vector.broadcast %277 : vector<1x32xf32> to vector<8x32xf32>
    %279 = arith.addf %276, %278 : vector<8x32xf32>
    %280 = vector.extract_strided_slice %197 {offsets = [3, 0], sizes = [1, 32], strides = [1, 1]} : vector<6x32xf32> to vector<1x32xf32>
    %281 = vector.extract_strided_slice %197 {offsets = [4, 0], sizes = [1, 32], strides = [1, 1]} : vector<6x32xf32> to vector<1x32xf32>
    %cst_96 = arith.constant dense<0.000000e+00> : vector<8xf32>
    %282 = vector.multi_reduction <add>, %279, %cst_96 [1] : vector<8x32xf32> to vector<8xf32>
    %283 = vector.shape_cast %282 : vector<8xf32> to vector<8x1xf32>
    %cst_97 = arith.constant 3.200000e+01 : f32
    %284 = vector.broadcast %cst_97 : f32 to vector<8x1xf32>
    %285 = arith.divf %283, %284 : vector<8x1xf32>
    %286 = vector.broadcast %285 : vector<8x1xf32> to vector<8x32xf32>
    %287 = arith.subf %279, %286 : vector<8x32xf32>
    %288 = arith.mulf %287, %287 : vector<8x32xf32>
    %cst_98 = arith.constant dense<0.000000e+00> : vector<8xf32>
    %289 = vector.multi_reduction <add>, %288, %cst_98 [1] : vector<8x32xf32> to vector<8xf32>
    %290 = vector.shape_cast %289 : vector<8xf32> to vector<8x1xf32>
    %cst_99 = arith.constant 3.200000e+01 : f32
    %291 = vector.broadcast %cst_99 : f32 to vector<8x1xf32>
    %292 = arith.divf %290, %291 : vector<8x1xf32>
    %293 = vector.broadcast %285 : vector<8x1xf32> to vector<8x32xf32>
    %294 = arith.subf %279, %293 : vector<8x32xf32>
    %cst_100 = arith.constant 9.99999974E-6 : f32
    %295 = vector.broadcast %cst_100 : f32 to vector<8x1xf32>
    %296 = arith.addf %292, %295 : vector<8x1xf32>
    %297 = math.rsqrt %296 : vector<8x1xf32>
    %298 = vector.broadcast %297 : vector<8x1xf32> to vector<8x32xf32>
    %299 = arith.mulf %294, %298 : vector<8x32xf32>
    %300 = vector.broadcast %280 : vector<1x32xf32> to vector<8x32xf32>
    %301 = arith.mulf %299, %300 : vector<8x32xf32>
    %302 = vector.broadcast %281 : vector<1x32xf32> to vector<8x32xf32>
    %303 = arith.addf %301, %302 : vector<8x32xf32>
    %c1_101 = arith.constant 1 : index
    %c0_102 = arith.constant 0 : index
    %c0_103 = arith.constant 0 : index
    %304 = vector.load %arg11[%c1_101, %c0_102, %c0_103] : memref<2x32x64xf32, #tpu.memory_space<vmem>>, vector<1x32x64xf32>
    %305 = vector.shape_cast %304 : vector<1x32x64xf32> to vector<32x64xf32>
    %cst_104 = arith.constant dense<0.000000e+00> : vector<8x64xf32>
    %306 = tpu.matmul %303, %305, %cst_104 {dimension_numbers = #tpu.dot_dimension_numbers<[1], [0], [0], [1], [0, 0, 1, 1], [], []>} : vector<8x32xf32>, vector<32x64xf32>, vector<8x64xf32> -> vector<8x64xf32>
    %c1_105 = arith.constant 1 : index
    %c0_106 = arith.constant 0 : index
    %c0_107 = arith.constant 0 : index
    %307 = vector.load %arg10[%c1_105, %c0_106, %c0_107] : memref<2x1x64xf32, #tpu.memory_space<vmem>>, vector<1x1x64xf32>
    %308 = vector.shape_cast %307 : vector<1x1x64xf32> to vector<1x64xf32>
    %309 = vector.broadcast %308 : vector<1x64xf32> to vector<8x64xf32>
    %310 = arith.addf %306, %309 : vector<8x64xf32>
    %cst_108 = arith.constant 5.000000e-01 : f32
    %311 = vector.broadcast %cst_108 : f32 to vector<8x64xf32>
    %312 = arith.mulf %311, %310 : vector<8x64xf32>
    %cst_109 = arith.constant 0.707106769 : f32
    %313 = vector.broadcast %cst_109 : f32 to vector<8x64xf32>
    %314 = arith.mulf %310, %313 : vector<8x64xf32>
    %315 = math.erf %314 : vector<8x64xf32>
    %cst_110 = arith.constant 1.000000e+00 : f32
    %316 = vector.broadcast %cst_110 : f32 to vector<8x64xf32>
    %317 = arith.addf %316, %315 : vector<8x64xf32>
    %318 = arith.mulf %312, %317 : vector<8x64xf32>
    %c1_111 = arith.constant 1 : index
    %c0_112 = arith.constant 0 : index
    %c0_113 = arith.constant 0 : index
    %319 = vector.load %arg12[%c1_111, %c0_112, %c0_113] : memref<2x64x32xf32, #tpu.memory_space<vmem>>, vector<1x64x32xf32>
    %320 = vector.shape_cast %319 : vector<1x64x32xf32> to vector<64x32xf32>
    %cst_114 = arith.constant dense<0.000000e+00> : vector<8x32xf32>
    %321 = tpu.matmul %318, %320, %cst_114 {dimension_numbers = #tpu.dot_dimension_numbers<[1], [0], [0], [1], [0, 0, 1, 1], [], []>} : vector<8x64xf32>, vector<64x32xf32>, vector<8x32xf32> -> vector<8x32xf32>
    %322 = arith.addf %279, %321 : vector<8x32xf32>
    %323 = vector.extract_strided_slice %197 {offsets = [5, 0], sizes = [1, 32], strides = [1, 1]} : vector<6x32xf32> to vector<1x32xf32>
    %324 = vector.broadcast %323 : vector<1x32xf32> to vector<8x32xf32>
    %325 = arith.addf %322, %324 : vector<8x32xf32>
    %326 = vector.extract_strided_slice %12 {offsets = [3, 0], sizes = [1, 32], strides = [1, 1]} : vector<5x32xf32> to vector<1x32xf32>
    %327 = vector.extract_strided_slice %12 {offsets = [4, 0], sizes = [1, 32], strides = [1, 1]} : vector<5x32xf32> to vector<1x32xf32>
    %cst_115 = arith.constant dense<0.000000e+00> : vector<8xf32>
    %328 = vector.multi_reduction <add>, %325, %cst_115 [1] : vector<8x32xf32> to vector<8xf32>
    %329 = vector.shape_cast %328 : vector<8xf32> to vector<8x1xf32>
    %cst_116 = arith.constant 3.200000e+01 : f32
    %330 = vector.broadcast %cst_116 : f32 to vector<8x1xf32>
    %331 = arith.divf %329, %330 : vector<8x1xf32>
    %332 = vector.broadcast %331 : vector<8x1xf32> to vector<8x32xf32>
    %333 = arith.subf %325, %332 : vector<8x32xf32>
    %334 = arith.mulf %333, %333 : vector<8x32xf32>
    %cst_117 = arith.constant dense<0.000000e+00> : vector<8xf32>
    %335 = vector.multi_reduction <add>, %334, %cst_117 [1] : vector<8x32xf32> to vector<8xf32>
    %336 = vector.shape_cast %335 : vector<8xf32> to vector<8x1xf32>
    %cst_118 = arith.constant 3.200000e+01 : f32
    %337 = vector.broadcast %cst_118 : f32 to vector<8x1xf32>
    %338 = arith.divf %336, %337 : vector<8x1xf32>
    %339 = vector.broadcast %331 : vector<8x1xf32> to vector<8x32xf32>
    %340 = arith.subf %325, %339 : vector<8x32xf32>
    %cst_119 = arith.constant 9.99999974E-6 : f32
    %341 = vector.broadcast %cst_119 : f32 to vector<8x1xf32>
    %342 = arith.addf %338, %341 : vector<8x1xf32>
    %343 = math.rsqrt %342 : vector<8x1xf32>
    %344 = vector.broadcast %343 : vector<8x1xf32> to vector<8x32xf32>
    %345 = arith.mulf %340, %344 : vector<8x32xf32>
    %346 = vector.broadcast %326 : vector<1x32xf32> to vector<8x32xf32>
    %347 = arith.mulf %345, %346 : vector<8x32xf32>
    %348 = vector.broadcast %327 : vector<1x32xf32> to vector<8x32xf32>
    %349 = arith.addf %347, %348 : vector<8x32xf32>
    %c0_120 = arith.constant 0 : index
    %c0_121 = arith.constant 0 : index
    %350 = vector.load %arg13[%c0_120, %c0_121] : memref<32x9xf32, #tpu.memory_space<vmem>>, vector<32x9xf32>
    %cst_122 = arith.constant dense<0.000000e+00> : vector<8x9xf32>
    %351 = tpu.matmul %349, %350, %cst_122 {dimension_numbers = #tpu.dot_dimension_numbers<[1], [0], [0], [1], [0, 0, 1, 1], [], []>} : vector<8x32xf32>, vector<32x9xf32>, vector<8x9xf32> -> vector<8x9xf32>
    %c0_123 = arith.constant 0 : index
    %c0_124 = arith.constant 0 : index
    %352 = vector.load %arg14[%c0_123, %c0_124] : memref<1x9xf32, #tpu.memory_space<vmem>>, vector<1x9xf32>
    %353 = vector.broadcast %352 : vector<1x9xf32> to vector<8x9xf32>
    %354 = arith.addf %351, %353 : vector<8x9xf32>
    %355 = vector.shape_cast %354 : vector<8x9xf32> to vector<1x8x9xf32>
    %c0_125 = arith.constant 0 : index
    %c0_126 = arith.constant 0 : index
    %c0_127 = arith.constant 0 : index
    %356 = vector.load %arg15[%c0_125, %c0_126, %c0_127] : memref<1x8x9xf32, #tpu.memory_space<vmem>>, vector<1x8x9xf32>
    tpu.vector_store %arg15[%c0_125, %c0_126, %c0_127], %355 {strides = array<i32>} : memref<1x8x9xf32, #tpu.memory_space<vmem>>, vector<1x8x9xf32>,
    return
  }
  func.func @transform_0(%arg0: i32) -> (i32, i32) {
    %c0_i32 = arith.constant 0 : i32
    %c0_i32_0 = arith.constant 0 : i32
    return %arg0, %c0_i32 : i32, i32
  }
  func.func @transform_1(%arg0: i32) -> (i32, i32) {
    %c0_i32 = arith.constant 0 : i32
    %c0_i32_0 = arith.constant 0 : i32
    %c0_i32_1 = arith.constant 0 : i32
    return %c0_i32, %c0_i32_0 : i32, i32
  }
  func.func @transform_2(%arg0: i32) -> (i32, i32) {
    %c0_i32 = arith.constant 0 : i32
    %c0_i32_0 = arith.constant 0 : i32
    %c0_i32_1 = arith.constant 0 : i32
    return %c0_i32, %c0_i32_0 : i32, i32
  }
  func.func @transform_3(%arg0: i32) -> (i32, i32) {
    %c0_i32 = arith.constant 0 : i32
    %c0_i32_0 = arith.constant 0 : i32
    %c0_i32_1 = arith.constant 0 : i32
    return %c0_i32, %c0_i32_0 : i32, i32
  }
  func.func @transform_4(%arg0: i32) -> (i32, i32) {
    %c0_i32 = arith.constant 0 : i32
    %c0_i32_0 = arith.constant 0 : i32
    %c0_i32_1 = arith.constant 0 : i32
    return %c0_i32, %c0_i32_0 : i32, i32
  }
  func.func @transform_5(%arg0: i32) -> (i32, i32, i32) {
    %c0_i32 = arith.constant 0 : i32
    %c0_i32_0 = arith.constant 0 : i32
    %c0_i32_1 = arith.constant 0 : i32
    %c0_i32_2 = arith.constant 0 : i32
    return %c0_i32, %c0_i32_0, %c0_i32_1 : i32, i32, i32
  }
  func.func @transform_6(%arg0: i32) -> (i32, i32, i32) {
    %c0_i32 = arith.constant 0 : i32
    %c0_i32_0 = arith.constant 0 : i32
    %c0_i32_1 = arith.constant 0 : i32
    %c0_i32_2 = arith.constant 0 : i32
    return %c0_i32, %c0_i32_0, %c0_i32_1 : i32, i32, i32
  }
  func.func @transform_7(%arg0: i32) -> (i32, i32, i32) {
    %c0_i32 = arith.constant 0 : i32
    %c0_i32_0 = arith.constant 0 : i32
    %c0_i32_1 = arith.constant 0 : i32
    %c0_i32_2 = arith.constant 0 : i32
    return %c0_i32, %c0_i32_0, %c0_i32_1 : i32, i32, i32
  }
  func.func @transform_8(%arg0: i32) -> (i32, i32, i32) {
    %c0_i32 = arith.constant 0 : i32
    %c0_i32_0 = arith.constant 0 : i32
    %c0_i32_1 = arith.constant 0 : i32
    %c0_i32_2 = arith.constant 0 : i32
    return %c0_i32, %c0_i32_0, %c0_i32_1 : i32, i32, i32
  }
  func.func @transform_9(%arg0: i32) -> (i32, i32, i32) {
    %c0_i32 = arith.constant 0 : i32
    %c0_i32_0 = arith.constant 0 : i32
    %c0_i32_1 = arith.constant 0 : i32
    %c0_i32_2 = arith.constant 0 : i32
    return %c0_i32, %c0_i32_0, %c0_i32_1 : i32, i32, i32
  }
  func.func @transform_10(%arg0: i32) -> (i32, i32, i32) {
    %c0_i32 = arith.constant 0 : i32
    %c0_i32_0 = arith.constant 0 : i32
    %c0_i32_1 = arith.constant 0 : i32
    %c0_i32_2 = arith.constant 0 : i32
    return %c0_i32, %c0_i32_0, %c0_i32_1 : i32, i32, i32
  }
  func.func @transform_11(%arg0: i32) -> (i32, i32, i32) {
    %c0_i32 = arith.constant 0 : i32
    %c0_i32_0 = arith.constant 0 : i32
    %c0_i32_1 = arith.constant 0 : i32
    %c0_i32_2 = arith.constant 0 : i32
    return %c0_i32, %c0_i32_0, %c0_i32_1 : i32, i32, i32
  }
  func.func @transform_12(%arg0: i32) -> (i32, i32) {
    %c0_i32 = arith.constant 0 : i32
    %c0_i32_0 = arith.constant 0 : i32
    %c0_i32_1 = arith.constant 0 : i32
    return %c0_i32, %c0_i32_0 : i32, i32
  }
  func.func @transform_13(%arg0: i32) -> (i32, i32) {
    %c0_i32 = arith.constant 0 : i32
    %c0_i32_0 = arith.constant 0 : i32
    %c0_i32_1 = arith.constant 0 : i32
    return %c0_i32, %c0_i32_0 : i32, i32
  }
  func.func @transform_14(%arg0: i32) -> (i32, i32, i32) {
    %c0_i32 = arith.constant 0 : i32
    %c0_i32_0 = arith.constant 0 : i32
    %c0_i32_1 = arith.constant 0 : i32
    return %arg0, %c0_i32, %c0_i32_0 : i32, i32, i32
  }
}

</mosaic_0001>

<llo_original>
// kernel: bit_phoneme_forward.1
$region0: #{bit_phoneme_forward.1}
  #allocation0 [shape = 'u32[]', space=smem, size = 0x4, offset = 0x4, fixed_abs, tag = 'smem constant byte address 0x4 - core index']
  #allocation1 [shape = 'u32[144,128]{1,0:T(1,128)}', space=vmem, size = 0x12000, scoped, tag = 'internal scratch']
  %s0 = inlined_call_operand.hbm [shape: f32[32,22], index: 0, kind: input, shape index: {}]
  %s1 = inlined_call_operand.hbm [shape: f32[22,32], index: 1, kind: input, shape index: {}]
  %s2 = inlined_call_operand.hbm [shape: f32[2,64], index: 2, kind: input, shape index: {}]
  %s3 = inlined_call_operand.hbm [shape: f32[64,32], index: 3, kind: input, shape index: {}]
  %s4 = inlined_call_operand.vmem [shape: f32[5,32], index: 4, kind: input, shape index: {}]
  %s5 = inlined_call_operand.hbm [shape: f32[2,32,96], index: 5, kind: input, shape index: {}]
  %s6 = inlined_call_operand.hbm [shape: f32[2,32,32], index: 6, kind: input, shape index: {}]
  %s7 = inlined_call_operand.hbm [shape: f32[2,8,8], index: 7, kind: input, shape index: {}]
  %s8 = inlined_call_operand.vmem [shape: f32[2,6,32], index: 8, kind: input, shape index: {}]
  %s9 = inlined_call_operand.vmem [shape: f32[2,1,64], index: 9, kind: input, shape index: {}]
  %s10 = inlined_call_operand.hbm [shape: f32[2,32,64], index: 10, kind: input, shape index: {}]
  %s11 = inlined_call_operand.hbm [shape: f32[2,64,32], index: 11, kind: input, shape index: {}]
  %s12 = inlined_call_operand.vmem [shape: f32[32,9], index: 12, kind: input, shape index: {}]
  %s13 = inlined_call_operand.vmem [shape: f32[1,9], index: 13, kind: input, shape index: {}]
  %s14 = inlined_call_operand.vmem [shape: f32[2,8,9], index: 14, kind: output, shape index: {}]
  %s15 = sld [smem:[#allocation0]]
  $region125: #{bit_phoneme_forward.1} parent=0
    _
  %s17 = ssub.s32 1, %s15
  %s18 = scalar_select 0, %s17, %s15
  $region1: #{bit_phoneme_forward.1} parent=0
    #allocation2 [shape = 'u8[16384]{0}', space=vmem, size = 0x4000, scoped, tag = 'input window, operand 0']
    #allocation3 [shape = 's32[2]{0}', space=sflag, size = 0x8, scoped, tag = 'scoped memory for bit_phoneme_forward.1']
    #allocation4 [shape = 'u8[12288]{0}', space=vmem, size = 0x3000, scoped, tag = 'input window, operand 1, single buffered']
    #allocation5 [shape = 's32[1]{0}', space=sflag, size = 0x4, scoped, tag = 'scoped memory for bit_phoneme_forward.1']
    #allocation6 [shape = 'u8[1024]{0}', space=vmem, size = 0x400, scoped, tag = 'input window, operand 2, single buffered']
    #allocation7 [shape = 'u8[32768]{0}', space=vmem, size = 0x8000, scoped, tag = 'input window, operand 3, single buffered']
    #allocation8 [shape = 's32[1]{0}', space=sflag, size = 0x4, scoped, tag = 'scoped memory for bit_phoneme_forward.1']
    #allocation9 [shape = 'u8[32768]{0}', space=vmem, size = 0x8000, scoped, tag = 'input window, operand 5, single buffered']
    #allocation10 [shape = 'u8[32768]{0}', space=vmem, size = 0x8000, scoped, tag = 'input window, operand 6, single buffered']
    #allocation11 [shape = 's32[1]{0}', space=sflag, size = 0x4, scoped, tag = 'scoped memory for bit_phoneme_forward.1']
    #allocation12 [shape = 'u8[8192]{0}', space=vmem, size = 0x2000, scoped, tag = 'input window, operand 7, single buffered']
    #allocation13 [shape = 'u8[32768]{0}', space=vmem, size = 0x8000, scoped, tag = 'input window, operand 10, single buffered']
    #allocation14 [shape = 's32[1]{0}', space=sflag, size = 0x4, scoped, tag = 'scoped memory for bit_phoneme_forward.1']
    #allocation15 [shape = 'u8[65536]{0}', space=vmem, size = 0x10000, scoped, tag = 'input window, operand 11, single buffered']
    %19 = vsyncpa [#allocation3], 0
    %s20 = scalar_lea.sflag [#allocation3], 1
    %21 = vsyncpa %s20, 0
    %22 = vsyncpa [#allocation5], 0
    %23 = vsyncpa [#allocation8], 0
    %24 = vsyncpa [#allocation11], 0
    %25 = vsyncpa [#allocation14], 0
    loop: start=0, step=1, limit=4
    $region2: #{bit_phoneme_forward.1} parent=1 // loop_pre_header
      _
    $region3: #{bit_phoneme_forward.1} parent=1 // loop_header
      %s27 = sphi 0, %s31
      %p28 = scmp.ge.s32.totalorder %s27, 4
      %s37 = sphi 0, %s39
      %s40 = sphi 0, %s37
      %s41 = sphi 0, %s40
      %s57 = sphi 0, %s41
      %s61 = sphi 0, %s61
      %s63 = sphi 0, %s61
      %s64 = sphi 0, %s63
      %s78 = sphi 0, %s64
      %s82 = sphi 0, %s82
      %s84 = sphi 0, %s82
      %s85 = sphi 0, %s84
      %s99 = sphi 0, %s85
      %s103 = sphi 0, %s103
      %s105 = sphi 0, %s103
      %s106 = sphi 0, %s105
      %s120 = sphi 0, %s106
      %s124 = sphi 0, %s124
      %s126 = sphi 0, %s124
      %s127 = sphi 0, %s126
      %s141 = sphi 0, %s127
      %s145 = sphi 0, %s145
      %s147 = sphi 0, %s145
      %s148 = sphi 0, %s147
      %s162 = sphi 0, %s148
      %s166 = sphi 0, %s166
      %s168 = sphi 0, %s166
      %s169 = sphi 0, %s168
      %s183 = sphi 0, %s169
      %s187 = sphi 0, %s187
      %s189 = sphi 0, %s187
      %s190 = sphi 0, %s189
      %s204 = sphi 0, %s190
      %s208 = sphi 0, %s208
      %s210 = sphi 0, %s208
      %s211 = sphi 0, %s210
      %s225 = sphi 0, %s211
      %s229 = sphi 0, %s229
      %s231 = sphi 0, %s229
      %s232 = sphi 0, %s231
      %s246 = sphi 0, %s232
      %s250 = sphi 0, %s250
      %s252 = sphi 0, %s250
      %s253 = sphi 0, %s252
      %s267 = sphi 0, %s253
      %s271 = sphi 0, %s271
      %s273 = sphi 0, %s271
      %s274 = sphi 0, %s273
      %s288 = sphi 0, %s274
      %s292 = sphi 0, %s292
      %s294 = sphi 0, %s292
      %s295 = sphi 0, %s294
      %s309 = sphi 0, %s295
      %s313 = sphi 0, %s313
      %s315 = sphi 0, %s313
      %s316 = sphi 0, %s315
      %s330 = sphi 0, %s316
      %s336 = sphi 0, %s338
      %s339 = sphi 0, %s336
      %s340 = sphi 0, %s339
      %s356 = sphi 0, %s340
    $region4: #{bit_phoneme_forward.1} parent=1 // loop_header_branch
      %30 = sbr.rel (%p28) target = $region8
    $region5: #{bit_phoneme_forward.1} parent=1 // loop_body
      %s32 = ssub.s32 %s27, 1
      %s33 = ssub.s32 %s27, 2
      %s34 = sadd.s32 %s27, 1
      %s35 = ssub.s32 %s27, %s34
      %p36 = scmp.eq.s32.totalorder %s35, 0
      %s38 = sadd.s32 %s37, 1
      %s39 = scalar_select %p36, %s37, %s38
      %p42 = pneg %p36
      %p43 = scmp.eq.s32.totalorder %s27, 1
      %p44 = por %p42, %p43
      %p45 = scmp.ne.s32.totalorder %s37, %s40
      %p46 = scmp.eq.s32.totalorder %s27, 0
      %p47 = por %p45, %p46
      %p48 = scmp.ne.s32.totalorder %s37, %s40
      %p49 = scmp.eq.s32.totalorder %s32, 1
      %p50 = por %p48, %p49
      %p51 = scmp.ne.s32.totalorder %s40, %s41
      %p52 = scmp.eq.s32.totalorder %s32, 0
      %p53 = por %p51, %p52
      %p54 = scmp.ne.s32.totalorder %s40, %s41
      %p55 = scmp.eq.s32.totalorder %s33, 1
      %p56 = por %p54, %p55
      %p58 = scmp.ne.s32.totalorder %s41, %s57
      %p59 = scmp.eq.s32.totalorder %s33, 0
      %p60 = por %p58, %p59
      %s62 = sadd.s32 %s61, 1
      %p65 = scmp.eq.s32.totalorder %s27, 1
      %p66 = scmp.ne.s32.totalorder %s61, %s63
      %p67 = scmp.eq.s32.totalorder %s27, 0
      %p68 = por %p66, %p67
      %p69 = scmp.ne.s32.totalorder %s61, %s63
      %p70 = scmp.eq.s32.totalorder %s32, 1
      %p71 = por %p69, %p70
      %p72 = scmp.ne.s32.totalorder %s63, %s64
      %p73 = scmp.eq.s32.totalorder %s32, 0
      %p74 = por %p72, %p73
      %p75 = scmp.ne.s32.totalorder %s63, %s64
      %p76 = scmp.eq.s32.totalorder %s33, 1
      %p77 = por %p75, %p76
      %p79 = scmp.ne.s32.totalorder %s64, %s78
      %p80 = scmp.eq.s32.totalorder %s33, 0
      %p81 = por %p79, %p80
      %s83 = sadd.s32 %s82, 1
      %p86 = scmp.eq.s32.totalorder %s27, 1
      %p87 = scmp.ne.s32.totalorder %s82, %s84
      %p88 = scmp.eq.s32.totalorder %s27, 0
      %p89 = por %p87, %p88
      %p90 = scmp.ne.s32.totalorder %s82, %s84
      %p91 = scmp.eq.s32.totalorder %s32, 1
      %p92 = por %p90, %p91
      %p93 = scmp.ne.s32.totalorder %s84, %s85
      %p94 = scmp.eq.s32.totalorder %s32, 0
      %p95 = por %p93, %p94
      %p96 = scmp.ne.s32.totalorder %s84, %s85
      %p97 = scmp.eq.s32.totalorder %s33, 1
      %p98 = por %p96, %p97
      %p100 = scmp.ne.s32.totalorder %s85, %s99
      %p101 = scmp.eq.s32.totalorder %s33, 0
      %p102 = por %p100, %p101
      %s104 = sadd.s32 %s103, 1
      %p107 = scmp.eq.s32.totalorder %s27, 1
      %p108 = scmp.ne.s32.totalorder %s103, %s105
      %p109 = scmp.eq.s32.totalorder %s27, 0
      %p110 = por %p108, %p109
      %p111 = scmp.ne.s32.totalorder %s103, %s105
      %p112 = scmp.eq.s32.totalorder %s32, 1
      %p113 = por %p111, %p112
      %p114 = scmp.ne.s32.totalorder %s105, %s106
      %p115 = scmp.eq.s32.totalorder %s32, 0
      %p116 = por %p114, %p115
      %p117 = scmp.ne.s32.totalorder %s105, %s106
      %p118 = scmp.eq.s32.totalorder %s33, 1
      %p119 = por %p117, %p118
      %p121 = scmp.ne.s32.totalorder %s106, %s120
      %p122 = scmp.eq.s32.totalorder %s33, 0
      %p123 = por %p121, %p122
      %s125 = sadd.s32 %s124, 1
      %p128 = scmp.eq.s32.totalorder %s27, 1
      %p129 = scmp.ne.s32.totalorder %s124, %s126
      %p130 = scmp.eq.s32.totalorder %s27, 0
      %p131 = por %p129, %p130
      %p132 = scmp.ne.s32.totalorder %s124, %s126
      %p133 = scmp.eq.s32.totalorder %s32, 1
      %p134 = por %p132, %p133
      %p135 = scmp.ne.s32.totalorder %s126, %s127
      %p136 = scmp.eq.s32.totalorder %s32, 0
      %p137 = por %p135, %p136
      %p138 = scmp.ne.s32.totalorder %s126, %s127
      %p139 = scmp.eq.s32.totalorder %s33, 1
      %p140 = por %p138, %p139
      %p142 = scmp.ne.s32.totalorder %s127, %s141
      %p143 = scmp.eq.s32.totalorder %s33, 0
      %p144 = por %p142, %p143
      %s146 = sadd.s32 %s145, 1
      %p149 = scmp.eq.s32.totalorder %s27, 1
      %p150 = scmp.ne.s32.totalorder %s145, %s147
      %p151 = scmp.eq.s32.totalorder %s27, 0
      %p152 = por %p150, %p151
      %p153 = scmp.ne.s32.totalorder %s145, %s147
      %p154 = scmp.eq.s32.totalorder %s32, 1
      %p155 = por %p153, %p154
      %p156 = scmp.ne.s32.totalorder %s147, %s148
      %p157 = scmp.eq.s32.totalorder %s32, 0
      %p158 = por %p156, %p157
      %p159 = scmp.ne.s32.totalorder %s147, %s148
      %p160 = scmp.eq.s32.totalorder %s33, 1
      %p161 = por %p159, %p160
      %p163 = scmp.ne.s32.totalorder %s148, %s162
      %p164 = scmp.eq.s32.totalorder %s33, 0
      %p165 = por %p163, %p164
      %s167 = sadd.s32 %s166, 1
      %p170 = scmp.eq.s32.totalorder %s27, 1
      %p171 = scmp.ne.s32.totalorder %s166, %s168
      %p172 = scmp.eq.s32.totalorder %s27, 0
      %p173 = por %p171, %p172
      %p174 = scmp.ne.s32.totalorder %s166, %s168
      %p175 = scmp.eq.s32.totalorder %s32, 1
      %p176 = por %p174, %p175
      %p177 = scmp.ne.s32.totalorder %s168, %s169
      %p178 = scmp.eq.s32.totalorder %s32, 0
      %p179 = por %p177, %p178
      %p180 = scmp.ne.s32.totalorder %s168, %s169
      %p181 = scmp.eq.s32.totalorder %s33, 1
      %p182 = por %p180, %p181
      %p184 = scmp.ne.s32.totalorder %s169, %s183
      %p185 = scmp.eq.s32.totalorder %s33, 0
      %p186 = por %p184, %p185
      %s188 = sadd.s32 %s187, 1
      %p191 = scmp.eq.s32.totalorder %s27, 1
      %p192 = scmp.ne.s32.totalorder %s187, %s189
      %p193 = scmp.eq.s32.totalorder %s27, 0
      %p194 = por %p192, %p193
      %p195 = scmp.ne.s32.totalorder %s187, %s189
      %p196 = scmp.eq.s32.totalorder %s32, 1
      %p197 = por %p195, %p196
      %p198 = scmp.ne.s32.totalorder %s189, %s190
      %p199 = scmp.eq.s32.totalorder %s32, 0
      %p200 = por %p198, %p199
      %p201 = scmp.ne.s32.totalorder %s189, %s190
      %p202 = scmp.eq.s32.totalorder %s33, 1
      %p203 = por %p201, %p202
      %p205 = scmp.ne.s32.totalorder %s190, %s204
      %p206 = scmp.eq.s32.totalorder %s33, 0
      %p207 = por %p205, %p206
      %s209 = sadd.s32 %s208, 1
      %p212 = scmp.eq.s32.totalorder %s27, 1
      %p213 = scmp.ne.s32.totalorder %s208, %s210
      %p214 = scmp.eq.s32.totalorder %s27, 0
      %p215 = por %p213, %p214
      %p216 = scmp.ne.s32.totalorder %s208, %s210
      %p217 = scmp.eq.s32.totalorder %s32, 1
      %p218 = por %p216, %p217
      %p219 = scmp.ne.s32.totalorder %s210, %s211
      %p220 = scmp.eq.s32.totalorder %s32, 0
      %p221 = por %p219, %p220
      %p222 = scmp.ne.s32.totalorder %s210, %s211
      %p223 = scmp.eq.s32.totalorder %s33, 1
      %p224 = por %p222, %p223
      %p226 = scmp.ne.s32.totalorder %s211, %s225
      %p227 = scmp.eq.s32.totalorder %s33, 0
      %p228 = por %p226, %p227
      %s230 = sadd.s32 %s229, 1
      %p233 = scmp.eq.s32.totalorder %s27, 1
      %p234 = scmp.ne.s32.totalorder %s229, %s231
      %p235 = scmp.eq.s32.totalorder %s27, 0
      %p236 = por %p234, %p235
      %p237 = scmp.ne.s32.totalorder %s229, %s231
      %p238 = scmp.eq.s32.totalorder %s32, 1
      %p239 = por %p237, %p238
      %p240 = scmp.ne.s32.totalorder %s231, %s232
      %p241 = scmp.eq.s32.totalorder %s32, 0
      %p242 = por %p240, %p241
      %p243 = scmp.ne.s32.totalorder %s231, %s232
      %p244 = scmp.eq.s32.totalorder %s33, 1
      %p245 = por %p243, %p244
      %p247 = scmp.ne.s32.totalorder %s232, %s246
      %p248 = scmp.eq.s32.totalorder %s33, 0
      %p249 = por %p247, %p248
      %s251 = sadd.s32 %s250, 1
      %p254 = scmp.eq.s32.totalorder %s27, 1
      %p255 = scmp.ne.s32.totalorder %s250, %s252
      %p256 = scmp.eq.s32.totalorder %s27, 0
      %p257 = por %p255, %p256
      %p258 = scmp.ne.s32.totalorder %s250, %s252
      %p259 = scmp.eq.s32.totalorder %s32, 1
      %p260 = por %p258, %p259
      %p261 = scmp.ne.s32.totalorder %s252, %s253
      %p262 = scmp.eq.s32.totalorder %s32, 0
      %p263 = por %p261, %p262
      %p264 = scmp.ne.s32.totalorder %s252, %s253
      %p265 = scmp.eq.s32.totalorder %s33, 1
      %p266 = por %p264, %p265
      %p268 = scmp.ne.s32.totalorder %s253, %s267
      %p269 = scmp.eq.s32.totalorder %s33, 0
      %p270 = por %p268, %p269
      %s272 = sadd.s32 %s271, 1
      %p275 = scmp.eq.s32.totalorder %s27, 1
      %p276 = scmp.ne.s32.totalorder %s271, %s273
      %p277 = scmp.eq.s32.totalorder %s27, 0
      %p278 = por %p276, %p277
      %p279 = scmp.ne.s32.totalorder %s271, %s273
      %p280 = scmp.eq.s32.totalorder %s32, 1
      %p281 = por %p279, %p280
      %p282 = scmp.ne.s32.totalorder %s273, %s274
      %p283 = scmp.eq.s32.totalorder %s32, 0
      %p284 = por %p282, %p283
      %p285 = scmp.ne.s32.totalorder %s273, %s274
      %p286 = scmp.eq.s32.totalorder %s33, 1
      %p287 = por %p285, %p286
      %p289 = scmp.ne.s32.totalorder %s274, %s288
      %p290 = scmp.eq.s32.totalorder %s33, 0
      %p291 = por %p289, %p290
      %s293 = sadd.s32 %s292, 1
      %p296 = scmp.eq.s32.totalorder %s27, 1
      %p297 = scmp.ne.s32.totalorder %s292, %s294
      %p298 = scmp.eq.s32.totalorder %s27, 0
      %p299 = por %p297, %p298
      %p300 = scmp.ne.s32.totalorder %s292, %s294
      %p301 = scmp.eq.s32.totalorder %s32, 1
      %p302 = por %p300, %p301
      %p303 = scmp.ne.s32.totalorder %s294, %s295
      %p304 = scmp.eq.s32.totalorder %s32, 0
      %p305 = por %p303, %p304
      %p306 = scmp.ne.s32.totalorder %s294, %s295
      %p307 = scmp.eq.s32.totalorder %s33, 1
      %p308 = por %p306, %p307
      %p310 = scmp.ne.s32.totalorder %s295, %s309
      %p311 = scmp.eq.s32.totalorder %s33, 0
      %p312 = por %p310, %p311
      %s314 = sadd.s32 %s313, 1
      %p317 = scmp.eq.s32.totalorder %s27, 1
      %p318 = scmp.ne.s32.totalorder %s313, %s315
      %p319 = scmp.eq.s32.totalorder %s27, 0
      %p320 = por %p318, %p319
      %p321 = scmp.ne.s32.totalorder %s313, %s315
      %p322 = scmp.eq.s32.totalorder %s32, 1
      %p323 = por %p321, %p322
      %p324 = scmp.ne.s32.totalorder %s315, %s316
      %p325 = scmp.eq.s32.totalorder %s32, 0
      %p326 = por %p324, %p325
      %p327 = scmp.ne.s32.totalorder %s315, %s316
      %p328 = scmp.eq.s32.totalorder %s33, 1
      %p329 = por %p327, %p328
      %p331 = scmp.ne.s32.totalorder %s316, %s330
      %p332 = scmp.eq.s32.totalorder %s33, 0
      %p333 = por %p331, %p332
      %s334 = ssub.s32 %s27, %s34
      %p335 = scmp.eq.s32.totalorder %s334, 0
      %s337 = sadd.s32 %s336, 1
      %s338 = scalar_select %p335, %s336, %s337
      %p341 = pneg %p335
      %p342 = scmp.eq.s32.totalorder %s27, 1
      %p343 = por %p341, %p342
      %p344 = scmp.ne.s32.totalorder %s336, %s339
      %p345 = scmp.eq.s32.totalorder %s27, 0
      %p346 = por %p344, %p345
      %p347 = scmp.ne.s32.totalorder %s336, %s339
      %p348 = scmp.eq.s32.totalorder %s32, 1
      %p349 = por %p347, %p348
      %p350 = scmp.ne.s32.totalorder %s339, %s340
      %p351 = scmp.eq.s32.totalorder %s32, 0
      %p352 = por %p350, %p351
      %p353 = scmp.ne.s32.totalorder %s339, %s340
      %p354 = scmp.eq.s32.totalorder %s33, 1
      %p355 = por %p353, %p354
      %p357 = scmp.ne.s32.totalorder %s340, %s356
      %p358 = scmp.eq.s32.totalorder %s33, 0
      %p359 = por %p357, %p358
      %p360 = scmp.le.s32.totalorder 1, %s27
      %p361 = scmp.lt.s32.totalorder %s27, 3
      %p362 = pnand %p360, %p361
      %p363 = pneg %p362
      // Predicated region
      $region9: #{bit_phoneme_forward.1} parent=5 // pred_check
        _
      $region10: #{bit_phoneme_forward.1} parent=5 // pred_check_branch
        %365 = sbr.rel (%p362) target = $region12
      $region11: #{bit_phoneme_forward.1} parent=5 // pred_region
        %s366 = ssub.s32 %s27, 1
        // Predicated region
        $region13: #{bit_phoneme_forward.1} parent=11 // pred_check
          %p367 = pneg %p74
        $region14: #{bit_phoneme_forward.1} parent=11 // pred_check_branch
          %369 = sbr.rel (%p367) target = $region16
        $region15: #{bit_phoneme_forward.1} parent=11 // pred_region
          %s371 = ssub.s32 384, 384
          %372 = vsyncadd [#allocation5], %s371
          %s373 = sshll.u32 [#allocation4], 4
          %s374 = int_to_ptr.vmem [resolvable:$true] %s373
          %379 = dma.hbm_to_vmem [thread:$0]  %s1, 384, %s374, [#allocation5], 128, 128, 8
        $region16: #{bit_phoneme_forward.1} parent=11 // pred_fallthru
          _
        // Predicated region
        $region17: #{bit_phoneme_forward.1} parent=11 // pred_check
          %p380 = pneg %p95
        $region18: #{bit_phoneme_forward.1} parent=11 // pred_check_branch
          %382 = sbr.rel (%p380) target = $region20
        $region19: #{bit_phoneme_forward.1} parent=11 // pred_region
          %s384 = ssub.s32 32, 32
          %385 = vsyncadd [#allocation5], %s384
          %s387 = sshll.u32 [#allocation6], 4
          %s388 = int_to_ptr.vmem [resolvable:$true] %s387
          %390 = dma.hbm_to_vmem [thread:$0]  %s2, 32, %s388, [#allocation5]
        $region20: #{bit_phoneme_forward.1} parent=11 // pred_fallthru
          _
        // Predicated region
        $region21: #{bit_phoneme_forward.1} parent=11 // pred_check
          %p391 = pneg %p116
        $region22: #{bit_phoneme_forward.1} parent=11 // pred_check_branch
          %393 = sbr.rel (%p391) target = $region24
        $region23: #{bit_phoneme_forward.1} parent=11 // pred_region
          %s395 = ssub.s32 1024, 1024
          %396 = vsyncadd [#allocation8], %s395
          %s397 = sshll.u32 [#allocation7], 4
          %s398 = int_to_ptr.vmem [resolvable:$true] %s397
          %403 = dma.hbm_to_vmem [thread:$0]  %s3, 1024, %s398, [#allocation8], 128, 128, 8
        $region24: #{bit_phoneme_forward.1} parent=11 // pred_fallthru
          _
        // Predicated region
        $region25: #{bit_phoneme_forward.1} parent=11 // pred_check
          %p404 = pneg %p137
        $region26: #{bit_phoneme_forward.1} parent=11 // pred_check_branch
          %406 = sbr.rel (%p404) target = $region28
        $region27: #{bit_phoneme_forward.1} parent=11 // pred_region
          _
        $region28: #{bit_phoneme_forward.1} parent=11 // pred_fallthru
          _
        // Predicated region
        $region29: #{bit_phoneme_forward.1} parent=11 // pred_check
          %p407 = pneg %p158
        $region30: #{bit_phoneme_forward.1} parent=11 // pred_check_branch
          %409 = sbr.rel (%p407) target = $region32
        $region31: #{bit_phoneme_forward.1} parent=11 // pred_region
          %s411 = ssub.s32 1024, 1024
          %412 = vsyncadd [#allocation8], %s411
          %s413 = sshll.u32 [#allocation9], 4
          %s414 = int_to_ptr.vmem [resolvable:$true] %s413
          %419 = dma.hbm_to_vmem [thread:$0]  %s5, 1024, %s414, [#allocation8], 128, 128, 8
        $region32: #{bit_phoneme_forward.1} parent=11 // pred_fallthru
          _
        // Predicated region
        $region33: #{bit_phoneme_forward.1} parent=11 // pred_check
          %p420 = pneg %p179
        $region34: #{bit_phoneme_forward.1} parent=11 // pred_check_branch
          %422 = sbr.rel (%p420) target = $region36
        $region35: #{bit_phoneme_forward.1} parent=11 // pred_region
          %s424 = ssub.s32 1024, 1024
          %425 = vsyncadd [#allocation11], %s424
          %s426 = sshll.u32 [#allocation10], 4
          %s427 = int_to_ptr.vmem [resolvable:$true] %s426
          %432 = dma.hbm_to_vmem [thread:$0]  %s6, 1024, %s427, [#allocation11], 128, 128, 8
        $region36: #{bit_phoneme_forward.1} parent=11 // pred_fallthru
          _
        // Predicated region
        $region37: #{bit_phoneme_forward.1} parent=11 // pred_check
          %p433 = pneg %p200
        $region38: #{bit_phoneme_forward.1} parent=11 // pred_check_branch
          %435 = sbr.rel (%p433) target = $region40
        $region39: #{bit_phoneme_forward.1} parent=11 // pred_region
          %s437 = ssub.s32 256, 256
          %438 = vsyncadd [#allocation11], %s437
          %s439 = sshll.u32 [#allocation12], 4
          %s440 = int_to_ptr.vmem [resolvable:$true] %s439
          %445 = dma.hbm_to_vmem [thread:$0]  %s7, 256, %s440, [#allocation11], 128, 128, 8
        $region40: #{bit_phoneme_forward.1} parent=11 // pred_fallthru
          _
        // Predicated region
        $region41: #{bit_phoneme_forward.1} parent=11 // pred_check
          %p446 = pneg %p221
        $region42: #{bit_phoneme_forward.1} parent=11 // pred_check_branch
          %448 = sbr.rel (%p446) target = $region44
        $region43: #{bit_phoneme_forward.1} parent=11 // pred_region
          _
        $region44: #{bit_phoneme_forward.1} parent=11 // pred_fallthru
          _
        // Predicated region
        $region45: #{bit_phoneme_forward.1} parent=11 // pred_check
          %p449 = pneg %p242
        $region46: #{bit_phoneme_forward.1} parent=11 // pred_check_branch
          %451 = sbr.rel (%p449) target = $region48
        $region47: #{bit_phoneme_forward.1} parent=11 // pred_region
          _
        $region48: #{bit_phoneme_forward.1} parent=11 // pred_fallthru
          _
        // Predicated region
        $region49: #{bit_phoneme_forward.1} parent=11 // pred_check
          %p452 = pneg %p263
        $region50: #{bit_phoneme_forward.1} parent=11 // pred_check_branch
          %454 = sbr.rel (%p452) target = $region52
        $region51: #{bit_phoneme_forward.1} parent=11 // pred_region
          %s456 = ssub.s32 1024, 1024
          %457 = vsyncadd [#allocation14], %s456
          %s458 = sshll.u32 [#allocation13], 4
          %s459 = int_to_ptr.vmem [resolvable:$true] %s458
          %464 = dma.hbm_to_vmem [thread:$0]  %s10, 1024, %s459, [#allocation14], 128, 128, 8
        $region52: #{bit_phoneme_forward.1} parent=11 // pred_fallthru
          _
        // Predicated region
        $region53: #{bit_phoneme_forward.1} parent=11 // pred_check
          %p465 = pneg %p284
        $region54: #{bit_phoneme_forward.1} parent=11 // pred_check_branch
          %467 = sbr.rel (%p465) target = $region56
        $region55: #{bit_phoneme_forward.1} parent=11 // pred_region
          %s469 = ssub.s32 2048, 2048
          %470 = vsyncadd [#allocation14], %s469
          %s471 = sshll.u32 [#allocation15], 4
          %s472 = int_to_ptr.vmem [resolvable:$true] %s471
          %477 = dma.hbm_to_vmem [thread:$0]  %s11, 2048, %s472, [#allocation14], 128, 128, 8
        $region56: #{bit_phoneme_forward.1} parent=11 // pred_fallthru
          _
        // Predicated region
        $region57: #{bit_phoneme_forward.1} parent=11 // pred_check
          %p478 = pneg %p305
        $region58: #{bit_phoneme_forward.1} parent=11 // pred_check_branch
          %480 = sbr.rel (%p478) target = $region60
        $region59: #{bit_phoneme_forward.1} parent=11 // pred_region
          _
        $region60: #{bit_phoneme_forward.1} parent=11 // pred_fallthru
          _
        // Predicated region
        $region61: #{bit_phoneme_forward.1} parent=11 // pred_check
          %p481 = pneg %p326
        $region62: #{bit_phoneme_forward.1} parent=11 // pred_check_branch
          %483 = sbr.rel (%p481) target = $region64
        $region63: #{bit_phoneme_forward.1} parent=11 // pred_region
          _
        $region64: #{bit_phoneme_forward.1} parent=11 // pred_fallthru
          _
      $region12: #{bit_phoneme_forward.1} parent=5 // pred_fallthru
        _
      %p484 = scmp.lt.s32.totalorder %s27, 2
      // Predicated region
      $region65: #{bit_phoneme_forward.1} parent=5 // pred_check
        %p485 = pneg %p484
      $region66: #{bit_phoneme_forward.1} parent=5 // pred_check_branch
        %487 = sbr.rel (%p485) target = $region68
      $region67: #{bit_phoneme_forward.1} parent=5 // pred_region
        // Predicated region
        $region69: #{bit_phoneme_forward.1} parent=67 // pred_check
          %p488 = pneg %p47
        $region70: #{bit_phoneme_forward.1} parent=67 // pred_check_branch
          %490 = sbr.rel (%p488) target = $region72
        $region71: #{bit_phoneme_forward.1} parent=67 // pred_region
          %s491 = sand.u32 %s37, 1
          %s492 = scalar_lea.sflag [#allocation3], %s491
          %s493 = sand.u32 %s37, 1
          %s494 = smul.addr %s493, 16
          %s495 = scalar_lea.vmem [#allocation2], %s494
          %s496 = smul.u32 2, %s27
          %s498 = ssub.s32 256, 256
          %499 = vsyncadd %s492, %s498
          %s500 = smul.addr %s496, 128
          %s501 = scalar_lea.hbm %s0, %s500
          %s502 = sshll.u32 %s495, 4
          %s503 = int_to_ptr.vmem [resolvable:$true] %s502
          %508 = dma.hbm_to_vmem [thread:$0]  %s501, 256, %s503, %s492, 128, 128, 8
        $region72: #{bit_phoneme_forward.1} parent=67 // pred_fallthru
          _
      $region68: #{bit_phoneme_forward.1} parent=5 // pred_fallthru
        _
      %p509 = scmp.le.s32.totalorder 1, %s27
      %p510 = scmp.lt.s32.totalorder %s27, 3
      %p511 = pnand %p509, %p510
      %p512 = pneg %p511
      // Predicated region
      $region73: #{bit_phoneme_forward.1} parent=5 // pred_check
        _
      $region74: #{bit_phoneme_forward.1} parent=5 // pred_check_branch
        %514 = sbr.rel (%p511) target = $region76
      $region75: #{bit_phoneme_forward.1} parent=5 // pred_region
        %s515 = ssub.s32 %s27, 1
        %s516 = sand.u32 %s40, 1
        %s517 = scalar_lea.sflag [#allocation3], %s516
        %s518 = sand.u32 %s40, 1
        %s519 = smul.addr %s518, 16
        %s520 = scalar_lea.vmem [#allocation2], %s519
        // Predicated region
        $region77: #{bit_phoneme_forward.1} parent=75 // pred_check
          %p521 = pneg %p53
        $region78: #{bit_phoneme_forward.1} parent=75 // pred_check_branch
          %523 = sbr.rel (%p521) target = $region80
        $region79: #{bit_phoneme_forward.1} parent=75 // pred_region
          %524 = dma.done %s517, 256
        $region80: #{bit_phoneme_forward.1} parent=75 // pred_fallthru
          _
        // Predicated region
        $region81: #{bit_phoneme_forward.1} parent=75 // pred_check
          %p525 = pneg %p74
        $region82: #{bit_phoneme_forward.1} parent=75 // pred_check_branch
          %527 = sbr.rel (%p525) target = $region84
        $region83: #{bit_phoneme_forward.1} parent=75 // pred_region
          %528 = dma.done [#allocation5], 384
        $region84: #{bit_phoneme_forward.1} parent=75 // pred_fallthru
          _
        // Predicated region
        $region85: #{bit_phoneme_forward.1} parent=75 // pred_check
          %p529 = pneg %p95
        $region86: #{bit_phoneme_forward.1} parent=75 // pred_check_branch
          %531 = sbr.rel (%p529) target = $region88
        $region87: #{bit_phoneme_forward.1} parent=75 // pred_region
          %532 = dma.done [#allocation5], 32
        $region88: #{bit_phoneme_forward.1} parent=75 // pred_fallthru
          _
        // Predicated region
        $region89: #{bit_phoneme_forward.1} parent=75 // pred_check
          %p533 = pneg %p116
        $region90: #{bit_phoneme_forward.1} parent=75 // pred_check_branch
          %535 = sbr.rel (%p533) target = $region92
        $region91: #{bit_phoneme_forward.1} parent=75 // pred_region
          %536 = dma.done [#allocation8], 1024
        $region92: #{bit_phoneme_forward.1} parent=75 // pred_fallthru
          _
        // Predicated region
        $region93: #{bit_phoneme_forward.1} parent=75 // pred_check
          %p537 = pneg %p158
        $region94: #{bit_phoneme_forward.1} parent=75 // pred_check_branch
          %539 = sbr.rel (%p537) target = $region96
        $region95: #{bit_phoneme_forward.1} parent=75 // pred_region
          %540 = dma.done [#allocation8], 1024
        $region96: #{bit_phoneme_forward.1} parent=75 // pred_fallthru
          _
        // Predicated region
        $region97: #{bit_phoneme_forward.1} parent=75 // pred_check
          %p541 = pneg %p179
        $region98: #{bit_phoneme_forward.1} parent=75 // pred_check_branch
          %543 = sbr.rel (%p541) target = $region100
        $region99: #{bit_phoneme_forward.1} parent=75 // pred_region
          %544 = dma.done [#allocation11], 1024
        $region100: #{bit_phoneme_forward.1} parent=75 // pred_fallthru
          _
        // Predicated region
        $region101: #{bit_phoneme_forward.1} parent=75 // pred_check
          %p545 = pneg %p200
        $region102: #{bit_phoneme_forward.1} parent=75 // pred_check_branch
          %547 = sbr.rel (%p545) target = $region104
        $region103: #{bit_phoneme_forward.1} parent=75 // pred_region
          %548 = dma.done [#allocation11], 256
        $region104: #{bit_phoneme_forward.1} parent=75 // pred_fallthru
          _
        // Predicated region
        $region105: #{bit_phoneme_forward.1} parent=75 // pred_check
          %p549 = pneg %p263
        $region106: #{bit_phoneme_forward.1} parent=75 // pred_check_branch
          %551 = sbr.rel (%p549) target = $region108
        $region107: #{bit_phoneme_forward.1} parent=75 // pred_region
          %552 = dma.done [#allocation14], 1024
        $region108: #{bit_phoneme_forward.1} parent=75 // pred_fallthru
          _
        // Predicated region
        $region109: #{bit_phoneme_forward.1} parent=75 // pred_check
          %p553 = pneg %p284
        $region110: #{bit_phoneme_forward.1} parent=75 // pred_check_branch
          %555 = sbr.rel (%p553) target = $region112
        $region111: #{bit_phoneme_forward.1} parent=75 // pred_region
          %556 = dma.done [#allocation14], 2048
        $region112: #{bit_phoneme_forward.1} parent=75 // pred_fallthru
          _
        %s557 = sand.u32 %s40, 1
        %s558 = scalar_lea.sflag [#allocation3], %s557
        %s559 = sand.u32 %s40, 1
        %s560 = smul.addr %s559, 16
        %s561 = scalar_lea.vmem [#allocation2], %s560
        %p562 = pneg %p53
        %p563 = pneg %p50
        %p564 = pneg %p74
        %p565 = pneg %p71
        %p566 = pneg %p95
        %p567 = pneg %p92
        %p568 = pneg %p116
        %p569 = pneg %p113
        %p570 = pneg %p137
        %p571 = pneg %p134
        %p572 = pneg %p158
        %p573 = pneg %p155
        %p574 = pneg %p179
        %p575 = pneg %p176
        %p576 = pneg %p200
        %p577 = pneg %p197
        %p578 = pneg %p221
        %p579 = pneg %p218
        %p580 = pneg %p242
        %p581 = pneg %p239
        %p582 = pneg %p263
        %p583 = pneg %p260
        %p584 = pneg %p284
        %p585 = pneg %p281
        %p586 = pneg %p305
        %p587 = pneg %p302
        %p588 = pneg %p326
        %p589 = pneg %p323
        %p590 = pneg %p352
        %p591 = pneg %p349
        %p592 = scmp.lt.s32.totalorder %s32, 1
        %s593 = scalar_select %p592, %s32, 1
        %s594 = smul.addr %s593, 8
        %s595 = scalar_lea.vmem %s14, %s594
        %s596 = smul.u32 2, %s32
        %p597 = scmp.lt.s32.totalorder %s32, 1
        %s598 = scalar_select %p597, %s32, 1
        %s599 = smul.addr %s598, 8
        %s600 = scalar_lea.vmem %s14, %s599
        %v601 = vld [vmem:[%s520] sm:$0xff]
        %v602 = vld [vmem:[%s520 + $0x8] sm:$0xff]
        %v603 = vld [vmem:[#allocation4] sm:$0xff]
        %v604 = vld [vmem:[#allocation4 + $0x8] sm:$0xff]
        %v605 = vld [vmem:[#allocation4 + $0x10] sm:$0x3f]
        %vm606 = vcmask 179200
        %v608 = vsel %vm606, %v601, 0
        %v611 = vsel %vm606, %v602, 0
        %vm613 = vcmask 1045504
        %v615 = vsel %vm613, %v605, 0
        %617 = vmatprep.subr.mxu0 0.0
        %618 = vmatpush1.msra.mxu0 %v603
        %619 = vmatprep.subr.mxu0 0.0
        %620 = vmatpush1.msra.mxu0 %v604
        %621 = vmatprep.subr.mxu0 0.0
        %622 = vmatpush1.msra.mxu0 %v615
        %623 = vmatprep.subr.mxu0 0.0
        %624 = vmatpush1.msra.mxu0 0.0
        %625 = vmatprep.subr.mxu0 0.0
        %626 = vmatpush1.msra.mxu0 0.0
        %627 = vmatprep.subr.mxu0 0.0
        %628 = vmatpush1.msra.mxu0 0.0
        %629 = vmatprep.subr.mxu0 0.0
        %630 = vmatpush1.msra.mxu0 0.0
        %631 = vmatprep.subr.mxu0 0.0
        %632 = vmatpush1.msra.mxu0 0.0
        %633 = vmatprep.subr.mxu0 0.0
        %634 = vmatpush1.msra.mxu0 0.0
        %635 = vmatprep.subr.mxu0 0.0
        %636 = vmatpush1.msra.mxu0 0.0
        %637 = vmatprep.subr.mxu0 0.0
        %638 = vmatpush1.msra.mxu0 0.0
        %639 = vmatprep.subr.mxu0 0.0
        %640 = vmatpush1.msra.mxu0 0.0
        %641 = vmatprep.subr.mxu0 0.0
        %642 = vmatpush1.msra.mxu0 0.0
        %643 = vmatprep.subr.mxu0 0.0
        %644 = vmatpush1.msra.mxu0 0.0
        %645 = vmatprep.subr.mxu0 0.0
        %646 = vmatpush1.msra.mxu0 0.0
        %647 = vmatprep.subr.mxu0 0.0
        %648 = vmatpush1.msra.mxu0 0.0
        %649 = vmatprep.subr.mxu0 0.0
        %650 = vmatpush1.msra.mxu0 0.0
        %651 = vmatprep.subr.mxu0 0.0
        %652 = vmatpush1.msra.mxu0 0.0
        %653 = vmatprep.subr.mxu0 0.0
        %654 = vmatpush1.msra.mxu0 0.0
        %655 = vmatprep.subr.mxu0 0.0
        %656 = vmatpush1.msra.mxu0 0.0
        %657 = vmatprep.subr.mxu0 0.0
        %658 = vmatpush1.msra.mxu0 0.0
        %659 = vmatprep.subr.mxu0 0.0
        %660 = vmatpush1.msra.mxu0 0.0
        %661 = vmatprep.subr.mxu0 0.0
        %662 = vmatpush1.msra.mxu0 0.0
        %663 = vmatprep.subr.mxu0 0.0
        %664 = vmatpush1.msra.mxu0 0.0
        %665 = vmatprep.subr.mxu0 0.0
        %666 = vmatpush1.msra.mxu0 0.0
        %667 = vmatprep.subr.mxu0 0.0
        %668 = vmatpush1.msra.mxu0 0.0
        %669 = vmatprep.subr.mxu0 0.0
        %670 = vmatpush1.msra.mxu0 0.0
        %671 = vmatprep.subr.mxu0 0.0
        %672 = vmatpush1.msra.mxu0 0.0
        %673 = vmatprep.subr.mxu0 0.0
        %674 = vmatpush1.msra.mxu0 0.0
        %675 = vmatprep.subr.mxu0 0.0
        %676 = vmatpush1.msra.mxu0 0.0
        %677 = vmatprep.subr.mxu0 0.0
        %678 = vmatpush1.msra.mxu0 0.0
        %679 = vmatprep.subr.mxu0 0.0
        %680 = vmatpush1.msra.mxu0 0.0
        %681 = vmatprep.mubr.f32.mxu0 0.0
        %682 = vmatmul.mubr.f32.gmra.mrb[0].mxu0 %v608
        %v683 = vpop.f32.mrb[0].mxu0
        %v684 = vadd.f32 0.0, %v683
        %v685 = vpop.f32.mrb[0].mxu0
        %686 = vmatprep.mubr.f32.mxu0 0.0
        %687 = vmatmul.mubr.f32.gmra.mrb[0].mxu0 %v611
        %v688 = vpop.f32.mrb[0].mxu0
        %v689 = vadd.f32 0.0, %v688
        %v690 = vpop.f32.mrb[0].mxu0
        %691 = vdwg.mxu0
        %692 = vxpose.xlu0.b32.start [1/16] %v684, 128
        %693 = vxpose.xlu0.b32.cont [2/16] %v689, 128
        %694 = vxpose.xlu0.b32.cont [3/16] 0.0, 128
        %695 = vxpose.xlu0.b32.cont [4/16] 0.0, 128
        %696 = vxpose.xlu0.b32.cont [5/16] 0.0, 128
        %697 = vxpose.xlu0.b32.cont [6/16] 0.0, 128
        %698 = vxpose.xlu0.b32.cont [7/16] 0.0, 128
        %699 = vxpose.xlu0.b32.cont [8/16] 0.0, 128
        %700 = vxpose.xlu0.b32.cont [9/16] 0.0, 128
        %701 = vxpose.xlu0.b32.cont [10/16] 0.0, 128
        %702 = vxpose.xlu0.b32.cont [11/16] 0.0, 128
        %703 = vxpose.xlu0.b32.cont [12/16] 0.0, 128
        %704 = vxpose.xlu0.b32.cont [13/16] 0.0, 128
        %705 = vxpose.xlu0.b32.cont [14/16] 0.0, 128
        %706 = vxpose.xlu0.b32.cont [15/16] 0.0, 128
        %707 = vxpose.xlu0.b32.end [16/16] 0.0, 128
        %v708 = vpop.trf.xlu0
        %v709 = vpop.trf.xlu0
        %v710 = vpop.trf.xlu0
        %v711 = vpop.trf.xlu0
        %v712 = vpop.trf.xlu0
        %v713 = vpop.trf.xlu0
        %v714 = vpop.trf.xlu0
        %v715 = vpop.trf.xlu0
        %v716 = vpop.trf.xlu0
        %v717 = vpop.trf.xlu0
        %v718 = vpop.trf.xlu0
        %v719 = vpop.trf.xlu0
        %v720 = vpop.trf.xlu0
        %v721 = vpop.trf.xlu0
        %v722 = vpop.trf.xlu0
        %v723 = vpop.trf.xlu0
        %725 = vrot.lane.b32.xlu0 %v709, 16
        %v726 = vpop.permute.xlu0 %725
        %729 = vrot.lane.b32.xlu0 %v710, 32
        %v730 = vpop.permute.xlu0 %729
        %733 = vrot.lane.b32.xlu0 %v711, 48
        %v734 = vpop.permute.xlu0 %733
        %vm736 = vcmask 130048
        %v737 = vsel %vm736, %v708, %v726
        %vm738 = vcmask 261120
        %v739 = vsel %vm738, %v737, %v730
        %vm740 = vcmask 392192
        %v741 = vsel %vm740, %v739, %v734
        %v742 = vld [vmem:[#allocation6] sm:$0x3]
        %v743 = vld [vmem:[%s4] sm:$0x1f]
        %vm744 = vcmask 523264
        %v745 = vsel %vm744, %v741, 0.0
        %746 = vadd.xlane.f32.xlu0 %v745
        %v747 = vpop.xlane.xlu0 %746
        %v748 = vrcp.pop 64.0
        %v749 = vmul.f32 %v747, %v748
        %v750 = vsub.f32 %v741, %v749
        %v751 = vmul.f32 %v750, %v750
        %v752 = vsel %vm744, %v751, 0.0
        %753 = vadd.xlane.f32.xlu0 %v752
        %v754 = vpop.xlane.xlu0 %753
        %v755 = vmul.f32 %v754, %v748
        %v756 = vadd.f32 %v755, 1e-05
        %v757 = vrsqrt.pop %v756
        %v758 = vmul.f32 %v750, %v757
        %v759 = vlaneseq
        %v760 = vshrl.u32 %v759, 7
        %v761 = vsub.s32 0, %v760
        %v762 = vrot.slane %v742, %v761
        %v763 = vmul.f32 %v758, %v762
        %v764 = vlaneseq
        %v765 = vshrl.u32 %v764, 7
        %v766 = vsub.s32 1, %v765
        %v767 = vrot.slane %v742, %v766
        %v768 = vadd.f32 %v763, %v767
        %v769 = vld [vmem:[#allocation7] sm:$0xff]
        %v770 = vld [vmem:[#allocation7 + $0x8] sm:$0xff]
        %v771 = vld [vmem:[#allocation7 + $0x10] sm:$0xff]
        %v772 = vld [vmem:[#allocation7 + $0x18] sm:$0xff]
        %v773 = vld [vmem:[#allocation7 + $0x20] sm:$0xff]
        %v774 = vld [vmem:[#allocation7 + $0x28] sm:$0xff]
        %v775 = vld [vmem:[#allocation7 + $0x30] sm:$0xff]
        %v776 = vld [vmem:[#allocation7 + $0x38] sm:$0xff]
        %v777 = vlaneseq
        %v778 = vshrl.u32 %v777, 7
        %v779 = vsub.s32 0, %v778
        %v780 = vrot.slane %v743, %v779
        %v782 = vsel %vm744, %v768, 0
        %784 = vmatprep.subr.mxu0 0.0
        %785 = vmatpush1.msra.mxu0 %v769
        %786 = vmatprep.subr.mxu0 0.0
        %787 = vmatpush1.msra.mxu0 %v770
        %788 = vmatprep.subr.mxu0 0.0
        %789 = vmatpush1.msra.mxu0 %v771
        %790 = vmatprep.subr.mxu0 0.0
        %791 = vmatpush1.msra.mxu0 %v772
        %792 = vmatprep.subr.mxu0 0.0
        %793 = vmatpush1.msra.mxu0 %v773
        %794 = vmatprep.subr.mxu0 0.0
        %795 = vmatpush1.msra.mxu0 %v774
        %796 = vmatprep.subr.mxu0 0.0
        %797 = vmatpush1.msra.mxu0 %v775
        %798 = vmatprep.subr.mxu0 0.0
        %799 = vmatpush1.msra.mxu0 %v776
        %800 = vmatprep.subr.mxu0 0.0
        %801 = vmatpush1.msra.mxu0 0.0
        %802 = vmatprep.subr.mxu0 0.0
        %803 = vmatpush1.msra.mxu0 0.0
        %804 = vmatprep.subr.mxu0 0.0
        %805 = vmatpush1.msra.mxu0 0.0
        %806 = vmatprep.subr.mxu0 0.0
        %807 = vmatpush1.msra.mxu0 0.0
        %808 = vmatprep.subr.mxu0 0.0
        %809 = vmatpush1.msra.mxu0 0.0
        %810 = vmatprep.subr.mxu0 0.0
        %811 = vmatpush1.msra.mxu0 0.0
        %812 = vmatprep.subr.mxu0 0.0
        %813 = vmatpush1.msra.mxu0 0.0
        %814 = vmatprep.subr.mxu0 0.0
        %815 = vmatpush1.msra.mxu0 0.0
        %816 = vmatprep.subr.mxu0 0.0
        %817 = vmatpush1.msra.mxu0 0.0
        %818 = vmatprep.subr.mxu0 0.0
        %819 = vmatpush1.msra.mxu0 0.0
        %820 = vmatprep.subr.mxu0 0.0
        %821 = vmatpush1.msra.mxu0 0.0
        %822 = vmatprep.subr.mxu0 0.0
        %823 = vmatpush1.msra.mxu0 0.0
        %824 = vmatprep.subr.mxu0 0.0
        %825 = vmatpush1.msra.mxu0 0.0
        %826 = vmatprep.subr.mxu0 0.0
        %827 = vmatpush1.msra.mxu0 0.0
        %828 = vmatprep.subr.mxu0 0.0
        %829 = vmatpush1.msra.mxu0 0.0
        %830 = vmatprep.subr.mxu0 0.0
        %831 = vmatpush1.msra.mxu0 0.0
        %832 = vmatprep.subr.mxu0 0.0
        %833 = vmatpush1.msra.mxu0 0.0
        %834 = vmatprep.subr.mxu0 0.0
        %835 = vmatpush1.msra.mxu0 0.0
        %836 = vmatprep.subr.mxu0 0.0
        %837 = vmatpush1.msra.mxu0 0.0
        %838 = vmatprep.subr.mxu0 0.0
        %839 = vmatpush1.msra.mxu0 0.0
        %840 = vmatprep.subr.mxu0 0.0
        %841 = vmatpush1.msra.mxu0 0.0
        %842 = vmatprep.subr.mxu0 0.0
        %843 = vmatpush1.msra.mxu0 0.0
        %844 = vmatprep.subr.mxu0 0.0
        %845 = vmatpush1.msra.mxu0 0.0
        %846 = vmatprep.subr.mxu0 0.0
        %847 = vmatpush1.msra.mxu0 0.0
        %848 = vmatprep.mubr.f32.mxu0 0.0
        %849 = vmatmul.mubr.f32.gmra.mrb[0].mxu0 %v782
        %v850 = vpop.f32.mrb[0].mxu0
        %v851 = vadd.f32 %v780, %v850
        %v852 = vpop.f32.mrb[0].mxu0
        %853 = vdwg.mxu0
        %v854 = vsel %vm738, %v851, 0.0
        %855 = vadd.xlane.f32.xlu0 %v854
        %v856 = vpop.xlane.xlu0 %855
        %v857 = vrcp.pop 32.0
        %v858 = vmul.f32 %v856, %v857
        %v859 = vsub.f32 %v851, %v858
        %v860 = vmul.f32 %v859, %v859
        %v861 = vsel %vm738, %v860, 0.0
        %862 = vadd.xlane.f32.xlu0 %v861
        %v863 = vpop.xlane.xlu0 %862
        %v864 = vmul.f32 %v863, %v857
        %v865 = vadd.f32 %v864, 1e-05
        %v866 = vrsqrt.pop %v865
        %v867 = vmul.f32 %v859, %v866
        %v868 = vlaneseq
        %v869 = vshrl.u32 %v868, 7
        %v870 = vsub.s32 1, %v869
        %v871 = vrot.slane %v743, %v870
        %v872 = vmul.f32 %v867, %v871
        %v873 = vlaneseq
        %v874 = vshrl.u32 %v873, 7
        %v875 = vsub.s32 2, %v874
        %v876 = vrot.slane %v743, %v875
        %v877 = vadd.f32 %v872, %v876
        %v878 = vld [vmem:[%s8] sm:$0x3f]
        %v879 = vld [vmem:[#allocation12] sm:$0xff]
        %v880 = vsel %vm738, %v877, 0.0
        %881 = vadd.xlane.f32.xlu0 %v880
        %v882 = vpop.xlane.xlu0 %881
        %v883 = vmul.f32 %v882, %v857
        %v884 = vsub.f32 %v877, %v883
        %v885 = vmul.f32 %v884, %v884
        %v886 = vsel %vm738, %v885, 0.0
        %887 = vadd.xlane.f32.xlu0 %v886
        %v888 = vpop.xlane.xlu0 %887
        %v889 = vmul.f32 %v888, %v857
        %v890 = vadd.f32 %v889, 1e-05
        %v891 = vrsqrt.pop %v890
        %v892 = vmul.f32 %v884, %v891
        %v893 = vlaneseq
        %v894 = vshrl.u32 %v893, 7
        %v895 = vsub.s32 0, %v894
        %v896 = vrot.slane %v878, %v895
        %v897 = vmul.f32 %v892, %v896
        %v898 = vlaneseq
        %v899 = vshrl.u32 %v898, 7
        %v900 = vsub.s32 1, %v899
        %v901 = vrot.slane %v878, %v900
        %v902 = vadd.f32 %v897, %v901
        %v903 = vld [vmem:[#allocation9] sm:$0xff]
        %v904 = vld [vmem:[#allocation9 + $0x8] sm:$0xff]
        %v905 = vld [vmem:[#allocation9 + $0x10] sm:$0xff]
        %v906 = vld [vmem:[#allocation9 + $0x18] sm:$0xff]
        %v908 = vsel %vm738, %v902, 0
        %910 = vmatprep.subr.mxu0 0.0
        %911 = vmatpush1.msra.mxu0 %v903
        %912 = vmatprep.subr.mxu0 0.0
        %913 = vmatpush1.msra.mxu0 %v904
        %914 = vmatprep.subr.mxu0 0.0
        %915 = vmatpush1.msra.mxu0 %v905
        %916 = vmatprep.subr.mxu0 0.0
        %917 = vmatpush1.msra.mxu0 %v906
        %918 = vmatprep.subr.mxu0 0.0
        %919 = vmatpush1.msra.mxu0 0.0
        %920 = vmatprep.subr.mxu0 0.0
        %921 = vmatpush1.msra.mxu0 0.0
        %922 = vmatprep.subr.mxu0 0.0
        %923 = vmatpush1.msra.mxu0 0.0
        %924 = vmatprep.subr.mxu0 0.0
        %925 = vmatpush1.msra.mxu0 0.0
        %926 = vmatprep.subr.mxu0 0.0
        %927 = vmatpush1.msra.mxu0 0.0
        %928 = vmatprep.subr.mxu0 0.0
        %929 = vmatpush1.msra.mxu0 0.0
        %930 = vmatprep.subr.mxu0 0.0
        %931 = vmatpush1.msra.mxu0 0.0
        %932 = vmatprep.subr.mxu0 0.0
        %933 = vmatpush1.msra.mxu0 0.0
        %934 = vmatprep.subr.mxu0 0.0
        %935 = vmatpush1.msra.mxu0 0.0
        %936 = vmatprep.subr.mxu0 0.0
        %937 = vmatpush1.msra.mxu0 0.0
        %938 = vmatprep.subr.mxu0 0.0
        %939 = vmatpush1.msra.mxu0 0.0
        %940 = vmatprep.subr.mxu0 0.0
        %941 = vmatpush1.msra.mxu0 0.0
        %942 = vmatprep.subr.mxu0 0.0
        %943 = vmatpush1.msra.mxu0 0.0
        %944 = vmatprep.subr.mxu0 0.0
        %945 = vmatpush1.msra.mxu0 0.0
        %946 = vmatprep.subr.mxu0 0.0
        %947 = vmatpush1.msra.mxu0 0.0
        %948 = vmatprep.subr.mxu0 0.0
        %949 = vmatpush1.msra.mxu0 0.0
        %950 = vmatprep.subr.mxu0 0.0
        %951 = vmatpush1.msra.mxu0 0.0
        %952 = vmatprep.subr.mxu0 0.0
        %953 = vmatpush1.msra.mxu0 0.0
        %954 = vmatprep.subr.mxu0 0.0
        %955 = vmatpush1.msra.mxu0 0.0
        %956 = vmatprep.subr.mxu0 0.0
        %957 = vmatpush1.msra.mxu0 0.0
        %958 = vmatprep.subr.mxu0 0.0
        %959 = vmatpush1.msra.mxu0 0.0
        %960 = vmatprep.subr.mxu0 0.0
        %961 = vmatpush1.msra.mxu0 0.0
        %962 = vmatprep.subr.mxu0 0.0
        %963 = vmatpush1.msra.mxu0 0.0
        %964 = vmatprep.subr.mxu0 0.0
        %965 = vmatpush1.msra.mxu0 0.0
        %966 = vmatprep.subr.mxu0 0.0
        %967 = vmatpush1.msra.mxu0 0.0
        %968 = vmatprep.subr.mxu0 0.0
        %969 = vmatpush1.msra.mxu0 0.0
        %970 = vmatprep.subr.mxu0 0.0
        %971 = vmatpush1.msra.mxu0 0.0
        %972 = vmatprep.subr.mxu0 0.0
        %973 = vmatpush1.msra.mxu0 0.0
        %974 = vmatprep.mubr.f32.mxu0 0.0
        %975 = vmatmul.mubr.f32.gmra.mrb[0].mxu0 %v908
        %v976 = vpop.f32.mrb[0].mxu0
        %v977 = vadd.f32 0.0, %v976
        %v978 = vpop.f32.mrb[0].mxu0
        %979 = vdwg.mxu0
        %981 = vrot.lane.b32.xlu0 %v977, 96
        %v982 = vpop.permute.xlu0 %981
        %v983 = vsel %vm736, %v977, 0
        %v985 = vsel %vm736, %v982, 0
        %987 = vmatprep.subr.mxu0 0.0
        %988 = vmatpush1.xpose.msra.mxu0 %v985
        %989 = vmatprep.subr.mxu0 0.0
        %990 = vmatpush1.xpose.msra.mxu0 0.0
        %991 = vmatprep.subr.mxu0 0.0
        %992 = vmatpush1.xpose.msra.mxu0 0.0
        %993 = vmatprep.subr.mxu0 0.0
        %994 = vmatpush1.xpose.msra.mxu0 0.0
        %995 = vmatprep.subr.mxu0 0.0
        %996 = vmatpush1.xpose.msra.mxu0 0.0
        %997 = vmatprep.subr.mxu0 0.0
        %998 = vmatpush1.xpose.msra.mxu0 0.0
        %999 = vmatprep.subr.mxu0 0.0
        %1000 = vmatpush1.xpose.msra.mxu0 0.0
        %1001 = vmatprep.subr.mxu0 0.0
        %1002 = vmatpush1.xpose.msra.mxu0 0.0
        %1003 = vmatprep.subr.mxu0 0.0
        %1004 = vmatpush1.xpose.msra.mxu0 0.0
        %1005 = vmatprep.subr.mxu0 0.0
        %1006 = vmatpush1.xpose.msra.mxu0 0.0
        %1007 = vmatprep.subr.mxu0 0.0
        %1008 = vmatpush1.xpose.msra.mxu0 0.0
        %1009 = vmatprep.subr.mxu0 0.0
        %1010 = vmatpush1.xpose.msra.mxu0 0.0
        %1011 = vmatprep.subr.mxu0 0.0
        %1012 = vmatpush1.xpose.msra.mxu0 0.0
        %1013 = vmatprep.subr.mxu0 0.0
        %1014 = vmatpush1.xpose.msra.mxu0 0.0
        %1015 = vmatprep.subr.mxu0 0.0
        %1016 = vmatpush1.xpose.msra.mxu0 0.0
        %1017 = vmatprep.subr.mxu0 0.0
        %1018 = vmatpush1.xpose.msra.mxu0 0.0
        %1019 = vmatprep.subr.mxu0 0.0
        %1020 = vmatpush1.xpose.msra.mxu0 0.0
        %1021 = vmatprep.subr.mxu0 0.0
        %1022 = vmatpush1.xpose.msra.mxu0 0.0
        %1023 = vmatprep.subr.mxu0 0.0
        %1024 = vmatpush1.xpose.msra.mxu0 0.0
        %1025 = vmatprep.subr.mxu0 0.0
        %1026 = vmatpush1.xpose.msra.mxu0 0.0
        %1027 = vmatprep.subr.mxu0 0.0
        %1028 = vmatpush1.xpose.msra.mxu0 0.0
        %1029 = vmatprep.subr.mxu0 0.0
        %1030 = vmatpush1.xpose.msra.mxu0 0.0
        %1031 = vmatprep.subr.mxu0 0.0
        %1032 = vmatpush1.xpose.msra.mxu0 0.0
        %1033 = vmatprep.subr.mxu0 0.0
        %1034 = vmatpush1.xpose.msra.mxu0 0.0
        %1035 = vmatprep.subr.mxu0 0.0
        %1036 = vmatpush1.xpose.msra.mxu0 0.0
        %1037 = vmatprep.subr.mxu0 0.0
        %1038 = vmatpush1.xpose.msra.mxu0 0.0
        %1039 = vmatprep.subr.mxu0 0.0
        %1040 = vmatpush1.xpose.msra.mxu0 0.0
        %1041 = vmatprep.subr.mxu0 0.0
        %1042 = vmatpush1.xpose.msra.mxu0 0.0
        %1043 = vmatprep.subr.mxu0 0.0
        %1044 = vmatpush1.xpose.msra.mxu0 0.0
        %1045 = vmatprep.subr.mxu0 0.0
        %1046 = vmatpush1.xpose.msra.mxu0 0.0
        %1047 = vmatprep.subr.mxu0 0.0
        %1048 = vmatpush1.xpose.msra.mxu0 0.0
        %1049 = vmatprep.subr.mxu0 0.0
        %1050 = vmatpush1.xpose.msra.mxu0 0.0
        %1051 = vmatprep.mubr.f32.mxu0 0.0
        %1052 = vmatmul.mubr.f32.gmra.mrb[0].mxu0 %v983
        %v1053 = vpop.f32.mrb[0].mxu0
        %v1054 = vadd.f32 0.0, %v1053
        %v1055 = vpop.f32.mrb[0].mxu0
        %1056 = vdwg.mxu0
        %v1057 = vmul.f32 %v1054, 0.25
        %v1058 = vadd.f32 %v1057, %v879
        %vm1059 = vcmask 64512
        %v1060 = vsel %vm1059, %v1058, -inf
        %1061 = vmax.xlane.f32.xlu0 %v1060
        %v1062 = vpop.xlane.xlu0 %1061
        %v1063 = vsub.f32 %v1058, %v1062
        %v1064 = vmul.f32 %v1063, 1.442695
        %v1065 = vpow.pop %v1064
        %v1066 = vsel %vm1059, %v1065, 0.0
        %1067 = vadd.xlane.f32.xlu0 %v1066
        %v1068 = vpop.xlane.xlu0 %1067
        %v1069 = vrcp.pop %v1068
        %v1070 = vmul.f32 %v1065, %v1069
        %1071 = vrot.lane.b32.xlu0 %v977, 64
        %v1072 = vpop.permute.xlu0 %1071
        %v1075 = vsel %vm1059, %v1070, 0
        %1077 = vmatprep.subr.mxu0 0.0
        %1078 = vmatpush1.msra.mxu0 %v1072
        %1079 = vmatprep.subr.mxu0 0.0
        %1080 = vmatpush1.msra.mxu0 0.0
        %1081 = vmatprep.subr.mxu0 0.0
        %1082 = vmatpush1.msra.mxu0 0.0
        %1083 = vmatprep.subr.mxu0 0.0
        %1084 = vmatpush1.msra.mxu0 0.0
        %1085 = vmatprep.subr.mxu0 0.0
        %1086 = vmatpush1.msra.mxu0 0.0
        %1087 = vmatprep.subr.mxu0 0.0
        %1088 = vmatpush1.msra.mxu0 0.0
        %1089 = vmatprep.subr.mxu0 0.0
        %1090 = vmatpush1.msra.mxu0 0.0
        %1091 = vmatprep.subr.mxu0 0.0
        %1092 = vmatpush1.msra.mxu0 0.0
        %1093 = vmatprep.subr.mxu0 0.0
        %1094 = vmatpush1.msra.mxu0 0.0
        %1095 = vmatprep.subr.mxu0 0.0
        %1096 = vmatpush1.msra.mxu0 0.0
        %1097 = vmatprep.subr.mxu0 0.0
        %1098 = vmatpush1.msra.mxu0 0.0
        %1099 = vmatprep.subr.mxu0 0.0
        %1100 = vmatpush1.msra.mxu0 0.0
        %1101 = vmatprep.subr.mxu0 0.0
        %1102 = vmatpush1.msra.mxu0 0.0
        %1103 = vmatprep.subr.mxu0 0.0
        %1104 = vmatpush1.msra.mxu0 0.0
        %1105 = vmatprep.subr.mxu0 0.0
        %1106 = vmatpush1.msra.mxu0 0.0
        %1107 = vmatprep.subr.mxu0 0.0
        %1108 = vmatpush1.msra.mxu0 0.0
        %1109 = vmatprep.subr.mxu0 0.0
        %1110 = vmatpush1.msra.mxu0 0.0
        %1111 = vmatprep.subr.mxu0 0.0
        %1112 = vmatpush1.msra.mxu0 0.0
        %1113 = vmatprep.subr.mxu0 0.0
        %1114 = vmatpush1.msra.mxu0 0.0
        %1115 = vmatprep.subr.mxu0 0.0
        %1116 = vmatpush1.msra.mxu0 0.0
        %1117 = vmatprep.subr.mxu0 0.0
        %1118 = vmatpush1.msra.mxu0 0.0
        %1119 = vmatprep.subr.mxu0 0.0
        %1120 = vmatpush1.msra.mxu0 0.0
        %1121 = vmatprep.subr.mxu0 0.0
        %1122 = vmatpush1.msra.mxu0 0.0
        %1123 = vmatprep.subr.mxu0 0.0
        %1124 = vmatpush1.msra.mxu0 0.0
        %1125 = vmatprep.subr.mxu0 0.0
        %1126 = vmatpush1.msra.mxu0 0.0
        %1127 = vmatprep.subr.mxu0 0.0
        %1128 = vmatpush1.msra.mxu0 0.0
        %1129 = vmatprep.subr.mxu0 0.0
        %1130 = vmatpush1.msra.mxu0 0.0
        %1131 = vmatprep.subr.mxu0 0.0
        %1132 = vmatpush1.msra.mxu0 0.0
        %1133 = vmatprep.subr.mxu0 0.0
        %1134 = vmatpush1.msra.mxu0 0.0
        %1135 = vmatprep.subr.mxu0 0.0
        %1136 = vmatpush1.msra.mxu0 0.0
        %1137 = vmatprep.subr.mxu0 0.0
        %1138 = vmatpush1.msra.mxu0 0.0
        %1139 = vmatprep.subr.mxu0 0.0
        %1140 = vmatpush1.msra.mxu0 0.0
        %1141 = vmatprep.mubr.f32.mxu0 0.0
        %1142 = vmatmul.mubr.f32.gmra.mrb[0].mxu0 %v1075
        %v1143 = vpop.f32.mrb[0].mxu0
        %v1144 = vadd.f32 0.0, %v1143
        %v1145 = vpop.f32.mrb[0].mxu0
        %1146 = vdwg.mxu0
        %1147 = vrot.lane.b32.xlu0 %v977, 112
        %v1148 = vpop.permute.xlu0 %1147
        %1149 = vrot.lane.b32.xlu0 %v977, 80
        %v1150 = vpop.permute.xlu0 %1149
        %v1151 = vsel %vm736, %v1148, 0
        %v1153 = vsel %vm736, %v1150, 0
        %1155 = vmatprep.subr.mxu0 0.0
        %1156 = vmatpush1.xpose.msra.mxu0 %v1153
        %1157 = vmatprep.subr.mxu0 0.0
        %1158 = vmatpush1.xpose.msra.mxu0 0.0
        %1159 = vmatprep.subr.mxu0 0.0
        %1160 = vmatpush1.xpose.msra.mxu0 0.0
        %1161 = vmatprep.subr.mxu0 0.0
        %1162 = vmatpush1.xpose.msra.mxu0 0.0
        %1163 = vmatprep.subr.mxu0 0.0
        %1164 = vmatpush1.xpose.msra.mxu0 0.0
        %1165 = vmatprep.subr.mxu0 0.0
        %1166 = vmatpush1.xpose.msra.mxu0 0.0
        %1167 = vmatprep.subr.mxu0 0.0
        %1168 = vmatpush1.xpose.msra.mxu0 0.0
        %1169 = vmatprep.subr.mxu0 0.0
        %1170 = vmatpush1.xpose.msra.mxu0 0.0
        %1171 = vmatprep.subr.mxu0 0.0
        %1172 = vmatpush1.xpose.msra.mxu0 0.0
        %1173 = vmatprep.subr.mxu0 0.0
        %1174 = vmatpush1.xpose.msra.mxu0 0.0
        %1175 = vmatprep.subr.mxu0 0.0
        %1176 = vmatpush1.xpose.msra.mxu0 0.0
        %1177 = vmatprep.subr.mxu0 0.0
        %1178 = vmatpush1.xpose.msra.mxu0 0.0
        %1179 = vmatprep.subr.mxu0 0.0
        %1180 = vmatpush1.xpose.msra.mxu0 0.0
        %1181 = vmatprep.subr.mxu0 0.0
        %1182 = vmatpush1.xpose.msra.mxu0 0.0
        %1183 = vmatprep.subr.mxu0 0.0
        %1184 = vmatpush1.xpose.msra.mxu0 0.0
        %1185 = vmatprep.subr.mxu0 0.0
        %1186 = vmatpush1.xpose.msra.mxu0 0.0
        %1187 = vmatprep.subr.mxu0 0.0
        %1188 = vmatpush1.xpose.msra.mxu0 0.0
        %1189 = vmatprep.subr.mxu0 0.0
        %1190 = vmatpush1.xpose.msra.mxu0 0.0
        %1191 = vmatprep.subr.mxu0 0.0
        %1192 = vmatpush1.xpose.msra.mxu0 0.0
        %1193 = vmatprep.subr.mxu0 0.0
        %1194 = vmatpush1.xpose.msra.mxu0 0.0
        %1195 = vmatprep.subr.mxu0 0.0
        %1196 = vmatpush1.xpose.msra.mxu0 0.0
        %1197 = vmatprep.subr.mxu0 0.0
        %1198 = vmatpush1.xpose.msra.mxu0 0.0
        %1199 = vmatprep.subr.mxu0 0.0
        %1200 = vmatpush1.xpose.msra.mxu0 0.0
        %1201 = vmatprep.subr.mxu0 0.0
        %1202 = vmatpush1.xpose.msra.mxu0 0.0
        %1203 = vmatprep.subr.mxu0 0.0
        %1204 = vmatpush1.xpose.msra.mxu0 0.0
        %1205 = vmatprep.subr.mxu0 0.0
        %1206 = vmatpush1.xpose.msra.mxu0 0.0
        %1207 = vmatprep.subr.mxu0 0.0
        %1208 = vmatpush1.xpose.msra.mxu0 0.0
        %1209 = vmatprep.subr.mxu0 0.0
        %1210 = vmatpush1.xpose.msra.mxu0 0.0
        %1211 = vmatprep.subr.mxu0 0.0
        %1212 = vmatpush1.xpose.msra.mxu0 0.0
        %1213 = vmatprep.subr.mxu0 0.0
        %1214 = vmatpush1.xpose.msra.mxu0 0.0
        %1215 = vmatprep.subr.mxu0 0.0
        %1216 = vmatpush1.xpose.msra.mxu0 0.0
        %1217 = vmatprep.subr.mxu0 0.0
        %1218 = vmatpush1.xpose.msra.mxu0 0.0
        %1219 = vmatprep.mubr.f32.mxu0 0.0
        %1220 = vmatmul.mubr.f32.gmra.mrb[0].mxu0 %v1151
        %v1221 = vpop.f32.mrb[0].mxu0
        %v1222 = vadd.f32 0.0, %v1221
        %v1223 = vpop.f32.mrb[0].mxu0
        %1224 = vdwg.mxu0
        %v1225 = vmul.f32 %v1222, 0.25
        %v1226 = vadd.f32 %v1225, %v879
        %v1227 = vsel %vm1059, %v1226, -inf
        %1228 = vmax.xlane.f32.xlu0 %v1227
        %v1229 = vpop.xlane.xlu0 %1228
        %v1230 = vsub.f32 %v1226, %v1229
        %v1231 = vmul.f32 %v1230, 1.442695
        %v1232 = vpow.pop %v1231
        %v1233 = vsel %vm1059, %v1232, 0.0
        %1234 = vadd.xlane.f32.xlu0 %v1233
        %v1235 = vpop.xlane.xlu0 %1234
        %v1236 = vrcp.pop %v1235
        %v1237 = vmul.f32 %v1232, %v1236
        %1238 = vrot.lane.b32.xlu0 %v977, 48
        %v1239 = vpop.permute.xlu0 %1238
        %v1242 = vsel %vm1059, %v1237, 0
        %1244 = vmatprep.subr.mxu0 0.0
        %1245 = vmatpush1.msra.mxu0 %v1239
        %1246 = vmatprep.subr.mxu0 0.0
        %1247 = vmatpush1.msra.mxu0 0.0
        %1248 = vmatprep.subr.mxu0 0.0
        %1249 = vmatpush1.msra.mxu0 0.0
        %1250 = vmatprep.subr.mxu0 0.0
        %1251 = vmatpush1.msra.mxu0 0.0
        %1252 = vmatprep.subr.mxu0 0.0
        %1253 = vmatpush1.msra.mxu0 0.0
        %1254 = vmatprep.subr.mxu0 0.0
        %1255 = vmatpush1.msra.mxu0 0.0
        %1256 = vmatprep.subr.mxu0 0.0
        %1257 = vmatpush1.msra.mxu0 0.0
        %1258 = vmatprep.subr.mxu0 0.0
        %1259 = vmatpush1.msra.mxu0 0.0
        %1260 = vmatprep.subr.mxu0 0.0
        %1261 = vmatpush1.msra.mxu0 0.0
        %1262 = vmatprep.subr.mxu0 0.0
        %1263 = vmatpush1.msra.mxu0 0.0
        %1264 = vmatprep.subr.mxu0 0.0
        %1265 = vmatpush1.msra.mxu0 0.0
        %1266 = vmatprep.subr.mxu0 0.0
        %1267 = vmatpush1.msra.mxu0 0.0
        %1268 = vmatprep.subr.mxu0 0.0
        %1269 = vmatpush1.msra.mxu0 0.0
        %1270 = vmatprep.subr.mxu0 0.0
        %1271 = vmatpush1.msra.mxu0 0.0
        %1272 = vmatprep.subr.mxu0 0.0
        %1273 = vmatpush1.msra.mxu0 0.0
        %1274 = vmatprep.subr.mxu0 0.0
        %1275 = vmatpush1.msra.mxu0 0.0
        %1276 = vmatprep.subr.mxu0 0.0
        %1277 = vmatpush1.msra.mxu0 0.0
        %1278 = vmatprep.subr.mxu0 0.0
        %1279 = vmatpush1.msra.mxu0 0.0
        %1280 = vmatprep.subr.mxu0 0.0
        %1281 = vmatpush1.msra.mxu0 0.0
        %1282 = vmatprep.subr.mxu0 0.0
        %1283 = vmatpush1.msra.mxu0 0.0
        %1284 = vmatprep.subr.mxu0 0.0
        %1285 = vmatpush1.msra.mxu0 0.0
        %1286 = vmatprep.subr.mxu0 0.0
        %1287 = vmatpush1.msra.mxu0 0.0
        %1288 = vmatprep.subr.mxu0 0.0
        %1289 = vmatpush1.msra.mxu0 0.0
        %1290 = vmatprep.subr.mxu0 0.0
        %1291 = vmatpush1.msra.mxu0 0.0
        %1292 = vmatprep.subr.mxu0 0.0
        %1293 = vmatpush1.msra.mxu0 0.0
        %1294 = vmatprep.subr.mxu0 0.0
        %1295 = vmatpush1.msra.mxu0 0.0
        %1296 = vmatprep.subr.mxu0 0.0
        %1297 = vmatpush1.msra.mxu0 0.0
        %1298 = vmatprep.subr.mxu0 0.0
        %1299 = vmatpush1.msra.mxu0 0.0
        %1300 = vmatprep.subr.mxu0 0.0
        %1301 = vmatpush1.msra.mxu0 0.0
        %1302 = vmatprep.subr.mxu0 0.0
        %1303 = vmatpush1.msra.mxu0 0.0
        %1304 = vmatprep.subr.mxu0 0.0
        %1305 = vmatpush1.msra.mxu0 0.0
        %1306 = vmatprep.subr.mxu0 0.0
        %1307 = vmatpush1.msra.mxu0 0.0
        %1308 = vmatprep.mubr.f32.mxu0 0.0
        %1309 = vmatmul.mubr.f32.gmra.mrb[0].mxu0 %v1242
        %v1310 = vpop.f32.mrb[0].mxu0
        %v1311 = vadd.f32 0.0, %v1310
        %v1312 = vpop.f32.mrb[0].mxu0
        %1313 = vdwg.mxu0
        %1315 = vrot.lane.b32.xlu0 %v1311, 16
        %v1316 = vpop.permute.xlu0 %1315
        %v1318 = vsel %vm736, %v1144, %v1316
        %v1319 = vld [vmem:[#allocation10] sm:$0xff]
        %v1320 = vld [vmem:[#allocation10 + $0x8] sm:$0xff]
        %v1321 = vld [vmem:[#allocation10 + $0x10] sm:$0xff]
        %v1322 = vld [vmem:[#allocation10 + $0x18] sm:$0xff]
        %v1324 = vsel %vm738, %v1318, 0
        %1326 = vmatprep.subr.mxu0 0.0
        %1327 = vmatpush1.msra.mxu0 %v1319
        %1328 = vmatprep.subr.mxu0 0.0
        %1329 = vmatpush1.msra.mxu0 %v1320
        %1330 = vmatprep.subr.mxu0 0.0
        %1331 = vmatpush1.msra.mxu0 %v1321
        %1332 = vmatprep.subr.mxu0 0.0
        %1333 = vmatpush1.msra.mxu0 %v1322
        %1334 = vmatprep.subr.mxu0 0.0
        %1335 = vmatpush1.msra.mxu0 0.0
        %1336 = vmatprep.subr.mxu0 0.0
        %1337 = vmatpush1.msra.mxu0 0.0
        %1338 = vmatprep.subr.mxu0 0.0
        %1339 = vmatpush1.msra.mxu0 0.0
        %1340 = vmatprep.subr.mxu0 0.0
        %1341 = vmatpush1.msra.mxu0 0.0
        %1342 = vmatprep.subr.mxu0 0.0
        %1343 = vmatpush1.msra.mxu0 0.0
        %1344 = vmatprep.subr.mxu0 0.0
        %1345 = vmatpush1.msra.mxu0 0.0
        %1346 = vmatprep.subr.mxu0 0.0
        %1347 = vmatpush1.msra.mxu0 0.0
        %1348 = vmatprep.subr.mxu0 0.0
        %1349 = vmatpush1.msra.mxu0 0.0
        %1350 = vmatprep.subr.mxu0 0.0
        %1351 = vmatpush1.msra.mxu0 0.0
        %1352 = vmatprep.subr.mxu0 0.0
        %1353 = vmatpush1.msra.mxu0 0.0
        %1354 = vmatprep.subr.mxu0 0.0
        %1355 = vmatpush1.msra.mxu0 0.0
        %1356 = vmatprep.subr.mxu0 0.0
        %1357 = vmatpush1.msra.mxu0 0.0
        %1358 = vmatprep.subr.mxu0 0.0
        %1359 = vmatpush1.msra.mxu0 0.0
        %1360 = vmatprep.subr.mxu0 0.0
        %1361 = vmatpush1.msra.mxu0 0.0
        %1362 = vmatprep.subr.mxu0 0.0
        %1363 = vmatpush1.msra.mxu0 0.0
        %1364 = vmatprep.subr.mxu0 0.0
        %1365 = vmatpush1.msra.mxu0 0.0
        %1366 = vmatprep.subr.mxu0 0.0
        %1367 = vmatpush1.msra.mxu0 0.0
        %1368 = vmatprep.subr.mxu0 0.0
        %1369 = vmatpush1.msra.mxu0 0.0
        %1370 = vmatprep.subr.mxu0 0.0
        %1371 = vmatpush1.msra.mxu0 0.0
        %1372 = vmatprep.subr.mxu0 0.0
        %1373 = vmatpush1.msra.mxu0 0.0
        %1374 = vmatprep.subr.mxu0 0.0
        %1375 = vmatpush1.msra.mxu0 0.0
        %1376 = vmatprep.subr.mxu0 0.0
        %1377 = vmatpush1.msra.mxu0 0.0
        %1378 = vmatprep.subr.mxu0 0.0
        %1379 = vmatpush1.msra.mxu0 0.0
        %1380 = vmatprep.subr.mxu0 0.0
        %1381 = vmatpush1.msra.mxu0 0.0
        %1382 = vmatprep.subr.mxu0 0.0
        %1383 = vmatpush1.msra.mxu0 0.0
        %1384 = vmatprep.subr.mxu0 0.0
        %1385 = vmatpush1.msra.mxu0 0.0
        %1386 = vmatprep.subr.mxu0 0.0
        %1387 = vmatpush1.msra.mxu0 0.0
        %1388 = vmatprep.subr.mxu0 0.0
        %1389 = vmatpush1.msra.mxu0 0.0
        %1390 = vmatprep.mubr.f32.mxu0 0.0
        %1391 = vmatmul.mubr.f32.gmra.mrb[0].mxu0 %v1324
        %v1392 = vpop.f32.mrb[0].mxu0
        %v1393 = vadd.f32 0.0, %v1392
        %v1394 = vpop.f32.mrb[0].mxu0
        %1395 = vdwg.mxu0
        %v1396 = vadd.f32 %v877, %v1393
        %v1397 = vlaneseq
        %v1398 = vshrl.u32 %v1397, 7
        %v1399 = vsub.s32 2, %v1398
        %v1400 = vrot.slane %v878, %v1399
        %v1401 = vadd.f32 %v1396, %v1400
        %v1402 = vsel %vm738, %v1401, 0.0
        %1403 = vadd.xlane.f32.xlu0 %v1402
        %v1404 = vpop.xlane.xlu0 %1403
        %v1405 = vmul.f32 %v1404, %v857
        %v1406 = vsub.f32 %v1401, %v1405
        %v1407 = vmul.f32 %v1406, %v1406
        %v1408 = vsel %vm738, %v1407, 0.0
        %1409 = vadd.xlane.f32.xlu0 %v1408
        %v1410 = vpop.xlane.xlu0 %1409
        %v1411 = vmul.f32 %v1410, %v857
        %v1412 = vadd.f32 %v1411, 1e-05
        %v1413 = vrsqrt.pop %v1412
        %v1414 = vmul.f32 %v1406, %v1413
        %v1415 = vlaneseq
        %v1416 = vshrl.u32 %v1415, 7
        %v1417 = vsub.s32 3, %v1416
        %v1418 = vrot.slane %v878, %v1417
        %v1419 = vmul.f32 %v1414, %v1418
        %v1420 = vlaneseq
        %v1421 = vshrl.u32 %v1420, 7
        %v1422 = vsub.s32 4, %v1421
        %v1423 = vrot.slane %v878, %v1422
        %v1424 = vadd.f32 %v1419, %v1423
        %v1425 = vld [vmem:[#allocation13] sm:$0xff]
        %v1426 = vld [vmem:[#allocation13 + $0x8] sm:$0xff]
        %v1427 = vld [vmem:[#allocation13 + $0x10] sm:$0xff]
        %v1428 = vld [vmem:[#allocation13 + $0x18] sm:$0xff]
        %v1429 = vld [vmem:[%s9] sm:$0x1]
        %v1431 = vlaneseq
        %v1432 = vshrl.u32 %v1431, 7
        %v1433 = vsub.s32 0, %v1432
        %v1434 = vrot.slane %v1429, %v1433
        %v1437 = vsel %vm738, %v1424, 0
        %1439 = vmatprep.subr.mxu0 0.0
        %1440 = vmatpush1.msra.mxu0 %v1425
        %1441 = vmatprep.subr.mxu0 0.0
        %1442 = vmatpush1.msra.mxu0 %v1426
        %1443 = vmatprep.subr.mxu0 0.0
        %1444 = vmatpush1.msra.mxu0 %v1427
        %1445 = vmatprep.subr.mxu0 0.0
        %1446 = vmatpush1.msra.mxu0 %v1428
        %1447 = vmatprep.subr.mxu0 0.0
        %1448 = vmatpush1.msra.mxu0 0.0
        %1449 = vmatprep.subr.mxu0 0.0
        %1450 = vmatpush1.msra.mxu0 0.0
        %1451 = vmatprep.subr.mxu0 0.0
        %1452 = vmatpush1.msra.mxu0 0.0
        %1453 = vmatprep.subr.mxu0 0.0
        %1454 = vmatpush1.msra.mxu0 0.0
        %1455 = vmatprep.subr.mxu0 0.0
        %1456 = vmatpush1.msra.mxu0 0.0
        %1457 = vmatprep.subr.mxu0 0.0
        %1458 = vmatpush1.msra.mxu0 0.0
        %1459 = vmatprep.subr.mxu0 0.0
        %1460 = vmatpush1.msra.mxu0 0.0
        %1461 = vmatprep.subr.mxu0 0.0
        %1462 = vmatpush1.msra.mxu0 0.0
        %1463 = vmatprep.subr.mxu0 0.0
        %1464 = vmatpush1.msra.mxu0 0.0
        %1465 = vmatprep.subr.mxu0 0.0
        %1466 = vmatpush1.msra.mxu0 0.0
        %1467 = vmatprep.subr.mxu0 0.0
        %1468 = vmatpush1.msra.mxu0 0.0
        %1469 = vmatprep.subr.mxu0 0.0
        %1470 = vmatpush1.msra.mxu0 0.0
        %1471 = vmatprep.subr.mxu0 0.0
        %1472 = vmatpush1.msra.mxu0 0.0
        %1473 = vmatprep.subr.mxu0 0.0
        %1474 = vmatpush1.msra.mxu0 0.0
        %1475 = vmatprep.subr.mxu0 0.0
        %1476 = vmatpush1.msra.mxu0 0.0
        %1477 = vmatprep.subr.mxu0 0.0
        %1478 = vmatpush1.msra.mxu0 0.0
        %1479 = vmatprep.subr.mxu0 0.0
        %1480 = vmatpush1.msra.mxu0 0.0
        %1481 = vmatprep.subr.mxu0 0.0
        %1482 = vmatpush1.msra.mxu0 0.0
        %1483 = vmatprep.subr.mxu0 0.0
        %1484 = vmatpush1.msra.mxu0 0.0
        %1485 = vmatprep.subr.mxu0 0.0
        %1486 = vmatpush1.msra.mxu0 0.0
        %1487 = vmatprep.subr.mxu0 0.0
        %1488 = vmatpush1.msra.mxu0 0.0
        %1489 = vmatprep.subr.mxu0 0.0
        %1490 = vmatpush1.msra.mxu0 0.0
        %1491 = vmatprep.subr.mxu0 0.0
        %1492 = vmatpush1.msra.mxu0 0.0
        %1493 = vmatprep.subr.mxu0 0.0
        %1494 = vmatpush1.msra.mxu0 0.0
        %1495 = vmatprep.subr.mxu0 0.0
        %1496 = vmatpush1.msra.mxu0 0.0
        %1497 = vmatprep.subr.mxu0 0.0
        %1498 = vmatpush1.msra.mxu0 0.0
        %1499 = vmatprep.subr.mxu0 0.0
        %1500 = vmatpush1.msra.mxu0 0.0
        %1501 = vmatprep.subr.mxu0 0.0
        %1502 = vmatpush1.msra.mxu0 0.0
        %1503 = vmatprep.mubr.f32.mxu0 0.0
        %1504 = vmatmul.mubr.f32.gmra.mrb[0].mxu0 %v1437
        %v1505 = vpop.f32.mrb[0].mxu0
        %v1506 = vadd.f32 %v1434, %v1505
        %v1507 = vpop.f32.mrb[0].mxu0
        %1508 = vdwg.mxu0
        %v1509 = vmul.f32 %v1506, 0.5
        %v1510 = vmul.f32 %v1506, 0.70710677
        %v1511 = verf.f32.pop %v1510
        %v1512 = vadd.f32 %v1511, 1.0
        %v1513 = vmul.f32 %v1509, %v1512
        %v1514 = vld [vmem:[#allocation15] sm:$0xff]
        %v1515 = vld [vmem:[#allocation15 + $0x8] sm:$0xff]
        %v1516 = vld [vmem:[#allocation15 + $0x10] sm:$0xff]
        %v1517 = vld [vmem:[#allocation15 + $0x18] sm:$0xff]
        %v1518 = vld [vmem:[#allocation15 + $0x20] sm:$0xff]
        %v1519 = vld [vmem:[#allocation15 + $0x28] sm:$0xff]
        %v1520 = vld [vmem:[#allocation15 + $0x30] sm:$0xff]
        %v1521 = vld [vmem:[#allocation15 + $0x38] sm:$0xff]
        %v1523 = vsel %vm744, %v1513, 0
        %1525 = vmatprep.subr.mxu0 0.0
        %1526 = vmatpush1.msra.mxu0 %v1514
        %1527 = vmatprep.subr.mxu0 0.0
        %1528 = vmatpush1.msra.mxu0 %v1515
        %1529 = vmatprep.subr.mxu0 0.0
        %1530 = vmatpush1.msra.mxu0 %v1516
        %1531 = vmatprep.subr.mxu0 0.0
        %1532 = vmatpush1.msra.mxu0 %v1517
        %1533 = vmatprep.subr.mxu0 0.0
        %1534 = vmatpush1.msra.mxu0 %v1518
        %1535 = vmatprep.subr.mxu0 0.0
        %1536 = vmatpush1.msra.mxu0 %v1519
        %1537 = vmatprep.subr.mxu0 0.0
        %1538 = vmatpush1.msra.mxu0 %v1520
        %1539 = vmatprep.subr.mxu0 0.0
        %1540 = vmatpush1.msra.mxu0 %v1521
        %1541 = vmatprep.subr.mxu0 0.0
        %1542 = vmatpush1.msra.mxu0 0.0
        %1543 = vmatprep.subr.mxu0 0.0
        %1544 = vmatpush1.msra.mxu0 0.0
        %1545 = vmatprep.subr.mxu0 0.0
        %1546 = vmatpush1.msra.mxu0 0.0
        %1547 = vmatprep.subr.mxu0 0.0
        %1548 = vmatpush1.msra.mxu0 0.0
        %1549 = vmatprep.subr.mxu0 0.0
        %1550 = vmatpush1.msra.mxu0 0.0
        %1551 = vmatprep.subr.mxu0 0.0
        %1552 = vmatpush1.msra.mxu0 0.0
        %1553 = vmatprep.subr.mxu0 0.0
        %1554 = vmatpush1.msra.mxu0 0.0
        %1555 = vmatprep.subr.mxu0 0.0
        %1556 = vmatpush1.msra.mxu0 0.0
        %1557 = vmatprep.subr.mxu0 0.0
        %1558 = vmatpush1.msra.mxu0 0.0
        %1559 = vmatprep.subr.mxu0 0.0
        %1560 = vmatpush1.msra.mxu0 0.0
        %1561 = vmatprep.subr.mxu0 0.0
        %1562 = vmatpush1.msra.mxu0 0.0
        %1563 = vmatprep.subr.mxu0 0.0
        %1564 = vmatpush1.msra.mxu0 0.0
        %1565 = vmatprep.subr.mxu0 0.0
        %1566 = vmatpush1.msra.mxu0 0.0
        %1567 = vmatprep.subr.mxu0 0.0
        %1568 = vmatpush1.msra.mxu0 0.0
        %1569 = vmatprep.subr.mxu0 0.0
        %1570 = vmatpush1.msra.mxu0 0.0
        %1571 = vmatprep.subr.mxu0 0.0
        %1572 = vmatpush1.msra.mxu0 0.0
        %1573 = vmatprep.subr.mxu0 0.0
        %1574 = vmatpush1.msra.mxu0 0.0
        %1575 = vmatprep.subr.mxu0 0.0
        %1576 = vmatpush1.msra.mxu0 0.0
        %1577 = vmatprep.subr.mxu0 0.0
        %1578 = vmatpush1.msra.mxu0 0.0
        %1579 = vmatprep.subr.mxu0 0.0
        %1580 = vmatpush1.msra.mxu0 0.0
        %1581 = vmatprep.subr.mxu0 0.0
        %1582 = vmatpush1.msra.mxu0 0.0
        %1583 = vmatprep.subr.mxu0 0.0
        %1584 = vmatpush1.msra.mxu0 0.0
        %1585 = vmatprep.subr.mxu0 0.0
        %1586 = vmatpush1.msra.mxu0 0.0
        %1587 = vmatprep.subr.mxu0 0.0
        %1588 = vmatpush1.msra.mxu0 0.0
        %1589 = vmatprep.mubr.f32.mxu0 0.0
        %1590 = vmatmul.mubr.f32.gmra.mrb[0].mxu0 %v1523
        %v1591 = vpop.f32.mrb[0].mxu0
        %v1592 = vadd.f32 0.0, %v1591
        %v1593 = vpop.f32.mrb[0].mxu0
        %1594 = vdwg.mxu0
        %v1595 = vadd.f32 %v1401, %v1592
        %v1596 = vlaneseq
        %v1597 = vshrl.u32 %v1596, 7
        %v1598 = vsub.s32 5, %v1597
        %v1599 = vrot.slane %v878, %v1598
        %v1600 = vadd.f32 %v1595, %v1599
        %s1601 = scalar_lea.vmem %s8, 8
        %v1602 = vld [vmem:[%s1601] sm:$0x3f]
        %s1603 = scalar_lea.vmem [#allocation12], 8
        %v1604 = vld [vmem:[%s1603] sm:$0xff]
        %v1605 = vsel %vm738, %v1600, 0.0
        %1606 = vadd.xlane.f32.xlu0 %v1605
        %v1607 = vpop.xlane.xlu0 %1606
        %v1608 = vmul.f32 %v1607, %v857
        %v1609 = vsub.f32 %v1600, %v1608
        %v1610 = vmul.f32 %v1609, %v1609
        %v1611 = vsel %vm738, %v1610, 0.0
        %1612 = vadd.xlane.f32.xlu0 %v1611
        %v1613 = vpop.xlane.xlu0 %1612
        %v1614 = vmul.f32 %v1613, %v857
        %v1615 = vadd.f32 %v1614, 1e-05
        %v1616 = vrsqrt.pop %v1615
        %v1617 = vmul.f32 %v1609, %v1616
        %v1618 = vlaneseq
        %v1619 = vshrl.u32 %v1618, 7
        %v1620 = vsub.s32 0, %v1619
        %v1621 = vrot.slane %v1602, %v1620
        %v1622 = vmul.f32 %v1617, %v1621
        %v1623 = vlaneseq
        %v1624 = vshrl.u32 %v1623, 7
        %v1625 = vsub.s32 1, %v1624
        %v1626 = vrot.slane %v1602, %v1625
        %v1627 = vadd.f32 %v1622, %v1626
        %s1628 = scalar_lea.vmem [#allocation9], 32
        %v1629 = vld [vmem:[%s1628] sm:$0xff]
        %v1630 = vld [vmem:[%s1628 + $0x8] sm:$0xff]
        %v1631 = vld [vmem:[%s1628 + $0x10] sm:$0xff]
        %v1632 = vld [vmem:[%s1628 + $0x18] sm:$0xff]
        %v1634 = vsel %vm738, %v1627, 0
        %1636 = vmatprep.subr.mxu0 0.0
        %1637 = vmatpush1.msra.mxu0 %v1629
        %1638 = vmatprep.subr.mxu0 0.0
        %1639 = vmatpush1.msra.mxu0 %v1630
        %1640 = vmatprep.subr.mxu0 0.0
        %1641 = vmatpush1.msra.mxu0 %v1631
        %1642 = vmatprep.subr.mxu0 0.0
        %1643 = vmatpush1.msra.mxu0 %v1632
        %1644 = vmatprep.subr.mxu0 0.0
        %1645 = vmatpush1.msra.mxu0 0.0
        %1646 = vmatprep.subr.mxu0 0.0
        %1647 = vmatpush1.msra.mxu0 0.0
        %1648 = vmatprep.subr.mxu0 0.0
        %1649 = vmatpush1.msra.mxu0 0.0
        %1650 = vmatprep.subr.mxu0 0.0
        %1651 = vmatpush1.msra.mxu0 0.0
        %1652 = vmatprep.subr.mxu0 0.0
        %1653 = vmatpush1.msra.mxu0 0.0
        %1654 = vmatprep.subr.mxu0 0.0
        %1655 = vmatpush1.msra.mxu0 0.0
        %1656 = vmatprep.subr.mxu0 0.0
        %1657 = vmatpush1.msra.mxu0 0.0
        %1658 = vmatprep.subr.mxu0 0.0
        %1659 = vmatpush1.msra.mxu0 0.0
        %1660 = vmatprep.subr.mxu0 0.0
        %1661 = vmatpush1.msra.mxu0 0.0
        %1662 = vmatprep.subr.mxu0 0.0
        %1663 = vmatpush1.msra.mxu0 0.0
        %1664 = vmatprep.subr.mxu0 0.0
        %1665 = vmatpush1.msra.mxu0 0.0
        %1666 = vmatprep.subr.mxu0 0.0
        %1667 = vmatpush1.msra.mxu0 0.0
        %1668 = vmatprep.subr.mxu0 0.0
        %1669 = vmatpush1.msra.mxu0 0.0
        %1670 = vmatprep.subr.mxu0 0.0
        %1671 = vmatpush1.msra.mxu0 0.0
        %1672 = vmatprep.subr.mxu0 0.0
        %1673 = vmatpush1.msra.mxu0 0.0
        %1674 = vmatprep.subr.mxu0 0.0
        %1675 = vmatpush1.msra.mxu0 0.0
        %1676 = vmatprep.subr.mxu0 0.0
        %1677 = vmatpush1.msra.mxu0 0.0
        %1678 = vmatprep.subr.mxu0 0.0
        %1679 = vmatpush1.msra.mxu0 0.0
        %1680 = vmatprep.subr.mxu0 0.0
        %1681 = vmatpush1.msra.mxu0 0.0
        %1682 = vmatprep.subr.mxu0 0.0
        %1683 = vmatpush1.msra.mxu0 0.0
        %1684 = vmatprep.subr.mxu0 0.0
        %1685 = vmatpush1.msra.mxu0 0.0
        %1686 = vmatprep.subr.mxu0 0.0
        %1687 = vmatpush1.msra.mxu0 0.0
        %1688 = vmatprep.subr.mxu0 0.0
        %1689 = vmatpush1.msra.mxu0 0.0
        %1690 = vmatprep.subr.mxu0 0.0
        %1691 = vmatpush1.msra.mxu0 0.0
        %1692 = vmatprep.subr.mxu0 0.0
        %1693 = vmatpush1.msra.mxu0 0.0
        %1694 = vmatprep.subr.mxu0 0.0
        %1695 = vmatpush1.msra.mxu0 0.0
        %1696 = vmatprep.subr.mxu0 0.0
        %1697 = vmatpush1.msra.mxu0 0.0
        %1698 = vmatprep.subr.mxu0 0.0
        %1699 = vmatpush1.msra.mxu0 0.0
        %1700 = vmatprep.mubr.f32.mxu0 0.0
        %1701 = vmatmul.mubr.f32.gmra.mrb[0].mxu0 %v1634
        %v1702 = vpop.f32.mrb[0].mxu0
        %v1703 = vadd.f32 0.0, %v1702
        %v1704 = vpop.f32.mrb[0].mxu0
        %1705 = vdwg.mxu0
        %1707 = vrot.lane.b32.xlu0 %v1703, 96
        %v1708 = vpop.permute.xlu0 %1707
        %v1709 = vsel %vm736, %v1703, 0
        %v1711 = vsel %vm736, %v1708, 0
        %1713 = vmatprep.subr.mxu0 0.0
        %1714 = vmatpush1.xpose.msra.mxu0 %v1711
        %1715 = vmatprep.subr.mxu0 0.0
        %1716 = vmatpush1.xpose.msra.mxu0 0.0
        %1717 = vmatprep.subr.mxu0 0.0
        %1718 = vmatpush1.xpose.msra.mxu0 0.0
        %1719 = vmatprep.subr.mxu0 0.0
        %1720 = vmatpush1.xpose.msra.mxu0 0.0
        %1721 = vmatprep.subr.mxu0 0.0
        %1722 = vmatpush1.xpose.msra.mxu0 0.0
        %1723 = vmatprep.subr.mxu0 0.0
        %1724 = vmatpush1.xpose.msra.mxu0 0.0
        %1725 = vmatprep.subr.mxu0 0.0
        %1726 = vmatpush1.xpose.msra.mxu0 0.0
        %1727 = vmatprep.subr.mxu0 0.0
        %1728 = vmatpush1.xpose.msra.mxu0 0.0
        %1729 = vmatprep.subr.mxu0 0.0
        %1730 = vmatpush1.xpose.msra.mxu0 0.0
        %1731 = vmatprep.subr.mxu0 0.0
        %1732 = vmatpush1.xpose.msra.mxu0 0.0
        %1733 = vmatprep.subr.mxu0 0.0
        %1734 = vmatpush1.xpose.msra.mxu0 0.0
        %1735 = vmatprep.subr.mxu0 0.0
        %1736 = vmatpush1.xpose.msra.mxu0 0.0
        %1737 = vmatprep.subr.mxu0 0.0
        %1738 = vmatpush1.xpose.msra.mxu0 0.0
        %1739 = vmatprep.subr.mxu0 0.0
        %1740 = vmatpush1.xpose.msra.mxu0 0.0
        %1741 = vmatprep.subr.mxu0 0.0
        %1742 = vmatpush1.xpose.msra.mxu0 0.0
        %1743 = vmatprep.subr.mxu0 0.0
        %1744 = vmatpush1.xpose.msra.mxu0 0.0
        %1745 = vmatprep.subr.mxu0 0.0
        %1746 = vmatpush1.xpose.msra.mxu0 0.0
        %1747 = vmatprep.subr.mxu0 0.0
        %1748 = vmatpush1.xpose.msra.mxu0 0.0
        %1749 = vmatprep.subr.mxu0 0.0
        %1750 = vmatpush1.xpose.msra.mxu0 0.0
        %1751 = vmatprep.subr.mxu0 0.0
        %1752 = vmatpush1.xpose.msra.mxu0 0.0
        %1753 = vmatprep.subr.mxu0 0.0
        %1754 = vmatpush1.xpose.msra.mxu0 0.0
        %1755 = vmatprep.subr.mxu0 0.0
        %1756 = vmatpush1.xpose.msra.mxu0 0.0
        %1757 = vmatprep.subr.mxu0 0.0
        %1758 = vmatpush1.xpose.msra.mxu0 0.0
        %1759 = vmatprep.subr.mxu0 0.0
        %1760 = vmatpush1.xpose.msra.mxu0 0.0
        %1761 = vmatprep.subr.mxu0 0.0
        %1762 = vmatpush1.xpose.msra.mxu0 0.0
        %1763 = vmatprep.subr.mxu0 0.0
        %1764 = vmatpush1.xpose.msra.mxu0 0.0
        %1765 = vmatprep.subr.mxu0 0.0
        %1766 = vmatpush1.xpose.msra.mxu0 0.0
        %1767 = vmatprep.subr.mxu0 0.0
        %1768 = vmatpush1.xpose.msra.mxu0 0.0
        %1769 = vmatprep.subr.mxu0 0.0
        %1770 = vmatpush1.xpose.msra.mxu0 0.0
        %1771 = vmatprep.subr.mxu0 0.0
        %1772 = vmatpush1.xpose.msra.mxu0 0.0
        %1773 = vmatprep.subr.mxu0 0.0
        %1774 = vmatpush1.xpose.msra.mxu0 0.0
        %1775 = vmatprep.subr.mxu0 0.0
        %1776 = vmatpush1.xpose.msra.mxu0 0.0
        %1777 = vmatprep.mubr.f32.mxu0 0.0
        %1778 = vmatmul.mubr.f32.gmra.mrb[0].mxu0 %v1709
        %v1779 = vpop.f32.mrb[0].mxu0
        %v1780 = vadd.f32 0.0, %v1779
        %v1781 = vpop.f32.mrb[0].mxu0
        %1782 = vdwg.mxu0
        %v1783 = vmul.f32 %v1780, 0.25
        %v1784 = vadd.f32 %v1783, %v1604
        %v1785 = vsel %vm1059, %v1784, -inf
        %1786 = vmax.xlane.f32.xlu0 %v1785
        %v1787 = vpop.xlane.xlu0 %1786
        %v1788 = vsub.f32 %v1784, %v1787
        %v1789 = vmul.f32 %v1788, 1.442695
        %v1790 = vpow.pop %v1789
        %v1791 = vsel %vm1059, %v1790, 0.0
        %1792 = vadd.xlane.f32.xlu0 %v1791
        %v1793 = vpop.xlane.xlu0 %1792
        %v1794 = vrcp.pop %v1793
        %v1795 = vmul.f32 %v1790, %v1794
        %1796 = vrot.lane.b32.xlu0 %v1703, 64
        %v1797 = vpop.permute.xlu0 %1796
        %v1800 = vsel %vm1059, %v1795, 0
        %1802 = vmatprep.subr.mxu0 0.0
        %1803 = vmatpush1.msra.mxu0 %v1797
        %1804 = vmatprep.subr.mxu0 0.0
        %1805 = vmatpush1.msra.mxu0 0.0
        %1806 = vmatprep.subr.mxu0 0.0
        %1807 = vmatpush1.msra.mxu0 0.0
        %1808 = vmatprep.subr.mxu0 0.0
        %1809 = vmatpush1.msra.mxu0 0.0
        %1810 = vmatprep.subr.mxu0 0.0
        %1811 = vmatpush1.msra.mxu0 0.0
        %1812 = vmatprep.subr.mxu0 0.0
        %1813 = vmatpush1.msra.mxu0 0.0
        %1814 = vmatprep.subr.mxu0 0.0
        %1815 = vmatpush1.msra.mxu0 0.0
        %1816 = vmatprep.subr.mxu0 0.0
        %1817 = vmatpush1.msra.mxu0 0.0
        %1818 = vmatprep.subr.mxu0 0.0
        %1819 = vmatpush1.msra.mxu0 0.0
        %1820 = vmatprep.subr.mxu0 0.0
        %1821 = vmatpush1.msra.mxu0 0.0
        %1822 = vmatprep.subr.mxu0 0.0
        %1823 = vmatpush1.msra.mxu0 0.0
        %1824 = vmatprep.subr.mxu0 0.0
        %1825 = vmatpush1.msra.mxu0 0.0
        %1826 = vmatprep.subr.mxu0 0.0
        %1827 = vmatpush1.msra.mxu0 0.0
        %1828 = vmatprep.subr.mxu0 0.0
        %1829 = vmatpush1.msra.mxu0 0.0
        %1830 = vmatprep.subr.mxu0 0.0
        %1831 = vmatpush1.msra.mxu0 0.0
        %1832 = vmatprep.subr.mxu0 0.0
        %1833 = vmatpush1.msra.mxu0 0.0
        %1834 = vmatprep.subr.mxu0 0.0
        %1835 = vmatpush1.msra.mxu0 0.0
        %1836 = vmatprep.subr.mxu0 0.0
        %1837 = vmatpush1.msra.mxu0 0.0
        %1838 = vmatprep.subr.mxu0 0.0
        %1839 = vmatpush1.msra.mxu0 0.0
        %1840 = vmatprep.subr.mxu0 0.0
        %1841 = vmatpush1.msra.mxu0 0.0
        %1842 = vmatprep.subr.mxu0 0.0
        %1843 = vmatpush1.msra.mxu0 0.0
        %1844 = vmatprep.subr.mxu0 0.0
        %1845 = vmatpush1.msra.mxu0 0.0
        %1846 = vmatprep.subr.mxu0 0.0
        %1847 = vmatpush1.msra.mxu0 0.0
        %1848 = vmatprep.subr.mxu0 0.0
        %1849 = vmatpush1.msra.mxu0 0.0
        %1850 = vmatprep.subr.mxu0 0.0
        %1851 = vmatpush1.msra.mxu0 0.0
        %1852 = vmatprep.subr.mxu0 0.0
        %1853 = vmatpush1.msra.mxu0 0.0
        %1854 = vmatprep.subr.mxu0 0.0
        %1855 = vmatpush1.msra.mxu0 0.0
        %1856 = vmatprep.subr.mxu0 0.0
        %1857 = vmatpush1.msra.mxu0 0.0
        %1858 = vmatprep.subr.mxu0 0.0
        %1859 = vmatpush1.msra.mxu0 0.0
        %1860 = vmatprep.subr.mxu0 0.0
        %1861 = vmatpush1.msra.mxu0 0.0
        %1862 = vmatprep.subr.mxu0 0.0
        %1863 = vmatpush1.msra.mxu0 0.0
        %1864 = vmatprep.subr.mxu0 0.0
        %1865 = vmatpush1.msra.mxu0 0.0
        %1866 = vmatprep.mubr.f32.mxu0 0.0
        %1867 = vmatmul.mubr.f32.gmra.mrb[0].mxu0 %v1800
        %v1868 = vpop.f32.mrb[0].mxu0
        %v1869 = vadd.f32 0.0, %v1868
        %v1870 = vpop.f32.mrb[0].mxu0
        %1871 = vdwg.mxu0
        %1872 = vrot.lane.b32.xlu0 %v1703, 112
        %v1873 = vpop.permute.xlu0 %1872
        %1874 = vrot.lane.b32.xlu0 %v1703, 80
        %v1875 = vpop.permute.xlu0 %1874
        %v1876 = vsel %vm736, %v1873, 0
        %v1878 = vsel %vm736, %v1875, 0
        %1880 = vmatprep.subr.mxu0 0.0
        %1881 = vmatpush1.xpose.msra.mxu0 %v1878
        %1882 = vmatprep.subr.mxu0 0.0
        %1883 = vmatpush1.xpose.msra.mxu0 0.0
        %1884 = vmatprep.subr.mxu0 0.0
        %1885 = vmatpush1.xpose.msra.mxu0 0.0
        %1886 = vmatprep.subr.mxu0 0.0
        %1887 = vmatpush1.xpose.msra.mxu0 0.0
        %1888 = vmatprep.subr.mxu0 0.0
        %1889 = vmatpush1.xpose.msra.mxu0 0.0
        %1890 = vmatprep.subr.mxu0 0.0
        %1891 = vmatpush1.xpose.msra.mxu0 0.0
        %1892 = vmatprep.subr.mxu0 0.0
        %1893 = vmatpush1.xpose.msra.mxu0 0.0
        %1894 = vmatprep.subr.mxu0 0.0
        %1895 = vmatpush1.xpose.msra.mxu0 0.0
        %1896 = vmatprep.subr.mxu0 0.0
        %1897 = vmatpush1.xpose.msra.mxu0 0.0
        %1898 = vmatprep.subr.mxu0 0.0
        %1899 = vmatpush1.xpose.msra.mxu0 0.0
        %1900 = vmatprep.subr.mxu0 0.0
        %1901 = vmatpush1.xpose.msra.mxu0 0.0
        %1902 = vmatprep.subr.mxu0 0.0
        %1903 = vmatpush1.xpose.msra.mxu0 0.0
        %1904 = vmatprep.subr.mxu0 0.0
        %1905 = vmatpush1.xpose.msra.mxu0 0.0
        %1906 = vmatprep.subr.mxu0 0.0
        %1907 = vmatpush1.xpose.msra.mxu0 0.0
        %1908 = vmatprep.subr.mxu0 0.0
        %1909 = vmatpush1.xpose.msra.mxu0 0.0
        %1910 = vmatprep.subr.mxu0 0.0
        %1911 = vmatpush1.xpose.msra.mxu0 0.0
        %1912 = vmatprep.subr.mxu0 0.0
        %1913 = vmatpush1.xpose.msra.mxu0 0.0
        %1914 = vmatprep.subr.mxu0 0.0
        %1915 = vmatpush1.xpose.msra.mxu0 0.0
        %1916 = vmatprep.subr.mxu0 0.0
        %1917 = vmatpush1.xpose.msra.mxu0 0.0
        %1918 = vmatprep.subr.mxu0 0.0
        %1919 = vmatpush1.xpose.msra.mxu0 0.0
        %1920 = vmatprep.subr.mxu0 0.0
        %1921 = vmatpush1.xpose.msra.mxu0 0.0
        %1922 = vmatprep.subr.mxu0 0.0
        %1923 = vmatpush1.xpose.msra.mxu0 0.0
        %1924 = vmatprep.subr.mxu0 0.0
        %1925 = vmatpush1.xpose.msra.mxu0 0.0
        %1926 = vmatprep.subr.mxu0 0.0
        %1927 = vmatpush1.xpose.msra.mxu0 0.0
        %1928 = vmatprep.subr.mxu0 0.0
        %1929 = vmatpush1.xpose.msra.mxu0 0.0
        %1930 = vmatprep.subr.mxu0 0.0
        %1931 = vmatpush1.xpose.msra.mxu0 0.0
        %1932 = vmatprep.subr.mxu0 0.0
        %1933 = vmatpush1.xpose.msra.mxu0 0.0
        %1934 = vmatprep.subr.mxu0 0.0
        %1935 = vmatpush1.xpose.msra.mxu0 0.0
        %1936 = vmatprep.subr.mxu0 0.0
        %1937 = vmatpush1.xpose.msra.mxu0 0.0
        %1938 = vmatprep.subr.mxu0 0.0
        %1939 = vmatpush1.xpose.msra.mxu0 0.0
        %1940 = vmatprep.subr.mxu0 0.0
        %1941 = vmatpush1.xpose.msra.mxu0 0.0
        %1942 = vmatprep.subr.mxu0 0.0
        %1943 = vmatpush1.xpose.msra.mxu0 0.0
        %1944 = vmatprep.mubr.f32.mxu0 0.0
        %1945 = vmatmul.mubr.f32.gmra.mrb[0].mxu0 %v1876
        %v1946 = vpop.f32.mrb[0].mxu0
        %v1947 = vadd.f32 0.0, %v1946
        %v1948 = vpop.f32.mrb[0].mxu0
        %1949 = vdwg.mxu0
        %v1950 = vmul.f32 %v1947, 0.25
        %v1951 = vadd.f32 %v1950, %v1604
        %v1952 = vsel %vm1059, %v1951, -inf
        %1953 = vmax.xlane.f32.xlu0 %v1952
        %v1954 = vpop.xlane.xlu0 %1953
        %v1955 = vsub.f32 %v1951, %v1954
        %v1956 = vmul.f32 %v1955, 1.442695
        %v1957 = vpow.pop %v1956
        %v1958 = vsel %vm1059, %v1957, 0.0
        %1959 = vadd.xlane.f32.xlu0 %v1958
        %v1960 = vpop.xlane.xlu0 %1959
        %v1961 = vrcp.pop %v1960
        %v1962 = vmul.f32 %v1957, %v1961
        %1963 = vrot.lane.b32.xlu0 %v1703, 48
        %v1964 = vpop.permute.xlu0 %1963
        %v1967 = vsel %vm1059, %v1962, 0
        %1969 = vmatprep.subr.mxu0 0.0
        %1970 = vmatpush1.msra.mxu0 %v1964
        %1971 = vmatprep.subr.mxu0 0.0
        %1972 = vmatpush1.msra.mxu0 0.0
        %1973 = vmatprep.subr.mxu0 0.0
        %1974 = vmatpush1.msra.mxu0 0.0
        %1975 = vmatprep.subr.mxu0 0.0
        %1976 = vmatpush1.msra.mxu0 0.0
        %1977 = vmatprep.subr.mxu0 0.0
        %1978 = vmatpush1.msra.mxu0 0.0
        %1979 = vmatprep.subr.mxu0 0.0
        %1980 = vmatpush1.msra.mxu0 0.0
        %1981 = vmatprep.subr.mxu0 0.0
        %1982 = vmatpush1.msra.mxu0 0.0
        %1983 = vmatprep.subr.mxu0 0.0
        %1984 = vmatpush1.msra.mxu0 0.0
        %1985 = vmatprep.subr.mxu0 0.0
        %1986 = vmatpush1.msra.mxu0 0.0
        %1987 = vmatprep.subr.mxu0 0.0
        %1988 = vmatpush1.msra.mxu0 0.0
        %1989 = vmatprep.subr.mxu0 0.0
        %1990 = vmatpush1.msra.mxu0 0.0
        %1991 = vmatprep.subr.mxu0 0.0
        %1992 = vmatpush1.msra.mxu0 0.0
        %1993 = vmatprep.subr.mxu0 0.0
        %1994 = vmatpush1.msra.mxu0 0.0
        %1995 = vmatprep.subr.mxu0 0.0
        %1996 = vmatpush1.msra.mxu0 0.0
        %1997 = vmatprep.subr.mxu0 0.0
        %1998 = vmatpush1.msra.mxu0 0.0
        %1999 = vmatprep.subr.mxu0 0.0
        %2000 = vmatpush1.msra.mxu0 0.0
        %2001 = vmatprep.subr.mxu0 0.0
        %2002 = vmatpush1.msra.mxu0 0.0
        %2003 = vmatprep.subr.mxu0 0.0
        %2004 = vmatpush1.msra.mxu0 0.0
        %2005 = vmatprep.subr.mxu0 0.0
        %2006 = vmatpush1.msra.mxu0 0.0
        %2007 = vmatprep.subr.mxu0 0.0
        %2008 = vmatpush1.msra.mxu0 0.0
        %2009 = vmatprep.subr.mxu0 0.0
        %2010 = vmatpush1.msra.mxu0 0.0
        %2011 = vmatprep.subr.mxu0 0.0
        %2012 = vmatpush1.msra.mxu0 0.0
        %2013 = vmatprep.subr.mxu0 0.0
        %2014 = vmatpush1.msra.mxu0 0.0
        %2015 = vmatprep.subr.mxu0 0.0
        %2016 = vmatpush1.msra.mxu0 0.0
        %2017 = vmatprep.subr.mxu0 0.0
        %2018 = vmatpush1.msra.mxu0 0.0
        %2019 = vmatprep.subr.mxu0 0.0
        %2020 = vmatpush1.msra.mxu0 0.0
        %2021 = vmatprep.subr.mxu0 0.0
        %2022 = vmatpush1.msra.mxu0 0.0
        %2023 = vmatprep.subr.mxu0 0.0
        %2024 = vmatpush1.msra.mxu0 0.0
        %2025 = vmatprep.subr.mxu0 0.0
        %2026 = vmatpush1.msra.mxu0 0.0
        %2027 = vmatprep.subr.mxu0 0.0
        %2028 = vmatpush1.msra.mxu0 0.0
        %2029 = vmatprep.subr.mxu0 0.0
        %2030 = vmatpush1.msra.mxu0 0.0
        %2031 = vmatprep.subr.mxu0 0.0
        %2032 = vmatpush1.msra.mxu0 0.0
        %2033 = vmatprep.mubr.f32.mxu0 0.0
        %2034 = vmatmul.mubr.f32.gmra.mrb[0].mxu0 %v1967
        %v2035 = vpop.f32.mrb[0].mxu0
        %v2036 = vadd.f32 0.0, %v2035
        %v2037 = vpop.f32.mrb[0].mxu0
        %2038 = vdwg.mxu0
        %2040 = vrot.lane.b32.xlu0 %v2036, 16
        %v2041 = vpop.permute.xlu0 %2040
        %v2043 = vsel %vm736, %v1869, %v2041
        %s2044 = scalar_lea.vmem [#allocation10], 32
        %v2045 = vld [vmem:[%s2044] sm:$0xff]
        %v2046 = vld [vmem:[%s2044 + $0x8] sm:$0xff]
        %v2047 = vld [vmem:[%s2044 + $0x10] sm:$0xff]
        %v2048 = vld [vmem:[%s2044 + $0x18] sm:$0xff]
        %v2050 = vsel %vm738, %v2043, 0
        %2052 = vmatprep.subr.mxu0 0.0
        %2053 = vmatpush1.msra.mxu0 %v2045
        %2054 = vmatprep.subr.mxu0 0.0
        %2055 = vmatpush1.msra.mxu0 %v2046
        %2056 = vmatprep.subr.mxu0 0.0
        %2057 = vmatpush1.msra.mxu0 %v2047
        %2058 = vmatprep.subr.mxu0 0.0
        %2059 = vmatpush1.msra.mxu0 %v2048
        %2060 = vmatprep.subr.mxu0 0.0
        %2061 = vmatpush1.msra.mxu0 0.0
        %2062 = vmatprep.subr.mxu0 0.0
        %2063 = vmatpush1.msra.mxu0 0.0
        %2064 = vmatprep.subr.mxu0 0.0
        %2065 = vmatpush1.msra.mxu0 0.0
        %2066 = vmatprep.subr.mxu0 0.0
        %2067 = vmatpush1.msra.mxu0 0.0
        %2068 = vmatprep.subr.mxu0 0.0
        %2069 = vmatpush1.msra.mxu0 0.0
        %2070 = vmatprep.subr.mxu0 0.0
        %2071 = vmatpush1.msra.mxu0 0.0
        %2072 = vmatprep.subr.mxu0 0.0
        %2073 = vmatpush1.msra.mxu0 0.0
        %2074 = vmatprep.subr.mxu0 0.0
        %2075 = vmatpush1.msra.mxu0 0.0
        %2076 = vmatprep.subr.mxu0 0.0
        %2077 = vmatpush1.msra.mxu0 0.0
        %2078 = vmatprep.subr.mxu0 0.0
        %2079 = vmatpush1.msra.mxu0 0.0
        %2080 = vmatprep.subr.mxu0 0.0
        %2081 = vmatpush1.msra.mxu0 0.0
        %2082 = vmatprep.subr.mxu0 0.0
        %2083 = vmatpush1.msra.mxu0 0.0
        %2084 = vmatprep.subr.mxu0 0.0
        %2085 = vmatpush1.msra.mxu0 0.0
        %2086 = vmatprep.subr.mxu0 0.0
        %2087 = vmatpush1.msra.mxu0 0.0
        %2088 = vmatprep.subr.mxu0 0.0
        %2089 = vmatpush1.msra.mxu0 0.0
        %2090 = vmatprep.subr.mxu0 0.0
        %2091 = vmatpush1.msra.mxu0 0.0
        %2092 = vmatprep.subr.mxu0 0.0
        %2093 = vmatpush1.msra.mxu0 0.0
        %2094 = vmatprep.subr.mxu0 0.0
        %2095 = vmatpush1.msra.mxu0 0.0
        %2096 = vmatprep.subr.mxu0 0.0
        %2097 = vmatpush1.msra.mxu0 0.0
        %2098 = vmatprep.subr.mxu0 0.0
        %2099 = vmatpush1.msra.mxu0 0.0
        %2100 = vmatprep.subr.mxu0 0.0
        %2101 = vmatpush1.msra.mxu0 0.0
        %2102 = vmatprep.subr.mxu0 0.0
        %2103 = vmatpush1.msra.mxu0 0.0
        %2104 = vmatprep.subr.mxu0 0.0
        %2105 = vmatpush1.msra.mxu0 0.0
        %2106 = vmatprep.subr.mxu0 0.0
        %2107 = vmatpush1.msra.mxu0 0.0
        %2108 = vmatprep.subr.mxu0 0.0
        %2109 = vmatpush1.msra.mxu0 0.0
        %2110 = vmatprep.subr.mxu0 0.0
        %2111 = vmatpush1.msra.mxu0 0.0
        %2112 = vmatprep.subr.mxu0 0.0
        %2113 = vmatpush1.msra.mxu0 0.0
        %2114 = vmatprep.subr.mxu0 0.0
        %2115 = vmatpush1.msra.mxu0 0.0
        %2116 = vmatprep.mubr.f32.mxu0 0.0
        %2117 = vmatmul.mubr.f32.gmra.mrb[0].mxu0 %v2050
        %v2118 = vpop.f32.mrb[0].mxu0
        %v2119 = vadd.f32 0.0, %v2118
        %v2120 = vpop.f32.mrb[0].mxu0
        %2121 = vdwg.mxu0
        %v2122 = vadd.f32 %v1600, %v2119
        %v2123 = vlaneseq
        %v2124 = vshrl.u32 %v2123, 7
        %v2125 = vsub.s32 2, %v2124
        %v2126 = vrot.slane %v1602, %v2125
        %v2127 = vadd.f32 %v2122, %v2126
        %v2128 = vsel %vm738, %v2127, 0.0
        %2129 = vadd.xlane.f32.xlu0 %v2128
        %v2130 = vpop.xlane.xlu0 %2129
        %v2131 = vmul.f32 %v2130, %v857
        %v2132 = vsub.f32 %v2127, %v2131
        %v2133 = vmul.f32 %v2132, %v2132
        %v2134 = vsel %vm738, %v2133, 0.0
        %2135 = vadd.xlane.f32.xlu0 %v2134
        %v2136 = vpop.xlane.xlu0 %2135
        %v2137 = vmul.f32 %v2136, %v857
        %v2138 = vadd.f32 %v2137, 1e-05
        %v2139 = vrsqrt.pop %v2138
        %v2140 = vmul.f32 %v2132, %v2139
        %v2141 = vlaneseq
        %v2142 = vshrl.u32 %v2141, 7
        %v2143 = vsub.s32 3, %v2142
        %v2144 = vrot.slane %v1602, %v2143
        %v2145 = vmul.f32 %v2140, %v2144
        %v2146 = vlaneseq
        %v2147 = vshrl.u32 %v2146, 7
        %v2148 = vsub.s32 4, %v2147
        %v2149 = vrot.slane %v1602, %v2148
        %v2150 = vadd.f32 %v2145, %v2149
        %s2151 = scalar_lea.vmem [#allocation13], 32
        %v2152 = vld [vmem:[%s2151] sm:$0xff]
        %v2153 = vld [vmem:[%s2151 + $0x8] sm:$0xff]
        %v2154 = vld [vmem:[%s2151 + $0x10] sm:$0xff]
        %v2155 = vld [vmem:[%s2151 + $0x18] sm:$0xff]
        %s2156 = scalar_lea.vmem %s9, 1
        %v2157 = vld [vmem:[%s2156] sm:$0x1]
        %v2159 = vlaneseq
        %v2160 = vshrl.u32 %v2159, 7
        %v2161 = vsub.s32 0, %v2160
        %v2162 = vrot.slane %v2157, %v2161
        %v2165 = vsel %vm738, %v2150, 0
        %2167 = vmatprep.subr.mxu0 0.0
        %2168 = vmatpush1.msra.mxu0 %v2152
        %2169 = vmatprep.subr.mxu0 0.0
        %2170 = vmatpush1.msra.mxu0 %v2153
        %2171 = vmatprep.subr.mxu0 0.0
        %2172 = vmatpush1.msra.mxu0 %v2154
        %2173 = vmatprep.subr.mxu0 0.0
        %2174 = vmatpush1.msra.mxu0 %v2155
        %2175 = vmatprep.subr.mxu0 0.0
        %2176 = vmatpush1.msra.mxu0 0.0
        %2177 = vmatprep.subr.mxu0 0.0
        %2178 = vmatpush1.msra.mxu0 0.0
        %2179 = vmatprep.subr.mxu0 0.0
        %2180 = vmatpush1.msra.mxu0 0.0
        %2181 = vmatprep.subr.mxu0 0.0
        %2182 = vmatpush1.msra.mxu0 0.0
        %2183 = vmatprep.subr.mxu0 0.0
        %2184 = vmatpush1.msra.mxu0 0.0
        %2185 = vmatprep.subr.mxu0 0.0
        %2186 = vmatpush1.msra.mxu0 0.0
        %2187 = vmatprep.subr.mxu0 0.0
        %2188 = vmatpush1.msra.mxu0 0.0
        %2189 = vmatprep.subr.mxu0 0.0
        %2190 = vmatpush1.msra.mxu0 0.0
        %2191 = vmatprep.subr.mxu0 0.0
        %2192 = vmatpush1.msra.mxu0 0.0
        %2193 = vmatprep.subr.mxu0 0.0
        %2194 = vmatpush1.msra.mxu0 0.0
        %2195 = vmatprep.subr.mxu0 0.0
        %2196 = vmatpush1.msra.mxu0 0.0
        %2197 = vmatprep.subr.mxu0 0.0
        %2198 = vmatpush1.msra.mxu0 0.0
        %2199 = vmatprep.subr.mxu0 0.0
        %2200 = vmatpush1.msra.mxu0 0.0
        %2201 = vmatprep.subr.mxu0 0.0
        %2202 = vmatpush1.msra.mxu0 0.0
        %2203 = vmatprep.subr.mxu0 0.0
        %2204 = vmatpush1.msra.mxu0 0.0
        %2205 = vmatprep.subr.mxu0 0.0
        %2206 = vmatpush1.msra.mxu0 0.0
        %2207 = vmatprep.subr.mxu0 0.0
        %2208 = vmatpush1.msra.mxu0 0.0
        %2209 = vmatprep.subr.mxu0 0.0
        %2210 = vmatpush1.msra.mxu0 0.0
        %2211 = vmatprep.subr.mxu0 0.0
        %2212 = vmatpush1.msra.mxu0 0.0
        %2213 = vmatprep.subr.mxu0 0.0
        %2214 = vmatpush1.msra.mxu0 0.0
        %2215 = vmatprep.subr.mxu0 0.0
        %2216 = vmatpush1.msra.mxu0 0.0
        %2217 = vmatprep.subr.mxu0 0.0
        %2218 = vmatpush1.msra.mxu0 0.0
        %2219 = vmatprep.subr.mxu0 0.0
        %2220 = vmatpush1.msra.mxu0 0.0
        %2221 = vmatprep.subr.mxu0 0.0
        %2222 = vmatpush1.msra.mxu0 0.0
        %2223 = vmatprep.subr.mxu0 0.0
        %2224 = vmatpush1.msra.mxu0 0.0
        %2225 = vmatprep.subr.mxu0 0.0
        %2226 = vmatpush1.msra.mxu0 0.0
        %2227 = vmatprep.subr.mxu0 0.0
        %2228 = vmatpush1.msra.mxu0 0.0
        %2229 = vmatprep.subr.mxu0 0.0
        %2230 = vmatpush1.msra.mxu0 0.0
        %2231 = vmatprep.mubr.f32.mxu0 0.0
        %2232 = vmatmul.mubr.f32.gmra.mrb[0].mxu0 %v2165
        %v2233 = vpop.f32.mrb[0].mxu0
        %v2234 = vadd.f32 %v2162, %v2233
        %v2235 = vpop.f32.mrb[0].mxu0
        %2236 = vdwg.mxu0
        %v2237 = vmul.f32 %v2234, 0.5
        %v2238 = vmul.f32 %v2234, 0.70710677
        %v2239 = verf.f32.pop %v2238
        %v2240 = vadd.f32 %v2239, 1.0
        %v2241 = vmul.f32 %v2237, %v2240
        %s2242 = scalar_lea.vmem [#allocation15], 64
        %v2243 = vld [vmem:[%s2242] sm:$0xff]
        %v2244 = vld [vmem:[%s2242 + $0x8] sm:$0xff]
        %v2245 = vld [vmem:[%s2242 + $0x10] sm:$0xff]
        %v2246 = vld [vmem:[%s2242 + $0x18] sm:$0xff]
        %v2247 = vld [vmem:[%s2242 + $0x20] sm:$0xff]
        %v2248 = vld [vmem:[%s2242 + $0x28] sm:$0xff]
        %v2249 = vld [vmem:[%s2242 + $0x30] sm:$0xff]
        %v2250 = vld [vmem:[%s2242 + $0x38] sm:$0xff]
        %v2252 = vsel %vm744, %v2241, 0
        %2254 = vmatprep.subr.mxu0 0.0
        %2255 = vmatpush1.msra.mxu0 %v2243
        %2256 = vmatprep.subr.mxu0 0.0
        %2257 = vmatpush1.msra.mxu0 %v2244
        %2258 = vmatprep.subr.mxu0 0.0
        %2259 = vmatpush1.msra.mxu0 %v2245
        %2260 = vmatprep.subr.mxu0 0.0
        %2261 = vmatpush1.msra.mxu0 %v2246
        %2262 = vmatprep.subr.mxu0 0.0
        %2263 = vmatpush1.msra.mxu0 %v2247
        %2264 = vmatprep.subr.mxu0 0.0
        %2265 = vmatpush1.msra.mxu0 %v2248
        %2266 = vmatprep.subr.mxu0 0.0
        %2267 = vmatpush1.msra.mxu0 %v2249
        %2268 = vmatprep.subr.mxu0 0.0
        %2269 = vmatpush1.msra.mxu0 %v2250
        %2270 = vmatprep.subr.mxu0 0.0
        %2271 = vmatpush1.msra.mxu0 0.0
        %2272 = vmatprep.subr.mxu0 0.0
        %2273 = vmatpush1.msra.mxu0 0.0
        %2274 = vmatprep.subr.mxu0 0.0
        %2275 = vmatpush1.msra.mxu0 0.0
        %2276 = vmatprep.subr.mxu0 0.0
        %2277 = vmatpush1.msra.mxu0 0.0
        %2278 = vmatprep.subr.mxu0 0.0
        %2279 = vmatpush1.msra.mxu0 0.0
        %2280 = vmatprep.subr.mxu0 0.0
        %2281 = vmatpush1.msra.mxu0 0.0
        %2282 = vmatprep.subr.mxu0 0.0
        %2283 = vmatpush1.msra.mxu0 0.0
        %2284 = vmatprep.subr.mxu0 0.0
        %2285 = vmatpush1.msra.mxu0 0.0
        %2286 = vmatprep.subr.mxu0 0.0
        %2287 = vmatpush1.msra.mxu0 0.0
        %2288 = vmatprep.subr.mxu0 0.0
        %2289 = vmatpush1.msra.mxu0 0.0
        %2290 = vmatprep.subr.mxu0 0.0
        %2291 = vmatpush1.msra.mxu0 0.0
        %2292 = vmatprep.subr.mxu0 0.0
        %2293 = vmatpush1.msra.mxu0 0.0
        %2294 = vmatprep.subr.mxu0 0.0
        %2295 = vmatpush1.msra.mxu0 0.0
        %2296 = vmatprep.subr.mxu0 0.0
        %2297 = vmatpush1.msra.mxu0 0.0
        %2298 = vmatprep.subr.mxu0 0.0
        %2299 = vmatpush1.msra.mxu0 0.0
        %2300 = vmatprep.subr.mxu0 0.0
        %2301 = vmatpush1.msra.mxu0 0.0
        %2302 = vmatprep.subr.mxu0 0.0
        %2303 = vmatpush1.msra.mxu0 0.0
        %2304 = vmatprep.subr.mxu0 0.0
        %2305 = vmatpush1.msra.mxu0 0.0
        %2306 = vmatprep.subr.mxu0 0.0
        %2307 = vmatpush1.msra.mxu0 0.0
        %2308 = vmatprep.subr.mxu0 0.0
        %2309 = vmatpush1.msra.mxu0 0.0
        %2310 = vmatprep.subr.mxu0 0.0
        %2311 = vmatpush1.msra.mxu0 0.0
        %2312 = vmatprep.subr.mxu0 0.0
        %2313 = vmatpush1.msra.mxu0 0.0
        %2314 = vmatprep.subr.mxu0 0.0
        %2315 = vmatpush1.msra.mxu0 0.0
        %2316 = vmatprep.subr.mxu0 0.0
        %2317 = vmatpush1.msra.mxu0 0.0
        %2318 = vmatprep.mubr.f32.mxu0 0.0
        %2319 = vmatmul.mubr.f32.gmra.mrb[0].mxu0 %v2252
        %v2320 = vpop.f32.mrb[0].mxu0
        %v2321 = vadd.f32 0.0, %v2320
        %v2322 = vpop.f32.mrb[0].mxu0
        %2323 = vdwg.mxu0
        %v2324 = vadd.f32 %v2127, %v2321
        %v2325 = vlaneseq
        %v2326 = vshrl.u32 %v2325, 7
        %v2327 = vsub.s32 5, %v2326
        %v2328 = vrot.slane %v1602, %v2327
        %v2329 = vadd.f32 %v2324, %v2328
        %v2330 = vsel %vm738, %v2329, 0.0
        %2331 = vadd.xlane.f32.xlu0 %v2330
        %v2332 = vpop.xlane.xlu0 %2331
        %v2333 = vmul.f32 %v2332, %v857
        %v2334 = vsub.f32 %v2329, %v2333
        %v2335 = vmul.f32 %v2334, %v2334
        %v2336 = vsel %vm738, %v2335, 0.0
        %2337 = vadd.xlane.f32.xlu0 %v2336
        %v2338 = vpop.xlane.xlu0 %2337
        %v2339 = vmul.f32 %v2338, %v857
        %v2340 = vadd.f32 %v2339, 1e-05
        %v2341 = vrsqrt.pop %v2340
        %v2342 = vmul.f32 %v2334, %v2341
        %v2343 = vlaneseq
        %v2344 = vshrl.u32 %v2343, 7
        %v2345 = vsub.s32 3, %v2344
        %v2346 = vrot.slane %v743, %v2345
        %v2347 = vmul.f32 %v2342, %v2346
        %v2348 = vlaneseq
        %v2349 = vshrl.u32 %v2348, 7
        %v2350 = vsub.s32 4, %v2349
        %v2351 = vrot.slane %v743, %v2350
        %v2352 = vadd.f32 %v2347, %v2351
        %v2353 = vld [vmem:[%s12] sm:$0xff]
        %v2354 = vld [vmem:[%s12 + $0x8] sm:$0xff]
        %v2355 = vld [vmem:[%s12 + $0x10] sm:$0xff]
        %v2356 = vld [vmem:[%s12 + $0x18] sm:$0xff]
        %v2357 = vld [vmem:[%s13] sm:$0x1]
        %v2359 = vlaneseq
        %v2360 = vshrl.u32 %v2359, 7
        %v2361 = vsub.s32 0, %v2360
        %v2362 = vrot.slane %v2357, %v2361
        %v2365 = vsel %vm738, %v2352, 0
        %2367 = vmatprep.subr.mxu0 0.0
        %2368 = vmatpush1.msra.mxu0 %v2353
        %2369 = vmatprep.subr.mxu0 0.0
        %2370 = vmatpush1.msra.mxu0 %v2354
        %2371 = vmatprep.subr.mxu0 0.0
        %2372 = vmatpush1.msra.mxu0 %v2355
        %2373 = vmatprep.subr.mxu0 0.0
        %2374 = vmatpush1.msra.mxu0 %v2356
        %2375 = vmatprep.subr.mxu0 0.0
        %2376 = vmatpush1.msra.mxu0 0.0
        %2377 = vmatprep.subr.mxu0 0.0
        %2378 = vmatpush1.msra.mxu0 0.0
        %2379 = vmatprep.subr.mxu0 0.0
        %2380 = vmatpush1.msra.mxu0 0.0
        %2381 = vmatprep.subr.mxu0 0.0
        %2382 = vmatpush1.msra.mxu0 0.0
        %2383 = vmatprep.subr.mxu0 0.0
        %2384 = vmatpush1.msra.mxu0 0.0
        %2385 = vmatprep.subr.mxu0 0.0
        %2386 = vmatpush1.msra.mxu0 0.0
        %2387 = vmatprep.subr.mxu0 0.0
        %2388 = vmatpush1.msra.mxu0 0.0
        %2389 = vmatprep.subr.mxu0 0.0
        %2390 = vmatpush1.msra.mxu0 0.0
        %2391 = vmatprep.subr.mxu0 0.0
        %2392 = vmatpush1.msra.mxu0 0.0
        %2393 = vmatprep.subr.mxu0 0.0
        %2394 = vmatpush1.msra.mxu0 0.0
        %2395 = vmatprep.subr.mxu0 0.0
        %2396 = vmatpush1.msra.mxu0 0.0
        %2397 = vmatprep.subr.mxu0 0.0
        %2398 = vmatpush1.msra.mxu0 0.0
        %2399 = vmatprep.subr.mxu0 0.0
        %2400 = vmatpush1.msra.mxu0 0.0
        %2401 = vmatprep.subr.mxu0 0.0
        %2402 = vmatpush1.msra.mxu0 0.0
        %2403 = vmatprep.subr.mxu0 0.0
        %2404 = vmatpush1.msra.mxu0 0.0
        %2405 = vmatprep.subr.mxu0 0.0
        %2406 = vmatpush1.msra.mxu0 0.0
        %2407 = vmatprep.subr.mxu0 0.0
        %2408 = vmatpush1.msra.mxu0 0.0
        %2409 = vmatprep.subr.mxu0 0.0
        %2410 = vmatpush1.msra.mxu0 0.0
        %2411 = vmatprep.subr.mxu0 0.0
        %2412 = vmatpush1.msra.mxu0 0.0
        %2413 = vmatprep.subr.mxu0 0.0
        %2414 = vmatpush1.msra.mxu0 0.0
        %2415 = vmatprep.subr.mxu0 0.0
        %2416 = vmatpush1.msra.mxu0 0.0
        %2417 = vmatprep.subr.mxu0 0.0
        %2418 = vmatpush1.msra.mxu0 0.0
        %2419 = vmatprep.subr.mxu0 0.0
        %2420 = vmatpush1.msra.mxu0 0.0
        %2421 = vmatprep.subr.mxu0 0.0
        %2422 = vmatpush1.msra.mxu0 0.0
        %2423 = vmatprep.subr.mxu0 0.0
        %2424 = vmatpush1.msra.mxu0 0.0
        %2425 = vmatprep.subr.mxu0 0.0
        %2426 = vmatpush1.msra.mxu0 0.0
        %2427 = vmatprep.subr.mxu0 0.0
        %2428 = vmatpush1.msra.mxu0 0.0
        %2429 = vmatprep.subr.mxu0 0.0
        %2430 = vmatpush1.msra.mxu0 0.0
        %2431 = vmatprep.mubr.f32.mxu0 0.0
        %2432 = vmatmul.mubr.f32.gmra.mrb[0].mxu0 %v2365
        %v2433 = vpop.f32.mrb[0].mxu0
        %v2434 = vadd.f32 %v2362, %v2433
        %v2435 = vpop.f32.mrb[0].mxu0
        %2436 = vdwg.mxu0
        %vm2437 = vcmask 72704
        %2438 = vst.msk [vmem:[%s600] sm:$0xff] %vm2437, %v2434
        %p2439 = scmp.lt.s32.totalorder %s32, 1
        %s2440 = scalar_select %p2439, %s32, 1
        %s2441 = smul.addr %s2440, 8
        %s2442 = scalar_lea.vmem %s14, %s2441
        // Predicated region
        $region113: #{bit_phoneme_forward.1} parent=75 // pred_check
          %p2443 = pneg %p349
        $region114: #{bit_phoneme_forward.1} parent=75 // pred_check_branch
          %2445 = sbr.rel (%p2443) target = $region116
        $region115: #{bit_phoneme_forward.1} parent=75 // pred_region
          _
        $region116: #{bit_phoneme_forward.1} parent=75 // pred_fallthru
          _
      $region76: #{bit_phoneme_forward.1} parent=5 // pred_fallthru
        _
      %p2446 = scmp.le.s32.totalorder 2, %s27
      // Predicated region
      $region117: #{bit_phoneme_forward.1} parent=5 // pred_check
        %p2447 = pneg %p2446
      $region118: #{bit_phoneme_forward.1} parent=5 // pred_check_branch
        %2449 = sbr.rel (%p2447) target = $region120
      $region119: #{bit_phoneme_forward.1} parent=5 // pred_region
        %s2450 = ssub.s32 %s27, 2
        // Predicated region
        $region121: #{bit_phoneme_forward.1} parent=119 // pred_check
          %p2451 = pneg %p355
        $region122: #{bit_phoneme_forward.1} parent=119 // pred_check_branch
          %2453 = sbr.rel (%p2451) target = $region124
        $region123: #{bit_phoneme_forward.1} parent=119 // pred_region
          %p2454 = scmp.lt.s32.totalorder %s33, 1
          %s2455 = scalar_select %p2454, %s33, 1
          %s2456 = smul.addr %s2455, 8
          %s2457 = scalar_lea.vmem %s14, %s2456
        $region124: #{bit_phoneme_forward.1} parent=119 // pred_fallthru
          _
      $region120: #{bit_phoneme_forward.1} parent=5 // pred_fallthru
        _
    $region6: #{bit_phoneme_forward.1} parent=1 // loop_footer
      %s31 = sadd.s32 1, %s27
    $region7: #{bit_phoneme_forward.1} parent=1 // loop_footer_branch
      %26 = sbr.rel target = $region3
    $region8: #{bit_phoneme_forward.1} parent=1 // loop_exit
      _
    %2458 = vsyncpa [#allocation3], 1
    %s2459 = scalar_lea.sflag [#allocation3], 1
    %2460 = vsyncpa %s2459, 1
    %2461 = vsyncpa [#allocation5], 1
    %2462 = vsyncpa [#allocation8], 1
    %2463 = vsyncpa [#allocation11], 1
    %2464 = vsyncpa [#allocation14], 1

</llo_original>
